<compile_context>
chip_gen: v6e
topology: v6e:2x2x1
jax: 0.10.0
libtpu: 0.0.40
codegen_flags: <defaults>
</compile_context>

<pallas_src>
import functools

import jax
import jax.numpy as jnp
from jax.experimental import pallas as pl
from jax.experimental.pallas import tpu as pltpu


LANE = 128                       # lane-dense matmul/output width
_VMEM_LIMIT = 32 * 1024 * 1024   # explicit scoped-VMEM limit, safe on all gens


def _round_up(a, b):
    return (a + b - 1) // b * b


def _pick_tiles(total, unit, max_tile):
    """Largest multiple of `unit` <= max_tile; guarantee >= 2 grid steps."""
    k = max(1, min(max_tile // unit, pl.cdiv(total, 2 * unit)))
    tile = k * unit
    padded = _round_up(total, tile)
    if padded // tile < 2:          # keep both v7x TensorCores busy
        padded = 2 * tile
    return tile, padded


# ----------------------------------------------------------------------------
# Pallas kernels
# ----------------------------------------------------------------------------
def _conv_pool_relu_kernel(x_ref, w_ref, b_ref, o_ref):
    """Fused conv (im2col matmul, 4 pool offsets in one dot) + bias + pool + ReLU.

    x_ref : (4, T, K)  bf16   patches grouped by 2x2 pool offset
    w_ref : (K, 128)   bf16   conv weights, zero-padded to 128 out columns
    b_ref : (1, 128)   f32
    o_ref : (T, 128)   bf16   relu(maxpool(conv)+bias), lane-dense
    """
    t = x_ref.shape[1]
    k = x_ref.shape[2]
    x = x_ref[...].reshape(4 * t, k)                 # leading-dim merge: layout-free
    y4 = jnp.dot(x, w_ref[...], preferred_element_type=jnp.float32)
    y = jnp.maximum(jnp.maximum(y4[0:t], y4[t:2 * t]),
                    jnp.maximum(y4[2 * t:3 * t], y4[3 * t:4 * t]))
    y = y + b_ref[...]                               # bias constant over the window
    o_ref[...] = jnp.maximum(y, 0.0).astype(o_ref.dtype)


def _conv2_mlp_kernel(p_ref, w2_ref, b2_ref, w1_ref, b1_ref, w3_ref, b3_ref,
                      o_ref, *, n_pos, valid_out):
    """Fused conv2 + bias + pool + ReLU + fc1 + ReLU + fc2 + log_softmax.

    p_ref  : (4, n_pos, BT, K2) bf16   conv2 patches, position-major rows
    w2_ref : (K2, 128)          bf16   conv2 weights (20 valid out cols)
    b2_ref : (1, 128)           f32
    w1_ref : (n_pos*128, 128)   bf16   fc1 weights, per-position row blocks
    b1_ref : (1, 128)           f32
    w3_ref : (128, 128)         bf16   fc2 weights
    b3_ref : (1, 128)           f32
    o_ref  : (BT, 128)          f32    log-probs (10 valid cols)
    """
    bt = p_ref.shape[2]
    k2 = p_ref.shape[3]
    r = n_pos * bt

    # conv2: one merged MXU dot over all 4 pool offsets and all positions
    x = p_ref[...].reshape(4 * r, k2)
    y4 = jnp.dot(x, w2_ref[...], preferred_element_type=jnp.float32)   # (4r,128)
    y = jnp.maximum(jnp.maximum(y4[0:r], y4[r:2 * r]),
                    jnp.maximum(y4[2 * r:3 * r], y4[3 * r:4 * r]))      # (r,128)
    h2 = jnp.maximum(y + b2_ref[...], 0.0).astype(jnp.bfloat16)

    # flatten (position-major rows) -> (BT, n_pos*128) via aligned lane concat
    h2w = jnp.concatenate([h2[p * bt:(p + 1) * bt] for p in range(n_pos)], axis=1)

    # fc1 + ReLU (hidden never leaves vregs/VMEM)
    h = jnp.dot(h2w, w1_ref[...], preferred_element_type=jnp.float32)
    h = jnp.maximum(h + b1_ref[...], 0.0).astype(jnp.bfloat16)

    # fc2 + masked log_softmax (padded logit columns forced to -1e30)
    logits = jnp.dot(h, w3_ref[...], preferred_element_type=jnp.float32) + b3_ref[...]
    col = jax.lax.broadcasted_iota(jnp.int32, logits.shape, 1)
    logits = jnp.where(col < valid_out, logits, -1e30)
    m = jnp.max(logits, axis=-1, keepdims=True)
    z = logits - m
    o_ref[...] = (z - jnp.log(jnp.sum(jnp.exp(z), axis=-1, keepdims=True))
                  ).astype(o_ref.dtype)


# ----------------------------------------------------------------------------
# XLA-side glue: pooled im2col (pure data movement, already bf16)
# ----------------------------------------------------------------------------
def _im2col_pooled(x, k):
    """x: (N,H,W,C) -> (4, N*PH*PW, k*k*C), grouped by 2x2 pool offset,
    rows batch-major (b, ph, pw), features ordered (kh, kw, ci)."""
    N, H, W, C = x.shape
    OH, OW = H - k + 1, W - k + 1
    assert OH % 2 == 0 and OW % 2 == 0
    PH, PW = OH // 2, OW // 2
    groups = []
    for doh in range(2):
        for dow in range(2):
            cols = []
            for kh in range(k):
                for kw in range(k):
                    r0, c0 = doh + kh, dow + kw
                    cols.append(x[:, r0:r0 + 2 * PH - 1:2, c0:c0 + 2 * PW - 1:2, :])
            g = jnp.stack(cols, axis=-2)                       # (N,PH,PW,kk,C)
            groups.append(g.reshape(N * PH * PW, k * k * C))
    return jnp.stack(groups, axis=0), (N, PH, PW)              # (4, M, K)


def _im2col_pooled_pm(x, k):
    """Same as above but rows ordered position-major: (4, PH*PW, N, k*k*C)."""
    N, H, W, C = x.shape
    OH, OW = H - k + 1, W - k + 1
    assert OH % 2 == 0 and OW % 2 == 0
    PH, PW = OH // 2, OW // 2
    groups = []
    for doh in range(2):
        for dow in range(2):
            cols = []
            for kh in range(k):
                for kw in range(k):
                    r0, c0 = doh + kh, dow + kw
                    cols.append(x[:, r0:r0 + 2 * PH - 1:2, c0:c0 + 2 * PW - 1:2, :])
            g = jnp.stack(cols, axis=-2).reshape(N, PH * PW, k * k * C)
            groups.append(jnp.transpose(g, (1, 0, 2)))         # (P, N, K)
    return jnp.stack(groups, axis=0), (PH, PW)                 # (4, P, N, K)


# ----------------------------------------------------------------------------
# Layer wrappers
# ----------------------------------------------------------------------------
def conv_pool_relu(x_nhwc, weight, bias, *, max_tile=2016):
    """relu(max_pool2d(conv2d(x)+b, 2)) on NHWC input, PyTorch (O,I,kh,kw) weights."""
    Cout, Cin, k, _ = weight.shape
    x_bf = x_nhwc.astype(jnp.bfloat16)                   # bf16 BEFORE im2col
    patches, (N, PH, PW) = _im2col_pooled(x_bf, k)       # (4, M, K) bf16
    M = N * PH * PW
    K = k * k * Cin
    rows_per_img = PH * PW
    assert rows_per_img % 8 == 0

    tile, m_pad = _pick_tiles(M, rows_per_img, max_tile)
    if m_pad != M:
        patches = jnp.pad(patches, ((0, 0), (0, m_pad - M), (0, 0)))

    w_mat = jnp.transpose(weight, (2, 3, 1, 0)).reshape(K, Cout)
    w_mat = jnp.pad(w_mat, ((0, 0), (0, LANE - Cout))).astype(jnp.bfloat16)
    b_row = jnp.pad(bias, (0, LANE - Cout)).reshape(1, LANE).astype(jnp.float32)

    out = pl.pallas_call(
        _conv_pool_relu_kernel,
        out_shape=jax.ShapeDtypeStruct((m_pad, LANE), jnp.bfloat16),
        grid=(m_pad // tile,),
        in_specs=[
            pl.BlockSpec((4, tile, K), lambda i: (0, i, 0)),   # streamed rows
            pl.BlockSpec((K, LANE), lambda i: (0, 0)),         # resident weight
            pl.BlockSpec((1, LANE), lambda i: (0, 0)),         # resident bias
        ],
        out_specs=pl.BlockSpec((tile, LANE), lambda i: (i, 0)),
        compiler_params=pltpu.CompilerParams(
            dimension_semantics=("parallel",),
            vmem_limit_bytes=_VMEM_LIMIT,
        ),
    )(patches, w_mat, b_row)

    return out[:M, :Cout].reshape(N, PH, PW, Cout)             # bf16


def conv2_mlp_head(h1, conv2_w, conv2_b, fc1_w, fc1_b, fc2_w, fc2_b, *,
                   max_b_tile=64):
    """log_softmax(fc2(relu(fc1(flatten(relu(pool(conv2(h1)+b2))))))) fused."""
    N = h1.shape[0]
    Cout, Cin, k, _ = conv2_w.shape                      # (20, 10, 5, 5)
    H = fc1_w.shape[0]                                   # 50
    O = fc2_w.shape[0]                                   # 10

    b_tile, n_pad = _pick_tiles(N, 8, max_b_tile)
    if n_pad != N:
        h1 = jnp.pad(h1, ((0, n_pad - N), (0, 0), (0, 0), (0, 0)))

    patches, (PH, PW) = _im2col_pooled_pm(h1.astype(jnp.bfloat16), k)  # (4,P,n_pad,K2)
    n_pos = PH * PW                                      # 16
    K2 = k * k * Cin                                     # 250

    # conv2 weights / bias
    w2 = jnp.transpose(conv2_w, (2, 3, 1, 0)).reshape(K2, Cout)
    w2 = jnp.pad(w2, ((0, 0), (0, LANE - Cout))).astype(jnp.bfloat16)
    b2 = jnp.pad(conv2_b, (0, LANE - Cout)).reshape(1, LANE).astype(jnp.float32)

    # fc1 weights reordered to match the kernel's (position, channel) feature
    # layout: PyTorch .view(-1,320) flattens NCHW as f = c*16 + p.
    w1 = fc1_w.reshape(H, Cout, n_pos)                   # (j, c, p)
    w1 = jnp.transpose(w1, (2, 1, 0))                    # (p, c, j)
    w1 = jnp.pad(w1, ((0, 0), (0, LANE - Cout), (0, LANE - H)))
    w1 = w1.reshape(n_pos * LANE, LANE).astype(jnp.bfloat16)
    b1 = jnp.pad(fc1_b, (0, LANE - H)).reshape(1, LANE).astype(jnp.float32)

    w3 = jnp.pad(fc2_w.T, ((0, LANE - H), (0, LANE - O))).astype(jnp.bfloat16)
    b3 = jnp.pad(fc2_b, (0, LANE - O)).reshape(1, LANE).astype(jnp.float32)

    kernel = functools.partial(_conv2_mlp_kernel, n_pos=n_pos, valid_out=O)
    out = pl.pallas_call(
        kernel,
        out_shape=jax.ShapeDtypeStruct((n_pad, LANE), jnp.float32),
        grid=(n_pad // b_tile,),
        in_specs=[
            pl.BlockSpec((4, n_pos, b_tile, K2), lambda i: (0, 0, i, 0)),
            pl.BlockSpec((K2, LANE), lambda i: (0, 0)),
            pl.BlockSpec((1, LANE), lambda i: (0, 0)),
            pl.BlockSpec((n_pos * LANE, LANE), lambda i: (0, 0)),
            pl.BlockSpec((1, LANE), lambda i: (0, 0)),
            pl.BlockSpec((LANE, LANE), lambda i: (0, 0)),
            pl.BlockSpec((1, LANE), lambda i: (0, 0)),
        ],
        out_specs=pl.BlockSpec((b_tile, LANE), lambda i: (i, 0)),
        compiler_params=pltpu.CompilerParams(
            dimension_semantics=("parallel",),
            vmem_limit_bytes=_VMEM_LIMIT,
        ),
    )(patches, w2, b2, w1, b1, w3, b3)

    return out[:N, :O]


# ----------------------------------------------------------------------------
# Full forward pass
# ----------------------------------------------------------------------------
def net_forward(x_nchw, params):
    x = jnp.transpose(x_nchw, (0, 2, 3, 1))                           # NHWC
    h1 = conv_pool_relu(x, params["conv1_w"], params["conv1_b"])      # (N,12,12,10) bf16
    # Dropout2d / F.dropout: identity at inference time.
    return conv2_mlp_head(h1, params["conv2_w"], params["conv2_b"],
                          params["fc1_w"], params["fc1_b"],
                          params["fc2_w"], params["fc2_b"])           # (N, 10)


# ----------------------------------------------------------------------------
# Params / reference / main
# ----------------------------------------------------------------------------
def init_params(key):
    ks = jax.random.split(key, 8)

    def u(k, shape, fan_in):
        bound = 1.0 / jnp.sqrt(fan_in)
        return jax.random.uniform(k, shape, jnp.float32, -bound, bound)

    return {
        "conv1_w": u(ks[0], (10, 1, 5, 5), 1 * 5 * 5),
        "conv1_b": u(ks[1], (10,), 1 * 5 * 5),
        "conv2_w": u(ks[2], (20, 10, 5, 5), 10 * 5 * 5),
        "conv2_b": u(ks[3], (20,), 10 * 5 * 5),
        "fc1_w": u(ks[4], (50, 320), 320),
        "fc1_b": u(ks[5], (50,), 320),
        "fc2_w": u(ks[6], (10, 50), 50),
        "fc2_b": u(ks[7], (10,), 50),
    }


def reference_forward(x, params):
    """Plain-JAX f32 reference of the PyTorch module."""
    dn = ("NCHW", "OIHW", "NCHW")
    y = jax.lax.conv_general_dilated(x, params["conv1_w"], (1, 1), "VALID",
                                     dimension_numbers=dn)
    y = y + params["conv1_b"][None, :, None, None]
    y = jax.lax.reduce_window(y, -jnp.inf, jax.lax.max, (1, 1, 2, 2),
                              (1, 1, 2, 2), "VALID")
    y = jax.nn.relu(y)
    y = jax.lax.conv_general_dilated(y, params["conv2_w"], (1, 1), "VALID",
                                     dimension_numbers=dn)
    y = y + params["conv2_b"][None, :, None, None]
    y = jax.lax.reduce_window(y, -jnp.inf, jax.lax.max, (1, 1, 2, 2),
                              (1, 1, 2, 2), "VALID")
    y = jax.nn.relu(y)
    y = y.reshape(y.shape[0], -1)
    y = jax.nn.relu(y @ params["fc1_w"].T + params["fc1_b"])
    y = y @ params["fc2_w"].T + params["fc2_b"]
    return jax.nn.log_softmax(y, axis=-1)


if __name__ == "__main__":
    key = jax.random.PRNGKey(0)
    k_x, k_p = jax.random.split(key)

    N = 2
    x = jax.random.normal(k_x, (N, 1, 28, 28), dtype=jnp.float32)  # NCHW like PyTorch
    params = init_params(k_p)

    out = jax.jit(net_forward)(x, params)
    out = jax.block_until_ready(out)

    assert out.shape == (N, 10)
    # log_softmax rows should sum (in prob space) to ~1.
    assert jnp.allclose(jnp.sum(jnp.exp(out), axis=1), 1.0, atol=1e-3)
    # Match the f32 reference (bf16 MXU operands -> loose absolute tolerance).
    ref = reference_forward(x, params)
    assert jnp.allclose(out, ref, atol=2e-1), float(jnp.max(jnp.abs(out - ref)))
    print("KERNEL_OK")
</pallas_src>

<mosaic_0001>
module attributes {stable_mosaic.version = 11 : i64} {
  func.func @_conv_pool_relu_kernel(%arg0: i32, %arg1: memref<4x144x25xbf16, #tpu.memory_space<vmem>>, %arg2: memref<25x128xbf16, #tpu.memory_space<vmem>>, %arg3: memref<1x128xf32, #tpu.memory_space<vmem>>, %arg4: memref<144x128xbf16, #tpu.memory_space<vmem>>) attributes {dimension_semantics = [#tpu.dimension_semantics<parallel>], iteration_bounds = array<i64: 2>, scalar_prefetch = 0 : i64, scratch_operands = 0 : i64, tpu.core_type = #tpu.core_type<tc>, window_params = [{transform_indices = @transform_0, window_bounds = array<i64: 4, 144, 25>}, {pipeline_mode = #tpu.pipeline_mode<synchronous>, transform_indices = @transform_1, window_bounds = array<i64: 25, 128>}, {pipeline_mode = #tpu.pipeline_mode<synchronous>, transform_indices = @transform_2, window_bounds = array<i64: 1, 128>}, {transform_indices = @transform_3, window_bounds = array<i64: 144, 128>}]} {
    %c0 = arith.constant 0 : index
    %c0_0 = arith.constant 0 : index
    %c0_1 = arith.constant 0 : index
    %0 = vector.load %arg1[%c0, %c0_0, %c0_1] : memref<4x144x25xbf16, #tpu.memory_space<vmem>>, vector<4x144x25xbf16>
    %1 = vector.shape_cast %0 : vector<4x144x25xbf16> to vector<576x25xbf16>
    %c0_2 = arith.constant 0 : index
    %c0_3 = arith.constant 0 : index
    %2 = vector.load %arg2[%c0_2, %c0_3] : memref<25x128xbf16, #tpu.memory_space<vmem>>, vector<25x128xbf16>
    %cst = arith.constant dense<0.000000e+00> : vector<576x128xf32>
    %3 = tpu.matmul %1, %2, %cst {dimension_numbers = #tpu.dot_dimension_numbers<[1], [0], [0], [1], [0, 0, 1, 1], [], []>} : vector<576x25xbf16>, vector<25x128xbf16>, vector<576x128xf32> -> vector<576x128xf32>
    %4 = vector.extract_strided_slice %3 {offsets = [0, 0], sizes = [144, 128], strides = [1, 1]} : vector<576x128xf32> to vector<144x128xf32>
    %5 = vector.extract_strided_slice %3 {offsets = [144, 0], sizes = [144, 128], strides = [1, 1]} : vector<576x128xf32> to vector<144x128xf32>
    %6 = arith.maximumf %4, %5 : vector<144x128xf32>
    %7 = vector.extract_strided_slice %3 {offsets = [288, 0], sizes = [144, 128], strides = [1, 1]} : vector<576x128xf32> to vector<144x128xf32>
    %8 = vector.extract_strided_slice %3 {offsets = [432, 0], sizes = [144, 128], strides = [1, 1]} : vector<576x128xf32> to vector<144x128xf32>
    %9 = arith.maximumf %7, %8 : vector<144x128xf32>
    %10 = arith.maximumf %6, %9 : vector<144x128xf32>
    %c0_4 = arith.constant 0 : index
    %c0_5 = arith.constant 0 : index
    %11 = vector.load %arg3[%c0_4, %c0_5] : memref<1x128xf32, #tpu.memory_space<vmem>>, vector<1x128xf32>
    %12 = vector.broadcast %11 : vector<1x128xf32> to vector<144x128xf32>
    %13 = arith.addf %10, %12 : vector<144x128xf32>
    %cst_6 = arith.constant 0.000000e+00 : f32
    %14 = vector.broadcast %cst_6 : f32 to vector<144x128xf32>
    %15 = arith.maximumf %13, %14 : vector<144x128xf32>
    %16 = arith.truncf %15 : vector<144x128xf32> to vector<144x128xbf16>
    %c0_7 = arith.constant 0 : index
    %c0_8 = arith.constant 0 : index
    %17 = vector.load %arg4[%c0_7, %c0_8] : memref<144x128xbf16, #tpu.memory_space<vmem>>, vector<144x128xbf16>
    tpu.vector_store %arg4[%c0_7, %c0_8], %16 {strides = array<i32>} : memref<144x128xbf16, #tpu.memory_space<vmem>>, vector<144x128xbf16>,
    return
  }
  func.func @transform_0(%arg0: i32) -> (i32, i32, i32) {
    %c0_i32 = arith.constant 0 : i32
    %c0_i32_0 = arith.constant 0 : i32
    %c0_i32_1 = arith.constant 0 : i32
    return %c0_i32, %arg0, %c0_i32_0 : i32, i32, i32
  }
  func.func @transform_1(%arg0: i32) -> (i32, i32) {
    %c0_i32 = arith.constant 0 : i32
    %c0_i32_0 = arith.constant 0 : i32
    %c0_i32_1 = arith.constant 0 : i32
    return %c0_i32, %c0_i32_0 : i32, i32
  }
  func.func @transform_2(%arg0: i32) -> (i32, i32) {
    %c0_i32 = arith.constant 0 : i32
    %c0_i32_0 = arith.constant 0 : i32
    %c0_i32_1 = arith.constant 0 : i32
    return %c0_i32, %c0_i32_0 : i32, i32
  }
  func.func @transform_3(%arg0: i32) -> (i32, i32) {
    %c0_i32 = arith.constant 0 : i32
    %c0_i32_0 = arith.constant 0 : i32
    return %arg0, %c0_i32 : i32, i32
  }
}

module attributes {stable_mosaic.version = 11 : i64} {
  func.func @_conv2_mlp_kernel(%arg0: i32, %arg1: memref<4x16x8x250xbf16, #tpu.memory_space<vmem>>, %arg2: memref<250x128xbf16, #tpu.memory_space<vmem>>, %arg3: memref<1x128xf32, #tpu.memory_space<vmem>>, %arg4: memref<2048x128xbf16, #tpu.memory_space<vmem>>, %arg5: memref<1x128xf32, #tpu.memory_space<vmem>>, %arg6: memref<128x128xbf16, #tpu.memory_space<vmem>>, %arg7: memref<1x128xf32, #tpu.memory_space<vmem>>, %arg8: memref<8x128xf32, #tpu.memory_space<vmem>>) attributes {dimension_semantics = [#tpu.dimension_semantics<parallel>], iteration_bounds = array<i64: 2>, scalar_prefetch = 0 : i64, scratch_operands = 0 : i64, tpu.core_type = #tpu.core_type<tc>, window_params = [{transform_indices = @transform_0, window_bounds = array<i64: 4, 16, 8, 250>}, {pipeline_mode = #tpu.pipeline_mode<synchronous>, transform_indices = @transform_1, window_bounds = array<i64: 250, 128>}, {pipeline_mode = #tpu.pipeline_mode<synchronous>, transform_indices = @transform_2, window_bounds = array<i64: 1, 128>}, {pipeline_mode = #tpu.pipeline_mode<synchronous>, transform_indices = @transform_3, window_bounds = array<i64: 2048, 128>}, {pipeline_mode = #tpu.pipeline_mode<synchronous>, transform_indices = @transform_4, window_bounds = array<i64: 1, 128>}, {pipeline_mode = #tpu.pipeline_mode<synchronous>, transform_indices = @transform_5, window_bounds = array<i64: 128, 128>}, {pipeline_mode = #tpu.pipeline_mode<synchronous>, transform_indices = @transform_6, window_bounds = array<i64: 1, 128>}, {transform_indices = @transform_7, window_bounds = array<i64: 8, 128>}]} {
    %c0 = arith.constant 0 : index
    %c0_0 = arith.constant 0 : index
    %c0_1 = arith.constant 0 : index
    %c0_2 = arith.constant 0 : index
    %0 = vector.load %arg1[%c0, %c0_0, %c0_1, %c0_2] : memref<4x16x8x250xbf16, #tpu.memory_space<vmem>>, vector<4x16x8x250xbf16>
    %1 = vector.shape_cast %0 : vector<4x16x8x250xbf16> to vector<512x250xbf16>
    %c0_3 = arith.constant 0 : index
    %c0_4 = arith.constant 0 : index
    %2 = vector.load %arg2[%c0_3, %c0_4] : memref<250x128xbf16, #tpu.memory_space<vmem>>, vector<250x128xbf16>
    %cst = arith.constant dense<0.000000e+00> : vector<512x128xf32>
    %3 = tpu.matmul %1, %2, %cst {dimension_numbers = #tpu.dot_dimension_numbers<[1], [0], [0], [1], [0, 0, 1, 1], [], []>} : vector<512x250xbf16>, vector<250x128xbf16>, vector<512x128xf32> -> vector<512x128xf32>
    %4 = vector.extract_strided_slice %3 {offsets = [0, 0], sizes = [128, 128], strides = [1, 1]} : vector<512x128xf32> to vector<128x128xf32>
    %5 = vector.extract_strided_slice %3 {offsets = [128, 0], sizes = [128, 128], strides = [1, 1]} : vector<512x128xf32> to vector<128x128xf32>
    %6 = arith.maximumf %4, %5 : vector<128x128xf32>
    %7 = vector.extract_strided_slice %3 {offsets = [256, 0], sizes = [128, 128], strides = [1, 1]} : vector<512x128xf32> to vector<128x128xf32>
    %8 = vector.extract_strided_slice %3 {offsets = [384, 0], sizes = [128, 128], strides = [1, 1]} : vector<512x128xf32> to vector<128x128xf32>
    %9 = arith.maximumf %7, %8 : vector<128x128xf32>
    %10 = arith.maximumf %6, %9 : vector<128x128xf32>
    %c0_5 = arith.constant 0 : index
    %c0_6 = arith.constant 0 : index
    %11 = vector.load %arg3[%c0_5, %c0_6] : memref<1x128xf32, #tpu.memory_space<vmem>>, vector<1x128xf32>
    %12 = vector.broadcast %11 : vector<1x128xf32> to vector<128x128xf32>
    %13 = arith.addf %10, %12 : vector<128x128xf32>
    %cst_7 = arith.constant 0.000000e+00 : f32
    %14 = vector.broadcast %cst_7 : f32 to vector<128x128xf32>
    %15 = arith.maximumf %13, %14 : vector<128x128xf32>
    %16 = arith.truncf %15 : vector<128x128xf32> to vector<128x128xbf16>
    %17 = vector.extract_strided_slice %16 {offsets = [0, 0], sizes = [8, 128], strides = [1, 1]} : vector<128x128xbf16> to vector<8x128xbf16>
    %18 = vector.extract_strided_slice %16 {offsets = [8, 0], sizes = [8, 128], strides = [1, 1]} : vector<128x128xbf16> to vector<8x128xbf16>
    %19 = vector.extract_strided_slice %16 {offsets = [16, 0], sizes = [8, 128], strides = [1, 1]} : vector<128x128xbf16> to vector<8x128xbf16>
    %20 = vector.extract_strided_slice %16 {offsets = [24, 0], sizes = [8, 128], strides = [1, 1]} : vector<128x128xbf16> to vector<8x128xbf16>
    %21 = vector.extract_strided_slice %16 {offsets = [32, 0], sizes = [8, 128], strides = [1, 1]} : vector<128x128xbf16> to vector<8x128xbf16>
    %22 = vector.extract_strided_slice %16 {offsets = [40, 0], sizes = [8, 128], strides = [1, 1]} : vector<128x128xbf16> to vector<8x128xbf16>
    %23 = vector.extract_strided_slice %16 {offsets = [48, 0], sizes = [8, 128], strides = [1, 1]} : vector<128x128xbf16> to vector<8x128xbf16>
    %24 = vector.extract_strided_slice %16 {offsets = [56, 0], sizes = [8, 128], strides = [1, 1]} : vector<128x128xbf16> to vector<8x128xbf16>
    %25 = vector.extract_strided_slice %16 {offsets = [64, 0], sizes = [8, 128], strides = [1, 1]} : vector<128x128xbf16> to vector<8x128xbf16>
    %26 = vector.extract_strided_slice %16 {offsets = [72, 0], sizes = [8, 128], strides = [1, 1]} : vector<128x128xbf16> to vector<8x128xbf16>
    %27 = vector.extract_strided_slice %16 {offsets = [80, 0], sizes = [8, 128], strides = [1, 1]} : vector<128x128xbf16> to vector<8x128xbf16>
    %28 = vector.extract_strided_slice %16 {offsets = [88, 0], sizes = [8, 128], strides = [1, 1]} : vector<128x128xbf16> to vector<8x128xbf16>
    %29 = vector.extract_strided_slice %16 {offsets = [96, 0], sizes = [8, 128], strides = [1, 1]} : vector<128x128xbf16> to vector<8x128xbf16>
    %30 = vector.extract_strided_slice %16 {offsets = [104, 0], sizes = [8, 128], strides = [1, 1]} : vector<128x128xbf16> to vector<8x128xbf16>
    %31 = vector.extract_strided_slice %16 {offsets = [112, 0], sizes = [8, 128], strides = [1, 1]} : vector<128x128xbf16> to vector<8x128xbf16>
    %32 = vector.extract_strided_slice %16 {offsets = [120, 0], sizes = [8, 128], strides = [1, 1]} : vector<128x128xbf16> to vector<8x128xbf16>
    %33 = tpu.concatenate %17, %18, %19, %20, %21, %22, %23, %24, %25, %26, %27, %28, %29, %30, %31, %32 in 1 : vector<8x128xbf16>, vector<8x128xbf16>, vector<8x128xbf16>, vector<8x128xbf16>, vector<8x128xbf16>, vector<8x128xbf16>, vector<8x128xbf16>, vector<8x128xbf16>, vector<8x128xbf16>, vector<8x128xbf16>, vector<8x128xbf16>, vector<8x128xbf16>, vector<8x128xbf16>, vector<8x128xbf16>, vector<8x128xbf16>, vector<8x128xbf16> -> vector<8x2048xbf16>
    %c0_8 = arith.constant 0 : index
    %c0_9 = arith.constant 0 : index
    %34 = vector.load %arg4[%c0_8, %c0_9] : memref<2048x128xbf16, #tpu.memory_space<vmem>>, vector<2048x128xbf16>
    %cst_10 = arith.constant dense<0.000000e+00> : vector<8x128xf32>
    %35 = tpu.matmul %33, %34, %cst_10 {dimension_numbers = #tpu.dot_dimension_numbers<[1], [0], [0], [1], [0, 0, 1, 1], [], []>} : vector<8x2048xbf16>, vector<2048x128xbf16>, vector<8x128xf32> -> vector<8x128xf32>
    %c0_11 = arith.constant 0 : index
    %c0_12 = arith.constant 0 : index
    %36 = vector.load %arg5[%c0_11, %c0_12] : memref<1x128xf32, #tpu.memory_space<vmem>>, vector<1x128xf32>
    %37 = vector.broadcast %36 : vector<1x128xf32> to vector<8x128xf32>
    %38 = arith.addf %35, %37 : vector<8x128xf32>
    %cst_13 = arith.constant 0.000000e+00 : f32
    %39 = vector.broadcast %cst_13 : f32 to vector<8x128xf32>
    %40 = arith.maximumf %38, %39 : vector<8x128xf32>
    %41 = arith.truncf %40 : vector<8x128xf32> to vector<8x128xbf16>
    %c0_14 = arith.constant 0 : index
    %c0_15 = arith.constant 0 : index
    %42 = vector.load %arg6[%c0_14, %c0_15] : memref<128x128xbf16, #tpu.memory_space<vmem>>, vector<128x128xbf16>
    %cst_16 = arith.constant dense<0.000000e+00> : vector<8x128xf32>
    %43 = tpu.matmul %41, %42, %cst_16 {dimension_numbers = #tpu.dot_dimension_numbers<[1], [0], [0], [1], [0, 0, 1, 1], [], []>} : vector<8x128xbf16>, vector<128x128xbf16>, vector<8x128xf32> -> vector<8x128xf32>
    %c0_17 = arith.constant 0 : index
    %c0_18 = arith.constant 0 : index
    %44 = vector.load %arg7[%c0_17, %c0_18] : memref<1x128xf32, #tpu.memory_space<vmem>>, vector<1x128xf32>
    %45 = vector.broadcast %44 : vector<1x128xf32> to vector<8x128xf32>
    %46 = arith.addf %43, %45 : vector<8x128xf32>
    %47 = tpu.iota {dimensions = array<i32: 1>} : vector<8x128xi32>
    %c10_i32 = arith.constant 10 : i32
    %48 = vector.broadcast %c10_i32 : i32 to vector<8x128xi32>
    %49 = arith.cmpi slt, %47, %48 : vector<8x128xi32>
    %cst_19 = arith.constant -1.000000e+30 : f32
    %50 = vector.broadcast %cst_19 : f32 to vector<8x128xf32>
    %51 = arith.select %49, %46, %50 : vector<8x128xi1>, vector<8x128xf32>
    %cst_20 = arith.constant dense<0xFF800000> : vector<8xf32>
    %52 = vector.multi_reduction <maximumf>, %51, %cst_20 [1] : vector<8x128xf32> to vector<8xf32>
    %53 = vector.shape_cast %52 : vector<8xf32> to vector<8x1xf32>
    %54 = vector.broadcast %53 : vector<8x1xf32> to vector<8x128xf32>
    %55 = arith.subf %51, %54 : vector<8x128xf32>
    %56 = math.exp %55 : vector<8x128xf32>
    %cst_21 = arith.constant dense<0.000000e+00> : vector<8xf32>
    %57 = vector.multi_reduction <add>, %56, %cst_21 [1] : vector<8x128xf32> to vector<8xf32>
    %58 = vector.shape_cast %57 : vector<8xf32> to vector<8x1xf32>
    %59 = math.log %58 : vector<8x1xf32>
    %60 = vector.broadcast %59 : vector<8x1xf32> to vector<8x128xf32>
    %61 = arith.subf %55, %60 : vector<8x128xf32>
    %c0_22 = arith.constant 0 : index
    %c0_23 = arith.constant 0 : index
    %62 = vector.load %arg8[%c0_22, %c0_23] : memref<8x128xf32, #tpu.memory_space<vmem>>, vector<8x128xf32>
    tpu.vector_store %arg8[%c0_22, %c0_23], %61 {strides = array<i32>} : memref<8x128xf32, #tpu.memory_space<vmem>>, vector<8x128xf32>,
    return
  }
  func.func @transform_0(%arg0: i32) -> (i32, i32, i32, i32) {
    %c0_i32 = arith.constant 0 : i32
    %c0_i32_0 = arith.constant 0 : i32
    %c0_i32_1 = arith.constant 0 : i32
    %c0_i32_2 = arith.constant 0 : i32
    return %c0_i32, %c0_i32_0, %arg0, %c0_i32_1 : i32, i32, i32, i32
  }
  func.func @transform_1(%arg0: i32) -> (i32, i32) {
    %c0_i32 = arith.constant 0 : i32
    %c0_i32_0 = arith.constant 0 : i32
    %c0_i32_1 = arith.constant 0 : i32
    return %c0_i32, %c0_i32_0 : i32, i32
  }
  func.func @transform_2(%arg0: i32) -> (i32, i32) {
    %c0_i32 = arith.constant 0 : i32
    %c0_i32_0 = arith.constant 0 : i32
    %c0_i32_1 = arith.constant 0 : i32
    return %c0_i32, %c0_i32_0 : i32, i32
  }
  func.func @transform_3(%arg0: i32) -> (i32, i32) {
    %c0_i32 = arith.constant 0 : i32
    %c0_i32_0 = arith.constant 0 : i32
    %c0_i32_1 = arith.constant 0 : i32
    return %c0_i32, %c0_i32_0 : i32, i32
  }
  func.func @transform_4(%arg0: i32) -> (i32, i32) {
    %c0_i32 = arith.constant 0 : i32
    %c0_i32_0 = arith.constant 0 : i32
    %c0_i32_1 = arith.constant 0 : i32
    return %c0_i32, %c0_i32_0 : i32, i32
  }
  func.func @transform_5(%arg0: i32) -> (i32, i32) {
    %c0_i32 = arith.constant 0 : i32
    %c0_i32_0 = arith.constant 0 : i32
    %c0_i32_1 = arith.constant 0 : i32
    return %c0_i32, %c0_i32_0 : i32, i32
  }
  func.func @transform_6(%arg0: i32) -> (i32, i32) {
    %c0_i32 = arith.constant 0 : i32
    %c0_i32_0 = arith.constant 0 : i32
    %c0_i32_1 = arith.constant 0 : i32
    return %c0_i32, %c0_i32_0 : i32, i32
  }
  func.func @transform_7(%arg0: i32) -> (i32, i32) {
    %c0_i32 = arith.constant 0 : i32
    %c0_i32_0 = arith.constant 0 : i32
    return %arg0, %c0_i32 : i32, i32
  }
}

</mosaic_0001>

<llo_original>
// kernel: net_forward.2
$region0: #{net_forward.2}
  #allocation0 [shape = 'u32[]', space=smem, size = 0x4, offset = 0x4, fixed_abs, tag = 'smem constant byte address 0x4 - core index']
  #allocation1 [shape = 'u32[144,128]{1,0:T(1,128)}', space=vmem, size = 0x12000, scoped, tag = 'internal scratch']
  %s0 = inlined_call_operand.vmem [shape: bf16[4,288,25], index: 0, kind: input, shape index: {}]
  %s1 = inlined_call_operand.vmem [shape: bf16[25,128], index: 1, kind: input, shape index: {}]
  %s2 = inlined_call_operand.vmem [shape: f32[1,128], index: 2, kind: input, shape index: {}]
  %s3 = inlined_call_operand.vmem [shape: bf16[288,128], index: 3, kind: output, shape index: {}]
  %s4 = sld [smem:[#allocation0]]
  $region86: #{net_forward.2} parent=0
    _
  %s6 = ssub.s32 1, %s4
  %s7 = scalar_select 0, %s6, %s4
  $region1: #{net_forward.2} parent=0
    #allocation2 [shape = 'u8[294912]{0}', space=vmem, size = 0x48000, scoped, tag = 'input window, operand 0']
    loop: start=0, step=1, limit=4
    $region2: #{net_forward.2} parent=1 // loop_pre_header
      _
    $region3: #{net_forward.2} parent=1 // loop_header
      %s9 = sphi 0, %s13
      %p10 = scmp.ge.s32.totalorder %s9, 4
      %s19 = sphi 0, %s21
      %s22 = sphi 0, %s19
      %s23 = sphi 0, %s22
      %s39 = sphi 0, %s23
      %s43 = sphi 0, %s43
      %s45 = sphi 0, %s43
      %s46 = sphi 0, %s45
      %s60 = sphi 0, %s46
      %s64 = sphi 0, %s64
      %s66 = sphi 0, %s64
      %s67 = sphi 0, %s66
      %s81 = sphi 0, %s67
      %s87 = sphi 0, %s89
      %s90 = sphi 0, %s87
      %s91 = sphi 0, %s90
      %s107 = sphi 0, %s91
    $region4: #{net_forward.2} parent=1 // loop_header_branch
      %12 = sbr.rel (%p10) target = $region8
    $region5: #{net_forward.2} parent=1 // loop_body
      %s14 = ssub.s32 %s9, 1
      %s15 = ssub.s32 %s9, 2
      %s16 = sadd.s32 %s9, 1
      %s17 = ssub.s32 %s9, %s16
      %p18 = scmp.eq.s32.totalorder %s17, 0
      %s20 = sadd.s32 %s19, 1
      %s21 = scalar_select %p18, %s19, %s20
      %p24 = pneg %p18
      %p25 = scmp.eq.s32.totalorder %s9, 1
      %p26 = por %p24, %p25
      %p27 = scmp.ne.s32.totalorder %s19, %s22
      %p28 = scmp.eq.s32.totalorder %s9, 0
      %p29 = por %p27, %p28
      %p30 = scmp.ne.s32.totalorder %s19, %s22
      %p31 = scmp.eq.s32.totalorder %s14, 1
      %p32 = por %p30, %p31
      %p33 = scmp.ne.s32.totalorder %s22, %s23
      %p34 = scmp.eq.s32.totalorder %s14, 0
      %p35 = por %p33, %p34
      %p36 = scmp.ne.s32.totalorder %s22, %s23
      %p37 = scmp.eq.s32.totalorder %s15, 1
      %p38 = por %p36, %p37
      %p40 = scmp.ne.s32.totalorder %s23, %s39
      %p41 = scmp.eq.s32.totalorder %s15, 0
      %p42 = por %p40, %p41
      %s44 = sadd.s32 %s43, 1
      %p47 = scmp.eq.s32.totalorder %s9, 1
      %p48 = scmp.ne.s32.totalorder %s43, %s45
      %p49 = scmp.eq.s32.totalorder %s9, 0
      %p50 = por %p48, %p49
      %p51 = scmp.ne.s32.totalorder %s43, %s45
      %p52 = scmp.eq.s32.totalorder %s14, 1
      %p53 = por %p51, %p52
      %p54 = scmp.ne.s32.totalorder %s45, %s46
      %p55 = scmp.eq.s32.totalorder %s14, 0
      %p56 = por %p54, %p55
      %p57 = scmp.ne.s32.totalorder %s45, %s46
      %p58 = scmp.eq.s32.totalorder %s15, 1
      %p59 = por %p57, %p58
      %p61 = scmp.ne.s32.totalorder %s46, %s60
      %p62 = scmp.eq.s32.totalorder %s15, 0
      %p63 = por %p61, %p62
      %s65 = sadd.s32 %s64, 1
      %p68 = scmp.eq.s32.totalorder %s9, 1
      %p69 = scmp.ne.s32.totalorder %s64, %s66
      %p70 = scmp.eq.s32.totalorder %s9, 0
      %p71 = por %p69, %p70
      %p72 = scmp.ne.s32.totalorder %s64, %s66
      %p73 = scmp.eq.s32.totalorder %s14, 1
      %p74 = por %p72, %p73
      %p75 = scmp.ne.s32.totalorder %s66, %s67
      %p76 = scmp.eq.s32.totalorder %s14, 0
      %p77 = por %p75, %p76
      %p78 = scmp.ne.s32.totalorder %s66, %s67
      %p79 = scmp.eq.s32.totalorder %s15, 1
      %p80 = por %p78, %p79
      %p82 = scmp.ne.s32.totalorder %s67, %s81
      %p83 = scmp.eq.s32.totalorder %s15, 0
      %p84 = por %p82, %p83
      %s85 = ssub.s32 %s9, %s16
      %p86 = scmp.eq.s32.totalorder %s85, 0
      %s88 = sadd.s32 %s87, 1
      %s89 = scalar_select %p86, %s87, %s88
      %p92 = pneg %p86
      %p93 = scmp.eq.s32.totalorder %s9, 1
      %p94 = por %p92, %p93
      %p95 = scmp.ne.s32.totalorder %s87, %s90
      %p96 = scmp.eq.s32.totalorder %s9, 0
      %p97 = por %p95, %p96
      %p98 = scmp.ne.s32.totalorder %s87, %s90
      %p99 = scmp.eq.s32.totalorder %s14, 1
      %p100 = por %p98, %p99
      %p101 = scmp.ne.s32.totalorder %s90, %s91
      %p102 = scmp.eq.s32.totalorder %s14, 0
      %p103 = por %p101, %p102
      %p104 = scmp.ne.s32.totalorder %s90, %s91
      %p105 = scmp.eq.s32.totalorder %s15, 1
      %p106 = por %p104, %p105
      %p108 = scmp.ne.s32.totalorder %s91, %s107
      %p109 = scmp.eq.s32.totalorder %s15, 0
      %p110 = por %p108, %p109
      %p111 = scmp.le.s32.totalorder 1, %s9
      %p112 = scmp.lt.s32.totalorder %s9, 3
      %p113 = pnand %p111, %p112
      %p114 = pneg %p113
      // Predicated region
      $region9: #{net_forward.2} parent=5 // pred_check
        _
      $region10: #{net_forward.2} parent=5 // pred_check_branch
        %116 = sbr.rel (%p113) target = $region12
      $region11: #{net_forward.2} parent=5 // pred_region
        %s117 = ssub.s32 %s9, 1
        // Predicated region
        $region13: #{net_forward.2} parent=11 // pred_check
          %p118 = pneg %p56
        $region14: #{net_forward.2} parent=11 // pred_check_branch
          %120 = sbr.rel (%p118) target = $region16
        $region15: #{net_forward.2} parent=11 // pred_region
          _
        $region16: #{net_forward.2} parent=11 // pred_fallthru
          _
        // Predicated region
        $region17: #{net_forward.2} parent=11 // pred_check
          %p121 = pneg %p77
        $region18: #{net_forward.2} parent=11 // pred_check_branch
          %123 = sbr.rel (%p121) target = $region20
        $region19: #{net_forward.2} parent=11 // pred_region
          _
        $region20: #{net_forward.2} parent=11 // pred_fallthru
          _
      $region12: #{net_forward.2} parent=5 // pred_fallthru
        _
      %p124 = scmp.lt.s32.totalorder %s9, 2
      // Predicated region
      $region21: #{net_forward.2} parent=5 // pred_check
        %p125 = pneg %p124
      $region22: #{net_forward.2} parent=5 // pred_check_branch
        %127 = sbr.rel (%p125) target = $region24
      $region23: #{net_forward.2} parent=5 // pred_region
        // Predicated region
        $region25: #{net_forward.2} parent=23 // pred_check
          %p128 = pneg %p29
        $region26: #{net_forward.2} parent=23 // pred_check_branch
          %130 = sbr.rel (%p128) target = $region28
        $region27: #{net_forward.2} parent=23 // pred_region
          %s131 = sand.u32 %s19, 1
          %s132 = sand.u32 %s19, 1
          %s133 = smul.addr %s132, 288
          %s134 = scalar_lea.vmem [#allocation2], %s133
          %s135 = smul.u32 18, %s9
          %s136 = smul.addr %s135, 4
          %s137 = scalar_lea.vmem %s0, %s136
          // Predicated region
          $region29: #{net_forward.2} parent=27 // pred_check
            _
          $region30: #{net_forward.2} parent=27 // pred_check_branch
            %139 = sbr.rel (0) target = $region32
          $region31: #{net_forward.2} parent=27 // pred_region
            // Predicated region
            $region33: #{net_forward.2} parent=31 // pred_check
              _
            $region34: #{net_forward.2} parent=31 // pred_check_branch
              %141 = sbr.rel target = $region36
            $region35: #{net_forward.2} parent=31 // pred_region
              // Predicated region
              $region48: #{net_forward.2} parent=35 // pred_check
                _
              $region49: #{net_forward.2} parent=35 // pred_check_branch
                %299 = sbr.rel (0) target = $region51
              $region50: #{net_forward.2} parent=35 // pred_region
                loop: start=0, step=1, limit=1
                $region52: #{net_forward.2} parent=50 // loop_pre_header
                  _
                $region53: #{net_forward.2} parent=50 // loop_header
                  %s301 = sphi 0, %s305
                  %p302 = scmp.ge.s32.totalorder %s301, 1
                  %s306 = sphi %s137, %s137
                  %s307 = sphi %s134, %s134
                $region54: #{net_forward.2} parent=50 // loop_header_branch
                  %304 = sbr.rel (%p302) target = $region58
                $region55: #{net_forward.2} parent=50 // loop_body
                  _
                $region56: #{net_forward.2} parent=50 // loop_footer
                  %s305 = sadd.s32 1, %s301
                $region57: #{net_forward.2} parent=50 // loop_footer_branch
                  %300 = sbr.rel target = $region53
                $region58: #{net_forward.2} parent=50 // loop_exit
                  _
                %s309 = ssub.s32 16, 1
                loop: start=0, step=1, limit=1
                $region59: #{net_forward.2} parent=50 // loop_pre_header
                  _
                $region60: #{net_forward.2} parent=50 // loop_header
                  %s311 = sphi 0, %s315
                  %p312 = scmp.ge.s32.totalorder %s311, 1
                  %s316 = sphi %s137, %s137
                  %s317 = sphi %s134, %s134
                $region61: #{net_forward.2} parent=50 // loop_header_branch
                  %314 = sbr.rel (%p312) target = $region65
                $region62: #{net_forward.2} parent=50 // loop_body
                  %v318 = vld [vmem:[%s316] sm:%s309]
                  %319 = vst [vmem:[%s317] sm:%s309] %v318
                  %v320 = vld [vmem:[%s316 + $0x4] sm:%s309]
                  %321 = vst [vmem:[%s317 + $0x4] sm:%s309] %v320
                  %v322 = vld [vmem:[%s316 + $0x8] sm:%s309]
                  %323 = vst [vmem:[%s317 + $0x8] sm:%s309] %v322
                  %v324 = vld [vmem:[%s316 + $0xc] sm:%s309]
                  %325 = vst [vmem:[%s317 + $0xc] sm:%s309] %v324
                  %v326 = vld [vmem:[%s316 + $0x10] sm:%s309]
                  %327 = vst [vmem:[%s317 + $0x10] sm:%s309] %v326
                  %v328 = vld [vmem:[%s316 + $0x14] sm:%s309]
                  %329 = vst [vmem:[%s317 + $0x14] sm:%s309] %v328
                  %v330 = vld [vmem:[%s316 + $0x18] sm:%s309]
                  %331 = vst [vmem:[%s317 + $0x18] sm:%s309] %v330
                  %v332 = vld [vmem:[%s316 + $0x1c] sm:%s309]
                  %333 = vst [vmem:[%s317 + $0x1c] sm:%s309] %v332
                  %v334 = vld [vmem:[%s316 + $0x20] sm:%s309]
                  %335 = vst [vmem:[%s317 + $0x20] sm:%s309] %v334
                  %v336 = vld [vmem:[%s316 + $0x24] sm:%s309]
                  %337 = vst [vmem:[%s317 + $0x24] sm:%s309] %v336
                  %v338 = vld [vmem:[%s316 + $0x28] sm:%s309]
                  %339 = vst [vmem:[%s317 + $0x28] sm:%s309] %v338
                  %v340 = vld [vmem:[%s316 + $0x2c] sm:%s309]
                  %341 = vst [vmem:[%s317 + $0x2c] sm:%s309] %v340
                  %v342 = vld [vmem:[%s316 + $0x30] sm:%s309]
                  %343 = vst [vmem:[%s317 + $0x30] sm:%s309] %v342
                  %v344 = vld [vmem:[%s316 + $0x34] sm:%s309]
                  %345 = vst [vmem:[%s317 + $0x34] sm:%s309] %v344
                  %v346 = vld [vmem:[%s316 + $0x38] sm:%s309]
                  %347 = vst [vmem:[%s317 + $0x38] sm:%s309] %v346
                  %v348 = vld [vmem:[%s316 + $0x3c] sm:%s309]
                  %349 = vst [vmem:[%s317 + $0x3c] sm:%s309] %v348
                  %v350 = vld [vmem:[%s316 + $0x40] sm:%s309]
                  %351 = vst [vmem:[%s317 + $0x40] sm:%s309] %v350
                  %v352 = vld [vmem:[%s316 + $0x44] sm:%s309]
                  %353 = vst [vmem:[%s317 + $0x44] sm:%s309] %v352
                  %v354 = vld [vmem:[%s316 + $0x90] sm:%s309]
                  %355 = vst [vmem:[%s317 + $0x48] sm:%s309] %v354
                  %v356 = vld [vmem:[%s316 + $0x94] sm:%s309]
                  %357 = vst [vmem:[%s317 + $0x4c] sm:%s309] %v356
                  %v358 = vld [vmem:[%s316 + $0x98] sm:%s309]
                  %359 = vst [vmem:[%s317 + $0x50] sm:%s309] %v358
                  %v360 = vld [vmem:[%s316 + $0x9c] sm:%s309]
                  %361 = vst [vmem:[%s317 + $0x54] sm:%s309] %v360
                  %v362 = vld [vmem:[%s316 + $0xa0] sm:%s309]
                  %363 = vst [vmem:[%s317 + $0x58] sm:%s309] %v362
                  %v364 = vld [vmem:[%s316 + $0xa4] sm:%s309]
                  %365 = vst [vmem:[%s317 + $0x5c] sm:%s309] %v364
                  %v366 = vld [vmem:[%s316 + $0xa8] sm:%s309]
                  %367 = vst [vmem:[%s317 + $0x60] sm:%s309] %v366
                  %v368 = vld [vmem:[%s316 + $0xac] sm:%s309]
                  %369 = vst [vmem:[%s317 + $0x64] sm:%s309] %v368
                  %v370 = vld [vmem:[%s316 + $0xb0] sm:%s309]
                  %371 = vst [vmem:[%s317 + $0x68] sm:%s309] %v370
                  %v372 = vld [vmem:[%s316 + $0xb4] sm:%s309]
                  %373 = vst [vmem:[%s317 + $0x6c] sm:%s309] %v372
                  %v374 = vld [vmem:[%s316 + $0xb8] sm:%s309]
                  %375 = vst [vmem:[%s317 + $0x70] sm:%s309] %v374
                  %v376 = vld [vmem:[%s316 + $0xbc] sm:%s309]
                  %377 = vst [vmem:[%s317 + $0x74] sm:%s309] %v376
                  %v378 = vld [vmem:[%s316 + $0xc0] sm:%s309]
                  %379 = vst [vmem:[%s317 + $0x78] sm:%s309] %v378
                  %v380 = vld [vmem:[%s316 + $0xc4] sm:%s309]
                  %381 = vst [vmem:[%s317 + $0x7c] sm:%s309] %v380
                  %v382 = vld [vmem:[%s316 + $0xc8] sm:%s309]
                  %383 = vst [vmem:[%s317 + $0x80] sm:%s309] %v382
                  %v384 = vld [vmem:[%s316 + $0xcc] sm:%s309]
                  %385 = vst [vmem:[%s317 + $0x84] sm:%s309] %v384
                  %v386 = vld [vmem:[%s316 + $0xd0] sm:%s309]
                  %387 = vst [vmem:[%s317 + $0x88] sm:%s309] %v386
                  %v388 = vld [vmem:[%s316 + $0xd4] sm:%s309]
                  %389 = vst [vmem:[%s317 + $0x8c] sm:%s309] %v388
                  %v390 = vld [vmem:[%s316 + $0x120] sm:%s309]
                  %391 = vst [vmem:[%s317 + $0x90] sm:%s309] %v390
                  %v392 = vld [vmem:[%s316 + $0x124] sm:%s309]
                  %393 = vst [vmem:[%s317 + $0x94] sm:%s309] %v392
                  %v394 = vld [vmem:[%s316 + $0x128] sm:%s309]
                  %395 = vst [vmem:[%s317 + $0x98] sm:%s309] %v394
                  %v396 = vld [vmem:[%s316 + $0x12c] sm:%s309]
                  %397 = vst [vmem:[%s317 + $0x9c] sm:%s309] %v396
                  %v398 = vld [vmem:[%s316 + $0x130] sm:%s309]
                  %399 = vst [vmem:[%s317 + $0xa0] sm:%s309] %v398
                  %v400 = vld [vmem:[%s316 + $0x134] sm:%s309]
                  %401 = vst [vmem:[%s317 + $0xa4] sm:%s309] %v400
                  %v402 = vld [vmem:[%s316 + $0x138] sm:%s309]
                  %403 = vst [vmem:[%s317 + $0xa8] sm:%s309] %v402
                  %v404 = vld [vmem:[%s316 + $0x13c] sm:%s309]
                  %405 = vst [vmem:[%s317 + $0xac] sm:%s309] %v404
                  %v406 = vld [vmem:[%s316 + $0x140] sm:%s309]
                  %407 = vst [vmem:[%s317 + $0xb0] sm:%s309] %v406
                  %v408 = vld [vmem:[%s316 + $0x144] sm:%s309]
                  %409 = vst [vmem:[%s317 + $0xb4] sm:%s309] %v408
                  %v410 = vld [vmem:[%s316 + $0x148] sm:%s309]
                  %411 = vst [vmem:[%s317 + $0xb8] sm:%s309] %v410
                  %v412 = vld [vmem:[%s316 + $0x14c] sm:%s309]
                  %413 = vst [vmem:[%s317 + $0xbc] sm:%s309] %v412
                  %v414 = vld [vmem:[%s316 + $0x150] sm:%s309]
                  %415 = vst [vmem:[%s317 + $0xc0] sm:%s309] %v414
                  %v416 = vld [vmem:[%s316 + $0x154] sm:%s309]
                  %417 = vst [vmem:[%s317 + $0xc4] sm:%s309] %v416
                  %v418 = vld [vmem:[%s316 + $0x158] sm:%s309]
                  %419 = vst [vmem:[%s317 + $0xc8] sm:%s309] %v418
                  %v420 = vld [vmem:[%s316 + $0x15c] sm:%s309]
                  %421 = vst [vmem:[%s317 + $0xcc] sm:%s309] %v420
                  %v422 = vld [vmem:[%s316 + $0x160] sm:%s309]
                  %423 = vst [vmem:[%s317 + $0xd0] sm:%s309] %v422
                  %v424 = vld [vmem:[%s316 + $0x164] sm:%s309]
                  %425 = vst [vmem:[%s317 + $0xd4] sm:%s309] %v424
                  %v426 = vld [vmem:[%s316 + $0x1b0] sm:%s309]
                  %427 = vst [vmem:[%s317 + $0xd8] sm:%s309] %v426
                  %v428 = vld [vmem:[%s316 + $0x1b4] sm:%s309]
                  %429 = vst [vmem:[%s317 + $0xdc] sm:%s309] %v428
                  %v430 = vld [vmem:[%s316 + $0x1b8] sm:%s309]
                  %431 = vst [vmem:[%s317 + $0xe0] sm:%s309] %v430
                  %v432 = vld [vmem:[%s316 + $0x1bc] sm:%s309]
                  %433 = vst [vmem:[%s317 + $0xe4] sm:%s309] %v432
                  %v434 = vld [vmem:[%s316 + $0x1c0] sm:%s309]
                  %435 = vst [vmem:[%s317 + $0xe8] sm:%s309] %v434
                  %v436 = vld [vmem:[%s316 + $0x1c4] sm:%s309]
                  %437 = vst [vmem:[%s317 + $0xec] sm:%s309] %v436
                  %v438 = vld [vmem:[%s316 + $0x1c8] sm:%s309]
                  %439 = vst [vmem:[%s317 + $0xf0] sm:%s309] %v438
                  %v440 = vld [vmem:[%s316 + $0x1cc] sm:%s309]
                  %441 = vst [vmem:[%s317 + $0xf4] sm:%s309] %v440
                  %v442 = vld [vmem:[%s316 + $0x1d0] sm:%s309]
                  %443 = vst [vmem:[%s317 + $0xf8] sm:%s309] %v442
                  %v444 = vld [vmem:[%s316 + $0x1d4] sm:%s309]
                  %445 = vst [vmem:[%s317 + $0xfc] sm:%s309] %v444
                  %v446 = vld [vmem:[%s316 + $0x1d8] sm:%s309]
                  %447 = vst [vmem:[%s317 + $0x100] sm:%s309] %v446
                  %v448 = vld [vmem:[%s316 + $0x1dc] sm:%s309]
                  %449 = vst [vmem:[%s317 + $0x104] sm:%s309] %v448
                  %v450 = vld [vmem:[%s316 + $0x1e0] sm:%s309]
                  %451 = vst [vmem:[%s317 + $0x108] sm:%s309] %v450
                  %v452 = vld [vmem:[%s316 + $0x1e4] sm:%s309]
                  %453 = vst [vmem:[%s317 + $0x10c] sm:%s309] %v452
                  %v454 = vld [vmem:[%s316 + $0x1e8] sm:%s309]
                  %455 = vst [vmem:[%s317 + $0x110] sm:%s309] %v454
                  %v456 = vld [vmem:[%s316 + $0x1ec] sm:%s309]
                  %457 = vst [vmem:[%s317 + $0x114] sm:%s309] %v456
                  %v458 = vld [vmem:[%s316 + $0x1f0] sm:%s309]
                  %459 = vst [vmem:[%s317 + $0x118] sm:%s309] %v458
                  %v460 = vld [vmem:[%s316 + $0x1f4] sm:%s309]
                  %461 = vst [vmem:[%s317 + $0x11c] sm:%s309] %v460
                $region63: #{net_forward.2} parent=50 // loop_footer
                  %s315 = sadd.s32 1, %s311
                $region64: #{net_forward.2} parent=50 // loop_footer_branch
                  %310 = sbr.rel target = $region60
                $region65: #{net_forward.2} parent=50 // loop_exit
                  _
              $region51: #{net_forward.2} parent=35 // pred_fallthru
                _
            $region36: #{net_forward.2} parent=31 // pred_fallthru
              _
            // Predicated region
            $region37: #{net_forward.2} parent=31 // pred_check
              _
            $region38: #{net_forward.2} parent=31 // pred_check_branch
              %143 = sbr.rel (0) target = $region40
            $region39: #{net_forward.2} parent=31 // pred_region
              %s145 = ssub.s32 16, 1
              loop: start=0, step=1, limit=1
              $region41: #{net_forward.2} parent=39 // loop_pre_header
                _
              $region42: #{net_forward.2} parent=39 // loop_header
                %s147 = sphi 0, %s151
                %p148 = scmp.ge.s32.totalorder %s147, 1
                %s152 = sphi %s137, %s137
                %s153 = sphi %s134, %s134
              $region43: #{net_forward.2} parent=39 // loop_header_branch
                %150 = sbr.rel (%p148) target = $region47
              $region44: #{net_forward.2} parent=39 // loop_body
                %v154 = vld [vmem:[%s152] sm:%s145]
                %155 = vst [vmem:[%s153] sm:%s145] %v154
                %v156 = vld [vmem:[%s152 + $0x4] sm:%s145]
                %157 = vst [vmem:[%s153 + $0x4] sm:%s145] %v156
                %v158 = vld [vmem:[%s152 + $0x8] sm:%s145]
                %159 = vst [vmem:[%s153 + $0x8] sm:%s145] %v158
                %v160 = vld [vmem:[%s152 + $0xc] sm:%s145]
                %161 = vst [vmem:[%s153 + $0xc] sm:%s145] %v160
                %v162 = vld [vmem:[%s152 + $0x10] sm:%s145]
                %163 = vst [vmem:[%s153 + $0x10] sm:%s145] %v162
                %v164 = vld [vmem:[%s152 + $0x14] sm:%s145]
                %165 = vst [vmem:[%s153 + $0x14] sm:%s145] %v164
                %v166 = vld [vmem:[%s152 + $0x18] sm:%s145]
                %167 = vst [vmem:[%s153 + $0x18] sm:%s145] %v166
                %v168 = vld [vmem:[%s152 + $0x1c] sm:%s145]
                %169 = vst [vmem:[%s153 + $0x1c] sm:%s145] %v168
                %v170 = vld [vmem:[%s152 + $0x20] sm:%s145]
                %171 = vst [vmem:[%s153 + $0x20] sm:%s145] %v170
                %v172 = vld [vmem:[%s152 + $0x24] sm:%s145]
                %173 = vst [vmem:[%s153 + $0x24] sm:%s145] %v172
                %v174 = vld [vmem:[%s152 + $0x28] sm:%s145]
                %175 = vst [vmem:[%s153 + $0x28] sm:%s145] %v174
                %v176 = vld [vmem:[%s152 + $0x2c] sm:%s145]
                %177 = vst [vmem:[%s153 + $0x2c] sm:%s145] %v176
                %v178 = vld [vmem:[%s152 + $0x30] sm:%s145]
                %179 = vst [vmem:[%s153 + $0x30] sm:%s145] %v178
                %v180 = vld [vmem:[%s152 + $0x34] sm:%s145]
                %181 = vst [vmem:[%s153 + $0x34] sm:%s145] %v180
                %v182 = vld [vmem:[%s152 + $0x38] sm:%s145]
                %183 = vst [vmem:[%s153 + $0x38] sm:%s145] %v182
                %v184 = vld [vmem:[%s152 + $0x3c] sm:%s145]
                %185 = vst [vmem:[%s153 + $0x3c] sm:%s145] %v184
                %v186 = vld [vmem:[%s152 + $0x40] sm:%s145]
                %187 = vst [vmem:[%s153 + $0x40] sm:%s145] %v186
                %v188 = vld [vmem:[%s152 + $0x44] sm:%s145]
                %189 = vst [vmem:[%s153 + $0x44] sm:%s145] %v188
                %v190 = vld [vmem:[%s152 + $0x90] sm:%s145]
                %191 = vst [vmem:[%s153 + $0x48] sm:%s145] %v190
                %v192 = vld [vmem:[%s152 + $0x94] sm:%s145]
                %193 = vst [vmem:[%s153 + $0x4c] sm:%s145] %v192
                %v194 = vld [vmem:[%s152 + $0x98] sm:%s145]
                %195 = vst [vmem:[%s153 + $0x50] sm:%s145] %v194
                %v196 = vld [vmem:[%s152 + $0x9c] sm:%s145]
                %197 = vst [vmem:[%s153 + $0x54] sm:%s145] %v196
                %v198 = vld [vmem:[%s152 + $0xa0] sm:%s145]
                %199 = vst [vmem:[%s153 + $0x58] sm:%s145] %v198
                %v200 = vld [vmem:[%s152 + $0xa4] sm:%s145]
                %201 = vst [vmem:[%s153 + $0x5c] sm:%s145] %v200
                %v202 = vld [vmem:[%s152 + $0xa8] sm:%s145]
                %203 = vst [vmem:[%s153 + $0x60] sm:%s145] %v202
                %v204 = vld [vmem:[%s152 + $0xac] sm:%s145]
                %205 = vst [vmem:[%s153 + $0x64] sm:%s145] %v204
                %v206 = vld [vmem:[%s152 + $0xb0] sm:%s145]
                %207 = vst [vmem:[%s153 + $0x68] sm:%s145] %v206
                %v208 = vld [vmem:[%s152 + $0xb4] sm:%s145]
                %209 = vst [vmem:[%s153 + $0x6c] sm:%s145] %v208
                %v210 = vld [vmem:[%s152 + $0xb8] sm:%s145]
                %211 = vst [vmem:[%s153 + $0x70] sm:%s145] %v210
                %v212 = vld [vmem:[%s152 + $0xbc] sm:%s145]
                %213 = vst [vmem:[%s153 + $0x74] sm:%s145] %v212
                %v214 = vld [vmem:[%s152 + $0xc0] sm:%s145]
                %215 = vst [vmem:[%s153 + $0x78] sm:%s145] %v214
                %v216 = vld [vmem:[%s152 + $0xc4] sm:%s145]
                %217 = vst [vmem:[%s153 + $0x7c] sm:%s145] %v216
                %v218 = vld [vmem:[%s152 + $0xc8] sm:%s145]
                %219 = vst [vmem:[%s153 + $0x80] sm:%s145] %v218
                %v220 = vld [vmem:[%s152 + $0xcc] sm:%s145]
                %221 = vst [vmem:[%s153 + $0x84] sm:%s145] %v220
                %v222 = vld [vmem:[%s152 + $0xd0] sm:%s145]
                %223 = vst [vmem:[%s153 + $0x88] sm:%s145] %v222
                %v224 = vld [vmem:[%s152 + $0xd4] sm:%s145]
                %225 = vst [vmem:[%s153 + $0x8c] sm:%s145] %v224
                %v226 = vld [vmem:[%s152 + $0x120] sm:%s145]
                %227 = vst [vmem:[%s153 + $0x90] sm:%s145] %v226
                %v228 = vld [vmem:[%s152 + $0x124] sm:%s145]
                %229 = vst [vmem:[%s153 + $0x94] sm:%s145] %v228
                %v230 = vld [vmem:[%s152 + $0x128] sm:%s145]
                %231 = vst [vmem:[%s153 + $0x98] sm:%s145] %v230
                %v232 = vld [vmem:[%s152 + $0x12c] sm:%s145]
                %233 = vst [vmem:[%s153 + $0x9c] sm:%s145] %v232
                %v234 = vld [vmem:[%s152 + $0x130] sm:%s145]
                %235 = vst [vmem:[%s153 + $0xa0] sm:%s145] %v234
                %v236 = vld [vmem:[%s152 + $0x134] sm:%s145]
                %237 = vst [vmem:[%s153 + $0xa4] sm:%s145] %v236
                %v238 = vld [vmem:[%s152 + $0x138] sm:%s145]
                %239 = vst [vmem:[%s153 + $0xa8] sm:%s145] %v238
                %v240 = vld [vmem:[%s152 + $0x13c] sm:%s145]
                %241 = vst [vmem:[%s153 + $0xac] sm:%s145] %v240
                %v242 = vld [vmem:[%s152 + $0x140] sm:%s145]
                %243 = vst [vmem:[%s153 + $0xb0] sm:%s145] %v242
                %v244 = vld [vmem:[%s152 + $0x144] sm:%s145]
                %245 = vst [vmem:[%s153 + $0xb4] sm:%s145] %v244
                %v246 = vld [vmem:[%s152 + $0x148] sm:%s145]
                %247 = vst [vmem:[%s153 + $0xb8] sm:%s145] %v246
                %v248 = vld [vmem:[%s152 + $0x14c] sm:%s145]
                %249 = vst [vmem:[%s153 + $0xbc] sm:%s145] %v248
                %v250 = vld [vmem:[%s152 + $0x150] sm:%s145]
                %251 = vst [vmem:[%s153 + $0xc0] sm:%s145] %v250
                %v252 = vld [vmem:[%s152 + $0x154] sm:%s145]
                %253 = vst [vmem:[%s153 + $0xc4] sm:%s145] %v252
                %v254 = vld [vmem:[%s152 + $0x158] sm:%s145]
                %255 = vst [vmem:[%s153 + $0xc8] sm:%s145] %v254
                %v256 = vld [vmem:[%s152 + $0x15c] sm:%s145]
                %257 = vst [vmem:[%s153 + $0xcc] sm:%s145] %v256
                %v258 = vld [vmem:[%s152 + $0x160] sm:%s145]
                %259 = vst [vmem:[%s153 + $0xd0] sm:%s145] %v258
                %v260 = vld [vmem:[%s152 + $0x164] sm:%s145]
                %261 = vst [vmem:[%s153 + $0xd4] sm:%s145] %v260
                %v262 = vld [vmem:[%s152 + $0x1b0] sm:%s145]
                %263 = vst [vmem:[%s153 + $0xd8] sm:%s145] %v262
                %v264 = vld [vmem:[%s152 + $0x1b4] sm:%s145]
                %265 = vst [vmem:[%s153 + $0xdc] sm:%s145] %v264
                %v266 = vld [vmem:[%s152 + $0x1b8] sm:%s145]
                %267 = vst [vmem:[%s153 + $0xe0] sm:%s145] %v266
                %v268 = vld [vmem:[%s152 + $0x1bc] sm:%s145]
                %269 = vst [vmem:[%s153 + $0xe4] sm:%s145] %v268
                %v270 = vld [vmem:[%s152 + $0x1c0] sm:%s145]
                %271 = vst [vmem:[%s153 + $0xe8] sm:%s145] %v270
                %v272 = vld [vmem:[%s152 + $0x1c4] sm:%s145]
                %273 = vst [vmem:[%s153 + $0xec] sm:%s145] %v272
                %v274 = vld [vmem:[%s152 + $0x1c8] sm:%s145]
                %275 = vst [vmem:[%s153 + $0xf0] sm:%s145] %v274
                %v276 = vld [vmem:[%s152 + $0x1cc] sm:%s145]
                %277 = vst [vmem:[%s153 + $0xf4] sm:%s145] %v276
                %v278 = vld [vmem:[%s152 + $0x1d0] sm:%s145]
                %279 = vst [vmem:[%s153 + $0xf8] sm:%s145] %v278
                %v280 = vld [vmem:[%s152 + $0x1d4] sm:%s145]
                %281 = vst [vmem:[%s153 + $0xfc] sm:%s145] %v280
                %v282 = vld [vmem:[%s152 + $0x1d8] sm:%s145]
                %283 = vst [vmem:[%s153 + $0x100] sm:%s145] %v282
                %v284 = vld [vmem:[%s152 + $0x1dc] sm:%s145]
                %285 = vst [vmem:[%s153 + $0x104] sm:%s145] %v284
                %v286 = vld [vmem:[%s152 + $0x1e0] sm:%s145]
                %287 = vst [vmem:[%s153 + $0x108] sm:%s145] %v286
                %v288 = vld [vmem:[%s152 + $0x1e4] sm:%s145]
                %289 = vst [vmem:[%s153 + $0x10c] sm:%s145] %v288
                %v290 = vld [vmem:[%s152 + $0x1e8] sm:%s145]
                %291 = vst [vmem:[%s153 + $0x110] sm:%s145] %v290
                %v292 = vld [vmem:[%s152 + $0x1ec] sm:%s145]
                %293 = vst [vmem:[%s153 + $0x114] sm:%s145] %v292
                %v294 = vld [vmem:[%s152 + $0x1f0] sm:%s145]
                %295 = vst [vmem:[%s153 + $0x118] sm:%s145] %v294
                %v296 = vld [vmem:[%s152 + $0x1f4] sm:%s145]
                %297 = vst [vmem:[%s153 + $0x11c] sm:%s145] %v296
              $region45: #{net_forward.2} parent=39 // loop_footer
                %s151 = sadd.s32 1, %s147
              $region46: #{net_forward.2} parent=39 // loop_footer_branch
                %146 = sbr.rel target = $region42
              $region47: #{net_forward.2} parent=39 // loop_exit
                _
            $region40: #{net_forward.2} parent=31 // pred_fallthru
              _
          $region32: #{net_forward.2} parent=27 // pred_fallthru
            _
          %462 = vnop
        $region28: #{net_forward.2} parent=23 // pred_fallthru
          _
      $region24: #{net_forward.2} parent=5 // pred_fallthru
        _
      %p463 = scmp.le.s32.totalorder 1, %s9
      %p464 = scmp.lt.s32.totalorder %s9, 3
      %p465 = pnand %p463, %p464
      %p466 = pneg %p465
      // Predicated region
      $region66: #{net_forward.2} parent=5 // pred_check
        _
      $region67: #{net_forward.2} parent=5 // pred_check_branch
        %468 = sbr.rel (%p465) target = $region69
      $region68: #{net_forward.2} parent=5 // pred_region
        %s469 = ssub.s32 %s9, 1
        %s470 = sand.u32 %s22, 1
        %s471 = sand.u32 %s22, 1
        %s472 = smul.addr %s471, 288
        %s473 = scalar_lea.vmem [#allocation2], %s472
        // Predicated region
        $region70: #{net_forward.2} parent=68 // pred_check
          %p474 = pneg %p35
        $region71: #{net_forward.2} parent=68 // pred_check_branch
          %476 = sbr.rel (%p474) target = $region73
        $region72: #{net_forward.2} parent=68 // pred_region
          _
        $region73: #{net_forward.2} parent=68 // pred_fallthru
          _
        %s477 = sand.u32 %s22, 1
        %s478 = sand.u32 %s22, 1
        %s479 = smul.addr %s478, 288
        %s480 = scalar_lea.vmem [#allocation2], %s479
        %p481 = pneg %p35
        %p482 = pneg %p32
        %p483 = pneg %p56
        %p484 = pneg %p53
        %p485 = pneg %p77
        %p486 = pneg %p74
        %p487 = pneg %p103
        %p488 = pneg %p100
        %s489 = smul.u32 18, %s14
        %p490 = scmp.lt.s32.totalorder %s489, 35
        %s491 = scalar_select %p490, %s489, 35
        %s492 = smul.addr %s491, 4
        %s493 = scalar_lea.vmem %s3, %s492
        %s494 = smul.u32 18, %s14
        %s495 = smul.u32 18, %s14
        %p496 = scmp.lt.s32.totalorder %s495, 35
        %s497 = scalar_select %p496, %s495, 35
        %s498 = smul.addr %s497, 4
        %s499 = scalar_lea.vmem %s3, %s498
        %s500 = smul.u32 18, %s14
        %v502 = vld [vmem:[%s473] sm:$0xf]
        %v503 = vld [vmem:[%s473 + $0x4] sm:$0xf]
        %v504 = vld [vmem:[%s473 + $0x8] sm:$0xf]
        %v505 = vld [vmem:[%s473 + $0xc] sm:$0xf]
        %v506 = vld [vmem:[%s473 + $0x10] sm:$0xf]
        %v507 = vld [vmem:[%s473 + $0x14] sm:$0xf]
        %v508 = vld [vmem:[%s473 + $0x18] sm:$0xf]
        %v509 = vld [vmem:[%s473 + $0x1c] sm:$0xf]
        %v510 = vld [vmem:[%s473 + $0x20] sm:$0xf]
        %v511 = vld [vmem:[%s473 + $0x24] sm:$0xf]
        %v512 = vld [vmem:[%s473 + $0x28] sm:$0xf]
        %v513 = vld [vmem:[%s473 + $0x2c] sm:$0xf]
        %v514 = vld [vmem:[%s473 + $0x30] sm:$0xf]
        %v515 = vld [vmem:[%s473 + $0x34] sm:$0xf]
        %v516 = vld [vmem:[%s473 + $0x38] sm:$0xf]
        %v517 = vld [vmem:[%s473 + $0x3c] sm:$0xf]
        %v518 = vld [vmem:[%s473 + $0x40] sm:$0xf]
        %v519 = vld [vmem:[%s473 + $0x44] sm:$0xf]
        %v520 = vld [vmem:[%s473 + $0x48] sm:$0xf]
        %v521 = vld [vmem:[%s473 + $0x4c] sm:$0xf]
        %v522 = vld [vmem:[%s473 + $0x50] sm:$0xf]
        %v523 = vld [vmem:[%s473 + $0x54] sm:$0xf]
        %v524 = vld [vmem:[%s473 + $0x58] sm:$0xf]
        %v525 = vld [vmem:[%s473 + $0x5c] sm:$0xf]
        %v526 = vld [vmem:[%s473 + $0x60] sm:$0xf]
        %v527 = vld [vmem:[%s473 + $0x64] sm:$0xf]
        %v528 = vld [vmem:[%s473 + $0x68] sm:$0xf]
        %v529 = vld [vmem:[%s473 + $0x6c] sm:$0xf]
        %v530 = vld [vmem:[%s473 + $0x70] sm:$0xf]
        %v531 = vld [vmem:[%s473 + $0x74] sm:$0xf]
        %v532 = vld [vmem:[%s473 + $0x78] sm:$0xf]
        %v533 = vld [vmem:[%s473 + $0x7c] sm:$0xf]
        %v534 = vld [vmem:[%s473 + $0x80] sm:$0xf]
        %v535 = vld [vmem:[%s473 + $0x84] sm:$0xf]
        %v536 = vld [vmem:[%s473 + $0x88] sm:$0xf]
        %v537 = vld [vmem:[%s473 + $0x8c] sm:$0xf]
        %v538 = vld [vmem:[%s473 + $0x90] sm:$0xf]
        %v539 = vld [vmem:[%s473 + $0x94] sm:$0xf]
        %v540 = vld [vmem:[%s473 + $0x98] sm:$0xf]
        %v541 = vld [vmem:[%s473 + $0x9c] sm:$0xf]
        %v542 = vld [vmem:[%s473 + $0xa0] sm:$0xf]
        %v543 = vld [vmem:[%s473 + $0xa4] sm:$0xf]
        %v544 = vld [vmem:[%s473 + $0xa8] sm:$0xf]
        %v545 = vld [vmem:[%s473 + $0xac] sm:$0xf]
        %v546 = vld [vmem:[%s473 + $0xb0] sm:$0xf]
        %v547 = vld [vmem:[%s473 + $0xb4] sm:$0xf]
        %v548 = vld [vmem:[%s473 + $0xb8] sm:$0xf]
        %v549 = vld [vmem:[%s473 + $0xbc] sm:$0xf]
        %v550 = vld [vmem:[%s473 + $0xc0] sm:$0xf]
        %v551 = vld [vmem:[%s473 + $0xc4] sm:$0xf]
        %v552 = vld [vmem:[%s473 + $0xc8] sm:$0xf]
        %v553 = vld [vmem:[%s473 + $0xcc] sm:$0xf]
        %v554 = vld [vmem:[%s473 + $0xd0] sm:$0xf]
        %v555 = vld [vmem:[%s473 + $0xd4] sm:$0xf]
        %v556 = vld [vmem:[%s473 + $0xd8] sm:$0xf]
        %v557 = vld [vmem:[%s473 + $0xdc] sm:$0xf]
        %v558 = vld [vmem:[%s473 + $0xe0] sm:$0xf]
        %v559 = vld [vmem:[%s473 + $0xe4] sm:$0xf]
        %v560 = vld [vmem:[%s473 + $0xe8] sm:$0xf]
        %v561 = vld [vmem:[%s473 + $0xec] sm:$0xf]
        %v562 = vld [vmem:[%s473 + $0xf0] sm:$0xf]
        %v563 = vld [vmem:[%s473 + $0xf4] sm:$0xf]
        %v564 = vld [vmem:[%s473 + $0xf8] sm:$0xf]
        %v565 = vld [vmem:[%s473 + $0xfc] sm:$0xf]
        %v566 = vld [vmem:[%s473 + $0x100] sm:$0xf]
        %v567 = vld [vmem:[%s473 + $0x104] sm:$0xf]
        %v568 = vld [vmem:[%s473 + $0x108] sm:$0xf]
        %v569 = vld [vmem:[%s473 + $0x10c] sm:$0xf]
        %v570 = vld [vmem:[%s473 + $0x110] sm:$0xf]
        %v571 = vld [vmem:[%s473 + $0x114] sm:$0xf]
        %v572 = vld [vmem:[%s473 + $0x118] sm:$0xf]
        %v573 = vld [vmem:[%s473 + $0x11c] sm:$0xf]
        %v574 = vld [vmem:[%s1] sm:$0xf]
        %v575 = vld [vmem:[%s1 + $0x4] sm:$0xf]
        %v576 = vld [vmem:[%s1 + $0x8] sm:$0xf]
        %v577 = vld [vmem:[%s1 + $0xc] sm:$0x1]
        %v650 = vunpack.c.l.b16 %v502
        %v651 = vunpack.c.l.b16 %v503
        %v652 = vunpack.c.l.b16 %v504
        %v653 = vunpack.c.l.b16 %v505
        %v654 = vunpack.c.l.b16 %v506
        %v655 = vunpack.c.l.b16 %v507
        %v656 = vunpack.c.l.b16 %v508
        %v657 = vunpack.c.l.b16 %v509
        %v658 = vunpack.c.l.b16 %v510
        %v659 = vunpack.c.l.b16 %v511
        %v660 = vunpack.c.l.b16 %v512
        %v661 = vunpack.c.l.b16 %v513
        %v662 = vunpack.c.l.b16 %v514
        %v663 = vunpack.c.l.b16 %v515
        %v664 = vunpack.c.l.b16 %v516
        %v665 = vunpack.c.l.b16 %v517
        %v666 = vunpack.c.l.b16 %v518
        %v667 = vunpack.c.l.b16 %v519
        %v668 = vunpack.c.l.b16 %v520
        %v669 = vunpack.c.l.b16 %v521
        %v670 = vunpack.c.l.b16 %v522
        %v671 = vunpack.c.l.b16 %v523
        %v672 = vunpack.c.l.b16 %v524
        %v673 = vunpack.c.l.b16 %v525
        %v674 = vunpack.c.l.b16 %v526
        %v675 = vunpack.c.l.b16 %v527
        %v676 = vunpack.c.l.b16 %v528
        %v677 = vunpack.c.l.b16 %v529
        %v678 = vunpack.c.l.b16 %v530
        %v679 = vunpack.c.l.b16 %v531
        %v680 = vunpack.c.l.b16 %v532
        %v681 = vunpack.c.l.b16 %v533
        %v682 = vunpack.c.l.b16 %v534
        %v683 = vunpack.c.l.b16 %v535
        %v684 = vunpack.c.l.b16 %v536
        %v685 = vunpack.c.l.b16 %v537
        %v686 = vunpack.c.l.b16 %v538
        %v687 = vunpack.c.l.b16 %v539
        %v688 = vunpack.c.l.b16 %v540
        %v689 = vunpack.c.l.b16 %v541
        %v690 = vunpack.c.l.b16 %v542
        %v691 = vunpack.c.l.b16 %v543
        %v692 = vunpack.c.l.b16 %v544
        %v693 = vunpack.c.l.b16 %v545
        %v694 = vunpack.c.l.b16 %v546
        %v695 = vunpack.c.l.b16 %v547
        %v696 = vunpack.c.l.b16 %v548
        %v697 = vunpack.c.l.b16 %v549
        %v698 = vunpack.c.l.b16 %v550
        %v699 = vunpack.c.l.b16 %v551
        %v700 = vunpack.c.l.b16 %v552
        %v701 = vunpack.c.l.b16 %v553
        %v702 = vunpack.c.l.b16 %v554
        %v703 = vunpack.c.l.b16 %v555
        %v704 = vunpack.c.l.b16 %v556
        %v705 = vunpack.c.l.b16 %v557
        %v706 = vunpack.c.l.b16 %v558
        %v707 = vunpack.c.l.b16 %v559
        %v708 = vunpack.c.l.b16 %v560
        %v709 = vunpack.c.l.b16 %v561
        %v710 = vunpack.c.l.b16 %v562
        %v711 = vunpack.c.l.b16 %v563
        %v712 = vunpack.c.l.b16 %v564
        %v713 = vunpack.c.l.b16 %v565
        %v714 = vunpack.c.l.b16 %v566
        %v715 = vunpack.c.l.b16 %v567
        %v716 = vunpack.c.l.b16 %v568
        %v717 = vunpack.c.l.b16 %v569
        %v718 = vunpack.c.l.b16 %v570
        %v719 = vunpack.c.l.b16 %v571
        %v720 = vunpack.c.l.b16 %v572
        %v721 = vunpack.c.l.b16 %v573
        %v722 = vpack.c.b16 %v651, %v650
        %v723 = vpack.c.b16 %v653, %v652
        %v724 = vpack.c.b16 %v655, %v654
        %v725 = vpack.c.b16 %v657, %v656
        %v726 = vpack.c.b16 %v659, %v658
        %v727 = vpack.c.b16 %v661, %v660
        %v728 = vpack.c.b16 %v663, %v662
        %v729 = vpack.c.b16 %v665, %v664
        %v730 = vpack.c.b16 %v667, %v666
        %v731 = vpack.c.b16 %v669, %v668
        %v732 = vpack.c.b16 %v671, %v670
        %v733 = vpack.c.b16 %v673, %v672
        %v734 = vpack.c.b16 %v675, %v674
        %v735 = vpack.c.b16 %v677, %v676
        %v736 = vpack.c.b16 %v679, %v678
        %v737 = vpack.c.b16 %v681, %v680
        %v738 = vpack.c.b16 %v683, %v682
        %v739 = vpack.c.b16 %v685, %v684
        %v740 = vpack.c.b16 %v687, %v686
        %v741 = vpack.c.b16 %v689, %v688
        %v742 = vpack.c.b16 %v691, %v690
        %v743 = vpack.c.b16 %v693, %v692
        %v744 = vpack.c.b16 %v695, %v694
        %v745 = vpack.c.b16 %v697, %v696
        %v746 = vpack.c.b16 %v699, %v698
        %v747 = vpack.c.b16 %v701, %v700
        %v748 = vpack.c.b16 %v703, %v702
        %v749 = vpack.c.b16 %v705, %v704
        %v750 = vpack.c.b16 %v707, %v706
        %v751 = vpack.c.b16 %v709, %v708
        %v752 = vpack.c.b16 %v711, %v710
        %v753 = vpack.c.b16 %v713, %v712
        %v754 = vpack.c.b16 %v715, %v714
        %v755 = vpack.c.b16 %v717, %v716
        %v756 = vpack.c.b16 %v719, %v718
        %v757 = vpack.c.b16 %v721, %v720
        %v762 = vunpack.c.l.b16 %v574
        %v763 = vunpack.c.l.b16 %v575
        %v764 = vunpack.c.l.b16 %v576
        %v765 = vunpack.c.l.b16 %v577
        %v766 = vpack.c.b16 %v763, %v762
        %v767 = vpack.c.b16 %v765, %v764
        %vm769 = vcmask 203776
        %v771 = vsel %vm769, %v722, 0
        %v774 = vsel %vm769, %v723, 0
        %v777 = vsel %vm769, %v724, 0
        %v780 = vsel %vm769, %v725, 0
        %v783 = vsel %vm769, %v726, 0
        %v786 = vsel %vm769, %v727, 0
        %v789 = vsel %vm769, %v728, 0
        %v792 = vsel %vm769, %v729, 0
        %v795 = vsel %vm769, %v730, 0
        %v798 = vsel %vm769, %v731, 0
        %v801 = vsel %vm769, %v732, 0
        %v804 = vsel %vm769, %v733, 0
        %v807 = vsel %vm769, %v734, 0
        %v810 = vsel %vm769, %v735, 0
        %v813 = vsel %vm769, %v736, 0
        %v816 = vsel %vm769, %v737, 0
        %v819 = vsel %vm769, %v738, 0
        %v822 = vsel %vm769, %v739, 0
        %v825 = vsel %vm769, %v740, 0
        %v828 = vsel %vm769, %v741, 0
        %v831 = vsel %vm769, %v742, 0
        %v834 = vsel %vm769, %v743, 0
        %v837 = vsel %vm769, %v744, 0
        %v840 = vsel %vm769, %v745, 0
        %v843 = vsel %vm769, %v746, 0
        %v846 = vsel %vm769, %v747, 0
        %v849 = vsel %vm769, %v748, 0
        %v852 = vsel %vm769, %v749, 0
        %v855 = vsel %vm769, %v750, 0
        %v858 = vsel %vm769, %v751, 0
        %v861 = vsel %vm769, %v752, 0
        %v864 = vsel %vm769, %v753, 0
        %v867 = vsel %vm769, %v754, 0
        %v870 = vsel %vm769, %v755, 0
        %v873 = vsel %vm769, %v756, 0
        %v876 = vsel %vm769, %v757, 0
        %vm878 = vcmask 1043456
        %vm879 = vcmask 1044480
        %v880 = vsel %vm878, 4294967295, 65535
        %v881 = vsel %vm879, %v880, 0
        %v883 = vand.u32 %v767, %v881
        %885 = vmatprep.subr.bf16.mxu0 0
        %886 = vmatpush1.bf16.msra.mxu0 0
        %887 = vmatprep.subr.bf16.mxu0 0
        %888 = vmatpush1.bf16.msra.mxu0 0
        %889 = vmatprep.subr.bf16.mxu0 0
        %890 = vmatpush1.bf16.msra.mxu0 0
        %891 = vmatprep.subr.bf16.mxu0 0
        %892 = vmatpush1.bf16.msra.mxu0 0
        %893 = vmatprep.subr.bf16.mxu0 0
        %894 = vmatpush1.bf16.msra.mxu0 0
        %895 = vmatprep.subr.bf16.mxu0 0
        %896 = vmatpush1.bf16.msra.mxu0 0
        %897 = vmatprep.subr.bf16.mxu0 0
        %898 = vmatpush1.bf16.msra.mxu0 %v883
        %899 = vmatprep.subr.bf16.mxu0 0
        %900 = vmatpush1.bf16.msra.mxu0 %v766
        %901 = vmatprep.subr.bf16.mxu0 0
        %902 = vmatpush2.bf16.msra.mxu0 0
        %903 = vmatprep.subr.bf16.mxu0 0
        %904 = vmatpush2.bf16.msra.mxu0 0
        %905 = vmatprep.subr.bf16.mxu0 0
        %906 = vmatpush2.bf16.msra.mxu0 0
        %907 = vmatprep.subr.bf16.mxu0 0
        %908 = vmatpush2.bf16.msra.mxu0 0
        %909 = vmatprep.subr.bf16.mxu0 0
        %910 = vmatpush2.bf16.msra.mxu0 0
        %911 = vmatprep.subr.bf16.mxu0 0
        %912 = vmatpush2.bf16.msra.mxu0 0
        %913 = vmatprep.subr.bf16.mxu0 0
        %914 = vmatpush2.bf16.msra.mxu0 0
        %915 = vmatprep.subr.bf16.mxu0 0
        %916 = vmatpush2.bf16.msra.mxu0 0
        %917 = vmatprep.mubr.bf16.mxu0 0
        %918 = vmatmul.mubr.bf16.gmra.mxu0 %v771
        %v919 = vpop.f32.mrf.mxu0
        %v920 = vadd.f32 0.0, %v919
        %v921 = vpop.f32.mrf.mxu0
        %v922 = vpop.f32.mrf.mxu0
        %v923 = vadd.f32 0.0, %v922
        %v924 = vpop.f32.mrf.mxu0
        %925 = vmatprep.mubr.bf16.mxu0 0
        %926 = vmatmul.mubr.bf16.gmra.mxu0 %v774
        %v927 = vpop.f32.mrf.mxu0
        %v928 = vadd.f32 0.0, %v927
        %v929 = vpop.f32.mrf.mxu0
        %v930 = vpop.f32.mrf.mxu0
        %v931 = vadd.f32 0.0, %v930
        %v932 = vpop.f32.mrf.mxu0
        %933 = vmatprep.mubr.bf16.mxu0 0
        %934 = vmatmul.mubr.bf16.gmra.mxu0 %v777
        %v935 = vpop.f32.mrf.mxu0
        %v936 = vadd.f32 0.0, %v935
        %v937 = vpop.f32.mrf.mxu0
        %v938 = vpop.f32.mrf.mxu0
        %v939 = vadd.f32 0.0, %v938
        %v940 = vpop.f32.mrf.mxu0
        %941 = vmatprep.mubr.bf16.mxu0 0
        %942 = vmatmul.mubr.bf16.gmra.mxu0 %v780
        %v943 = vpop.f32.mrf.mxu0
        %v944 = vadd.f32 0.0, %v943
        %v945 = vpop.f32.mrf.mxu0
        %v946 = vpop.f32.mrf.mxu0
        %v947 = vadd.f32 0.0, %v946
        %v948 = vpop.f32.mrf.mxu0
        %949 = vmatprep.mubr.bf16.mxu0 0
        %950 = vmatmul.mubr.bf16.gmra.mxu0 %v783
        %v951 = vpop.f32.mrf.mxu0
        %v952 = vadd.f32 0.0, %v951
        %v953 = vpop.f32.mrf.mxu0
        %v954 = vpop.f32.mrf.mxu0
        %v955 = vadd.f32 0.0, %v954
        %v956 = vpop.f32.mrf.mxu0
        %957 = vmatprep.mubr.bf16.mxu0 0
        %958 = vmatmul.mubr.bf16.gmra.mxu0 %v786
        %v959 = vpop.f32.mrf.mxu0
        %v960 = vadd.f32 0.0, %v959
        %v961 = vpop.f32.mrf.mxu0
        %v962 = vpop.f32.mrf.mxu0
        %v963 = vadd.f32 0.0, %v962
        %v964 = vpop.f32.mrf.mxu0
        %965 = vmatprep.mubr.bf16.mxu0 0
        %966 = vmatmul.mubr.bf16.gmra.mxu0 %v789
        %v967 = vpop.f32.mrf.mxu0
        %v968 = vadd.f32 0.0, %v967
        %v969 = vpop.f32.mrf.mxu0
        %v970 = vpop.f32.mrf.mxu0
        %v971 = vadd.f32 0.0, %v970
        %v972 = vpop.f32.mrf.mxu0
        %973 = vmatprep.mubr.bf16.mxu0 0
        %974 = vmatmul.mubr.bf16.gmra.mxu0 %v792
        %v975 = vpop.f32.mrf.mxu0
        %v976 = vadd.f32 0.0, %v975
        %v977 = vpop.f32.mrf.mxu0
        %v978 = vpop.f32.mrf.mxu0
        %v979 = vadd.f32 0.0, %v978
        %v980 = vpop.f32.mrf.mxu0
        %981 = vmatprep.mubr.bf16.mxu0 0
        %982 = vmatmul.mubr.bf16.gmra.mxu0 %v795
        %v983 = vpop.f32.mrf.mxu0
        %v984 = vadd.f32 0.0, %v983
        %v985 = vpop.f32.mrf.mxu0
        %v986 = vpop.f32.mrf.mxu0
        %v987 = vadd.f32 0.0, %v986
        %v988 = vpop.f32.mrf.mxu0
        %989 = vmatprep.mubr.bf16.mxu0 0
        %990 = vmatmul.mubr.bf16.gmra.mxu0 %v798
        %v991 = vpop.f32.mrf.mxu0
        %v992 = vadd.f32 0.0, %v991
        %v993 = vpop.f32.mrf.mxu0
        %v994 = vpop.f32.mrf.mxu0
        %v995 = vadd.f32 0.0, %v994
        %v996 = vpop.f32.mrf.mxu0
        %997 = vmatprep.mubr.bf16.mxu0 0
        %998 = vmatmul.mubr.bf16.gmra.mxu0 %v801
        %v999 = vpop.f32.mrf.mxu0
        %v1000 = vadd.f32 0.0, %v999
        %v1001 = vpop.f32.mrf.mxu0
        %v1002 = vpop.f32.mrf.mxu0
        %v1003 = vadd.f32 0.0, %v1002
        %v1004 = vpop.f32.mrf.mxu0
        %1005 = vmatprep.mubr.bf16.mxu0 0
        %1006 = vmatmul.mubr.bf16.gmra.mxu0 %v804
        %v1007 = vpop.f32.mrf.mxu0
        %v1008 = vadd.f32 0.0, %v1007
        %v1009 = vpop.f32.mrf.mxu0
        %v1010 = vpop.f32.mrf.mxu0
        %v1011 = vadd.f32 0.0, %v1010
        %v1012 = vpop.f32.mrf.mxu0
        %1013 = vmatprep.mubr.bf16.mxu0 0
        %1014 = vmatmul.mubr.bf16.gmra.mxu0 %v807
        %v1015 = vpop.f32.mrf.mxu0
        %v1016 = vadd.f32 0.0, %v1015
        %v1017 = vpop.f32.mrf.mxu0
        %v1018 = vpop.f32.mrf.mxu0
        %v1019 = vadd.f32 0.0, %v1018
        %v1020 = vpop.f32.mrf.mxu0
        %1021 = vmatprep.mubr.bf16.mxu0 0
        %1022 = vmatmul.mubr.bf16.gmra.mxu0 %v810
        %v1023 = vpop.f32.mrf.mxu0
        %v1024 = vadd.f32 0.0, %v1023
        %v1025 = vpop.f32.mrf.mxu0
        %v1026 = vpop.f32.mrf.mxu0
        %v1027 = vadd.f32 0.0, %v1026
        %v1028 = vpop.f32.mrf.mxu0
        %1029 = vmatprep.mubr.bf16.mxu0 0
        %1030 = vmatmul.mubr.bf16.gmra.mxu0 %v813
        %v1031 = vpop.f32.mrf.mxu0
        %v1032 = vadd.f32 0.0, %v1031
        %v1033 = vpop.f32.mrf.mxu0
        %v1034 = vpop.f32.mrf.mxu0
        %v1035 = vadd.f32 0.0, %v1034
        %v1036 = vpop.f32.mrf.mxu0
        %1037 = vmatprep.mubr.bf16.mxu0 0
        %1038 = vmatmul.mubr.bf16.gmra.mxu0 %v816
        %v1039 = vpop.f32.mrf.mxu0
        %v1040 = vadd.f32 0.0, %v1039
        %v1041 = vpop.f32.mrf.mxu0
        %v1042 = vpop.f32.mrf.mxu0
        %v1043 = vadd.f32 0.0, %v1042
        %v1044 = vpop.f32.mrf.mxu0
        %1045 = vmatprep.mubr.bf16.mxu0 0
        %1046 = vmatmul.mubr.bf16.gmra.mxu0 %v819
        %v1047 = vpop.f32.mrf.mxu0
        %v1048 = vadd.f32 0.0, %v1047
        %v1049 = vpop.f32.mrf.mxu0
        %v1050 = vpop.f32.mrf.mxu0
        %v1051 = vadd.f32 0.0, %v1050
        %v1052 = vpop.f32.mrf.mxu0
        %1053 = vmatprep.mubr.bf16.mxu0 0
        %1054 = vmatmul.mubr.bf16.gmra.mxu0 %v822
        %v1055 = vpop.f32.mrf.mxu0
        %v1056 = vadd.f32 0.0, %v1055
        %v1057 = vpop.f32.mrf.mxu0
        %v1058 = vpop.f32.mrf.mxu0
        %v1059 = vadd.f32 0.0, %v1058
        %v1060 = vpop.f32.mrf.mxu0
        %1061 = vmatprep.mubr.bf16.mxu0 0
        %1062 = vmatmul.mubr.bf16.gmra.mxu0 %v825
        %v1063 = vpop.f32.mrf.mxu0
        %v1064 = vadd.f32 0.0, %v1063
        %v1065 = vpop.f32.mrf.mxu0
        %v1066 = vpop.f32.mrf.mxu0
        %v1067 = vadd.f32 0.0, %v1066
        %v1068 = vpop.f32.mrf.mxu0
        %1069 = vmatprep.mubr.bf16.mxu0 0
        %1070 = vmatmul.mubr.bf16.gmra.mxu0 %v828
        %v1071 = vpop.f32.mrf.mxu0
        %v1072 = vadd.f32 0.0, %v1071
        %v1073 = vpop.f32.mrf.mxu0
        %v1074 = vpop.f32.mrf.mxu0
        %v1075 = vadd.f32 0.0, %v1074
        %v1076 = vpop.f32.mrf.mxu0
        %1077 = vmatprep.mubr.bf16.mxu0 0
        %1078 = vmatmul.mubr.bf16.gmra.mxu0 %v831
        %v1079 = vpop.f32.mrf.mxu0
        %v1080 = vadd.f32 0.0, %v1079
        %v1081 = vpop.f32.mrf.mxu0
        %v1082 = vpop.f32.mrf.mxu0
        %v1083 = vadd.f32 0.0, %v1082
        %v1084 = vpop.f32.mrf.mxu0
        %1085 = vmatprep.mubr.bf16.mxu0 0
        %1086 = vmatmul.mubr.bf16.gmra.mxu0 %v834
        %v1087 = vpop.f32.mrf.mxu0
        %v1088 = vadd.f32 0.0, %v1087
        %v1089 = vpop.f32.mrf.mxu0
        %v1090 = vpop.f32.mrf.mxu0
        %v1091 = vadd.f32 0.0, %v1090
        %v1092 = vpop.f32.mrf.mxu0
        %1093 = vmatprep.mubr.bf16.mxu0 0
        %1094 = vmatmul.mubr.bf16.gmra.mxu0 %v837
        %v1095 = vpop.f32.mrf.mxu0
        %v1096 = vadd.f32 0.0, %v1095
        %v1097 = vpop.f32.mrf.mxu0
        %v1098 = vpop.f32.mrf.mxu0
        %v1099 = vadd.f32 0.0, %v1098
        %v1100 = vpop.f32.mrf.mxu0
        %1101 = vmatprep.mubr.bf16.mxu0 0
        %1102 = vmatmul.mubr.bf16.gmra.mxu0 %v840
        %v1103 = vpop.f32.mrf.mxu0
        %v1104 = vadd.f32 0.0, %v1103
        %v1105 = vpop.f32.mrf.mxu0
        %v1106 = vpop.f32.mrf.mxu0
        %v1107 = vadd.f32 0.0, %v1106
        %v1108 = vpop.f32.mrf.mxu0
        %1109 = vmatprep.mubr.bf16.mxu0 0
        %1110 = vmatmul.mubr.bf16.gmra.mxu0 %v843
        %v1111 = vpop.f32.mrf.mxu0
        %v1112 = vadd.f32 0.0, %v1111
        %v1113 = vpop.f32.mrf.mxu0
        %v1114 = vpop.f32.mrf.mxu0
        %v1115 = vadd.f32 0.0, %v1114
        %v1116 = vpop.f32.mrf.mxu0
        %1117 = vmatprep.mubr.bf16.mxu0 0
        %1118 = vmatmul.mubr.bf16.gmra.mxu0 %v846
        %v1119 = vpop.f32.mrf.mxu0
        %v1120 = vadd.f32 0.0, %v1119
        %v1121 = vpop.f32.mrf.mxu0
        %v1122 = vpop.f32.mrf.mxu0
        %v1123 = vadd.f32 0.0, %v1122
        %v1124 = vpop.f32.mrf.mxu0
        %1125 = vmatprep.mubr.bf16.mxu0 0
        %1126 = vmatmul.mubr.bf16.gmra.mxu0 %v849
        %v1127 = vpop.f32.mrf.mxu0
        %v1128 = vadd.f32 0.0, %v1127
        %v1129 = vpop.f32.mrf.mxu0
        %v1130 = vpop.f32.mrf.mxu0
        %v1131 = vadd.f32 0.0, %v1130
        %v1132 = vpop.f32.mrf.mxu0
        %1133 = vmatprep.mubr.bf16.mxu0 0
        %1134 = vmatmul.mubr.bf16.gmra.mxu0 %v852
        %v1135 = vpop.f32.mrf.mxu0
        %v1136 = vadd.f32 0.0, %v1135
        %v1137 = vpop.f32.mrf.mxu0
        %v1138 = vpop.f32.mrf.mxu0
        %v1139 = vadd.f32 0.0, %v1138
        %v1140 = vpop.f32.mrf.mxu0
        %1141 = vmatprep.mubr.bf16.mxu0 0
        %1142 = vmatmul.mubr.bf16.gmra.mxu0 %v855
        %v1143 = vpop.f32.mrf.mxu0
        %v1144 = vadd.f32 0.0, %v1143
        %v1145 = vpop.f32.mrf.mxu0
        %v1146 = vpop.f32.mrf.mxu0
        %v1147 = vadd.f32 0.0, %v1146
        %v1148 = vpop.f32.mrf.mxu0
        %1149 = vmatprep.mubr.bf16.mxu0 0
        %1150 = vmatmul.mubr.bf16.gmra.mxu0 %v858
        %v1151 = vpop.f32.mrf.mxu0
        %v1152 = vadd.f32 0.0, %v1151
        %v1153 = vpop.f32.mrf.mxu0
        %v1154 = vpop.f32.mrf.mxu0
        %v1155 = vadd.f32 0.0, %v1154
        %v1156 = vpop.f32.mrf.mxu0
        %1157 = vmatprep.mubr.bf16.mxu0 0
        %1158 = vmatmul.mubr.bf16.gmra.mxu0 %v861
        %v1159 = vpop.f32.mrf.mxu0
        %v1160 = vadd.f32 0.0, %v1159
        %v1161 = vpop.f32.mrf.mxu0
        %v1162 = vpop.f32.mrf.mxu0
        %v1163 = vadd.f32 0.0, %v1162
        %v1164 = vpop.f32.mrf.mxu0
        %1165 = vmatprep.mubr.bf16.mxu0 0
        %1166 = vmatmul.mubr.bf16.gmra.mxu0 %v864
        %v1167 = vpop.f32.mrf.mxu0
        %v1168 = vadd.f32 0.0, %v1167
        %v1169 = vpop.f32.mrf.mxu0
        %v1170 = vpop.f32.mrf.mxu0
        %v1171 = vadd.f32 0.0, %v1170
        %v1172 = vpop.f32.mrf.mxu0
        %1173 = vmatprep.mubr.bf16.mxu0 0
        %1174 = vmatmul.mubr.bf16.gmra.mxu0 %v867
        %v1175 = vpop.f32.mrf.mxu0
        %v1176 = vadd.f32 0.0, %v1175
        %v1177 = vpop.f32.mrf.mxu0
        %v1178 = vpop.f32.mrf.mxu0
        %v1179 = vadd.f32 0.0, %v1178
        %v1180 = vpop.f32.mrf.mxu0
        %1181 = vmatprep.mubr.bf16.mxu0 0
        %1182 = vmatmul.mubr.bf16.gmra.mxu0 %v870
        %v1183 = vpop.f32.mrf.mxu0
        %v1184 = vadd.f32 0.0, %v1183
        %v1185 = vpop.f32.mrf.mxu0
        %v1186 = vpop.f32.mrf.mxu0
        %v1187 = vadd.f32 0.0, %v1186
        %v1188 = vpop.f32.mrf.mxu0
        %1189 = vmatprep.mubr.bf16.mxu0 0
        %1190 = vmatmul.mubr.bf16.gmra.mxu0 %v873
        %v1191 = vpop.f32.mrf.mxu0
        %v1192 = vadd.f32 0.0, %v1191
        %v1193 = vpop.f32.mrf.mxu0
        %v1194 = vpop.f32.mrf.mxu0
        %v1195 = vadd.f32 0.0, %v1194
        %v1196 = vpop.f32.mrf.mxu0
        %1197 = vmatprep.mubr.bf16.mxu0 0
        %1198 = vmatmul.mubr.bf16.gmra.mxu0 %v876
        %v1199 = vpop.f32.mrf.mxu0
        %v1200 = vadd.f32 0.0, %v1199
        %v1201 = vpop.f32.mrf.mxu0
        %v1202 = vpop.f32.mrf.mxu0
        %v1203 = vadd.f32 0.0, %v1202
        %v1204 = vpop.f32.mrf.mxu0
        %1205 = vdwg.mxu0
        %v1206 = vmax.f32 %v920, %v992
        %v1207 = vmax.f32 %v923, %v995
        %v1208 = vmax.f32 %v928, %v1000
        %v1209 = vmax.f32 %v931, %v1003
        %v1210 = vmax.f32 %v936, %v1008
        %v1211 = vmax.f32 %v939, %v1011
        %v1212 = vmax.f32 %v944, %v1016
        %v1213 = vmax.f32 %v947, %v1019
        %v1214 = vmax.f32 %v952, %v1024
        %v1215 = vmax.f32 %v955, %v1027
        %v1216 = vmax.f32 %v960, %v1032
        %v1217 = vmax.f32 %v963, %v1035
        %v1218 = vmax.f32 %v968, %v1040
        %v1219 = vmax.f32 %v971, %v1043
        %v1220 = vmax.f32 %v976, %v1048
        %v1221 = vmax.f32 %v979, %v1051
        %v1222 = vmax.f32 %v984, %v1056
        %v1223 = vmax.f32 %v987, %v1059
        %v1224 = vmax.f32 %v1064, %v1136
        %v1225 = vmax.f32 %v1067, %v1139
        %v1226 = vmax.f32 %v1072, %v1144
        %v1227 = vmax.f32 %v1075, %v1147
        %v1228 = vmax.f32 %v1080, %v1152
        %v1229 = vmax.f32 %v1083, %v1155
        %v1230 = vmax.f32 %v1088, %v1160
        %v1231 = vmax.f32 %v1091, %v1163
        %v1232 = vmax.f32 %v1096, %v1168
        %v1233 = vmax.f32 %v1099, %v1171
        %v1234 = vmax.f32 %v1104, %v1176
        %v1235 = vmax.f32 %v1107, %v1179
        %v1236 = vmax.f32 %v1112, %v1184
        %v1237 = vmax.f32 %v1115, %v1187
        %v1238 = vmax.f32 %v1120, %v1192
        %v1239 = vmax.f32 %v1123, %v1195
        %v1240 = vmax.f32 %v1128, %v1200
        %v1241 = vmax.f32 %v1131, %v1203
        %v1242 = vmax.f32 %v1206, %v1224
        %v1243 = vmax.f32 %v1207, %v1225
        %v1244 = vmax.f32 %v1208, %v1226
        %v1245 = vmax.f32 %v1209, %v1227
        %v1246 = vmax.f32 %v1210, %v1228
        %v1247 = vmax.f32 %v1211, %v1229
        %v1248 = vmax.f32 %v1212, %v1230
        %v1249 = vmax.f32 %v1213, %v1231
        %v1250 = vmax.f32 %v1214, %v1232
        %v1251 = vmax.f32 %v1215, %v1233
        %v1252 = vmax.f32 %v1216, %v1234
        %v1253 = vmax.f32 %v1217, %v1235
        %v1254 = vmax.f32 %v1218, %v1236
        %v1255 = vmax.f32 %v1219, %v1237
        %v1256 = vmax.f32 %v1220, %v1238
        %v1257 = vmax.f32 %v1221, %v1239
        %v1258 = vmax.f32 %v1222, %v1240
        %v1259 = vmax.f32 %v1223, %v1241
        %v1260 = vld [vmem:[%s2] sm:$0x1]
        %v1262 = vlaneseq
        %v1263 = vshrl.u32 %v1262, 7
        %v1264 = vsub.s32 0, %v1263
        %v1265 = vrot.slane %v1260, %v1264
        %v1267 = vadd.f32 %v1242, %v1265
        %v1268 = vadd.f32 %v1243, %v1265
        %v1269 = vadd.f32 %v1244, %v1265
        %v1270 = vadd.f32 %v1245, %v1265
        %v1271 = vadd.f32 %v1246, %v1265
        %v1272 = vadd.f32 %v1247, %v1265
        %v1273 = vadd.f32 %v1248, %v1265
        %v1274 = vadd.f32 %v1249, %v1265
        %v1275 = vadd.f32 %v1250, %v1265
        %v1276 = vadd.f32 %v1251, %v1265
        %v1277 = vadd.f32 %v1252, %v1265
        %v1278 = vadd.f32 %v1253, %v1265
        %v1279 = vadd.f32 %v1254, %v1265
        %v1280 = vadd.f32 %v1255, %v1265
        %v1281 = vadd.f32 %v1256, %v1265
        %v1282 = vadd.f32 %v1257, %v1265
        %v1283 = vadd.f32 %v1258, %v1265
        %v1284 = vadd.f32 %v1259, %v1265
        %v1285 = vmax.f32 %v1267, 0.0
        %v1286 = vmax.f32 %v1268, 0.0
        %v1287 = vmax.f32 %v1269, 0.0
        %v1288 = vmax.f32 %v1270, 0.0
        %v1289 = vmax.f32 %v1271, 0.0
        %v1290 = vmax.f32 %v1272, 0.0
        %v1291 = vmax.f32 %v1273, 0.0
        %v1292 = vmax.f32 %v1274, 0.0
        %v1293 = vmax.f32 %v1275, 0.0
        %v1294 = vmax.f32 %v1276, 0.0
        %v1295 = vmax.f32 %v1277, 0.0
        %v1296 = vmax.f32 %v1278, 0.0
        %v1297 = vmax.f32 %v1279, 0.0
        %v1298 = vmax.f32 %v1280, 0.0
        %v1299 = vmax.f32 %v1281, 0.0
        %v1300 = vmax.f32 %v1282, 0.0
        %v1301 = vmax.f32 %v1283, 0.0
        %v1302 = vmax.f32 %v1284, 0.0
        %v1303 = vpack.c.bf16 %v1286, %v1285
        %v1304 = vpack.c.bf16 %v1288, %v1287
        %v1305 = vpack.c.bf16 %v1290, %v1289
        %v1306 = vpack.c.bf16 %v1292, %v1291
        %v1307 = vpack.c.bf16 %v1294, %v1293
        %v1308 = vpack.c.bf16 %v1296, %v1295
        %v1309 = vpack.c.bf16 %v1298, %v1297
        %v1310 = vpack.c.bf16 %v1300, %v1299
        %v1311 = vpack.c.bf16 %v1302, %v1301
        %v1321 = vunpack.c.l.b16 %v1303
        %v1322 = vunpack.c.h.b16 %v1303
        %v1323 = vunpack.c.l.b16 %v1304
        %v1324 = vunpack.c.h.b16 %v1304
        %v1325 = vunpack.c.l.b16 %v1305
        %v1326 = vunpack.c.h.b16 %v1305
        %v1327 = vunpack.c.l.b16 %v1306
        %v1328 = vunpack.c.h.b16 %v1306
        %v1329 = vunpack.c.l.b16 %v1307
        %v1330 = vunpack.c.h.b16 %v1307
        %v1331 = vunpack.c.l.b16 %v1308
        %v1332 = vunpack.c.h.b16 %v1308
        %v1333 = vunpack.c.l.b16 %v1309
        %v1334 = vunpack.c.h.b16 %v1309
        %v1335 = vunpack.c.l.b16 %v1310
        %v1336 = vunpack.c.h.b16 %v1310
        %v1337 = vunpack.c.l.b16 %v1311
        %v1338 = vunpack.c.h.b16 %v1311
        %v1339 = vpack.c.b16 %v1321, %v1321
        %v1340 = vpack.c.b16 %v1322, %v1322
        %v1341 = vpack.c.b16 %v1323, %v1323
        %v1342 = vpack.c.b16 %v1324, %v1324
        %v1343 = vpack.c.b16 %v1325, %v1325
        %v1344 = vpack.c.b16 %v1326, %v1326
        %v1345 = vpack.c.b16 %v1327, %v1327
        %v1346 = vpack.c.b16 %v1328, %v1328
        %v1347 = vpack.c.b16 %v1329, %v1329
        %v1348 = vpack.c.b16 %v1330, %v1330
        %v1349 = vpack.c.b16 %v1331, %v1331
        %v1350 = vpack.c.b16 %v1332, %v1332
        %v1351 = vpack.c.b16 %v1333, %v1333
        %v1352 = vpack.c.b16 %v1334, %v1334
        %v1353 = vpack.c.b16 %v1335, %v1335
        %v1354 = vpack.c.b16 %v1336, %v1336
        %v1355 = vpack.c.b16 %v1337, %v1337
        %v1356 = vpack.c.b16 %v1338, %v1338
        %1375 = vst [vmem:[%s499] sm:$0xf] %v1339
        %1376 = vst [vmem:[%s499 + $0x4] sm:$0xf] %v1340
        %1377 = vst [vmem:[%s499 + $0x8] sm:$0xf] %v1341
        %1378 = vst [vmem:[%s499 + $0xc] sm:$0xf] %v1342
        %1379 = vst [vmem:[%s499 + $0x10] sm:$0xf] %v1343
        %1380 = vst [vmem:[%s499 + $0x14] sm:$0xf] %v1344
        %1381 = vst [vmem:[%s499 + $0x18] sm:$0xf] %v1345
        %1382 = vst [vmem:[%s499 + $0x1c] sm:$0xf] %v1346
        %1383 = vst [vmem:[%s499 + $0x20] sm:$0xf] %v1347
        %1384 = vst [vmem:[%s499 + $0x24] sm:$0xf] %v1348
        %1385 = vst [vmem:[%s499 + $0x28] sm:$0xf] %v1349
        %1386 = vst [vmem:[%s499 + $0x2c] sm:$0xf] %v1350
        %1387 = vst [vmem:[%s499 + $0x30] sm:$0xf] %v1351
        %1388 = vst [vmem:[%s499 + $0x34] sm:$0xf] %v1352
        %1389 = vst [vmem:[%s499 + $0x38] sm:$0xf] %v1353
        %1390 = vst [vmem:[%s499 + $0x3c] sm:$0xf] %v1354
        %1391 = vst [vmem:[%s499 + $0x40] sm:$0xf] %v1355
        %1392 = vst [vmem:[%s499 + $0x44] sm:$0xf] %v1356
        %s1393 = smul.u32 18, %s14
        %p1394 = scmp.lt.s32.totalorder %s1393, 35
        %s1395 = scalar_select %p1394, %s1393, 35
        %s1396 = smul.addr %s1395, 4
        %s1397 = scalar_lea.vmem %s3, %s1396
        // Predicated region
        $region74: #{net_forward.2} parent=68 // pred_check
          %p1398 = pneg %p100
        $region75: #{net_forward.2} parent=68 // pred_check_branch
          %1400 = sbr.rel (%p1398) target = $region77
        $region76: #{net_forward.2} parent=68 // pred_region
          %s1401 = smul.u32 18, %s14
        $region77: #{net_forward.2} parent=68 // pred_fallthru
          _
      $region69: #{net_forward.2} parent=5 // pred_fallthru
        _
      %p1402 = scmp.le.s32.totalorder 2, %s9
      // Predicated region
      $region78: #{net_forward.2} parent=5 // pred_check
        %p1403 = pneg %p1402
      $region79: #{net_forward.2} parent=5 // pred_check_branch
        %1405 = sbr.rel (%p1403) target = $region81
      $region80: #{net_forward.2} parent=5 // pred_region
        %s1406 = ssub.s32 %s9, 2
        // Predicated region
        $region82: #{net_forward.2} parent=80 // pred_check
          %p1407 = pneg %p106
        $region83: #{net_forward.2} parent=80 // pred_check_branch
          %1409 = sbr.rel (%p1407) target = $region85
        $region84: #{net_forward.2} parent=80 // pred_region
          %s1410 = smul.u32 18, %s15
          %p1411 = scmp.lt.s32.totalorder %s1410, 35
          %s1412 = scalar_select %p1411, %s1410, 35
          %s1413 = smul.addr %s1412, 4
          %s1414 = scalar_lea.vmem %s3, %s1413
        $region85: #{net_forward.2} parent=80 // pred_fallthru
          _
      $region81: #{net_forward.2} parent=5 // pred_fallthru
        _
    $region6: #{net_forward.2} parent=1 // loop_footer
      %s13 = sadd.s32 1, %s9
    $region7: #{net_forward.2} parent=1 // loop_footer_branch
      %8 = sbr.rel target = $region3
    $region8: #{net_forward.2} parent=1 // loop_exit
      _

// kernel: net_forward.3
$region0: #{net_forward.3}
  #allocation0 [shape = 'u32[]', space=smem, size = 0x4, offset = 0x4, fixed_abs, tag = 'smem constant byte address 0x4 - core index']
  #allocation1 [shape = 'u32[144,128]{1,0:T(1,128)}', space=vmem, size = 0x12000, scoped, tag = 'internal scratch']
  %s0 = inlined_call_operand.vmem [shape: bf16[4,16,16,250], index: 0, kind: input, shape index: {}]
  %s1 = inlined_call_operand.vmem [shape: bf16[250,128], index: 1, kind: input, shape index: {}]
  %s2 = inlined_call_operand.vmem [shape: f32[1,128], index: 2, kind: input, shape index: {}]
  %s3 = inlined_call_operand.vmem [shape: bf16[2048,128], index: 3, kind: input, shape index: {}]
  %s4 = inlined_call_operand.vmem [shape: f32[1,128], index: 4, kind: input, shape index: {}]
  %s5 = inlined_call_operand.vmem [shape: bf16[128,128], index: 5, kind: input, shape index: {}]
  %s6 = inlined_call_operand.vmem [shape: f32[1,128], index: 6, kind: input, shape index: {}]
  %s7 = inlined_call_operand.vmem [shape: f32[16,128], index: 7, kind: output, shape index: {}]
  %s8 = sld [smem:[#allocation0]]
  $region99: #{net_forward.3} parent=0
    _
  %s10 = ssub.s32 1, %s8
  %s11 = scalar_select 0, %s10, %s8
  $region1: #{net_forward.3} parent=0
    #allocation2 [shape = 'u8[524288]{0}', space=vmem, size = 0x80000, scoped, tag = 'input window, operand 0']
    loop: start=0, step=1, limit=4
    $region2: #{net_forward.3} parent=1 // loop_pre_header
      _
    $region3: #{net_forward.3} parent=1 // loop_header
      %s13 = sphi 0, %s17
      %p14 = scmp.ge.s32.totalorder %s13, 4
      %s23 = sphi 0, %s25
      %s26 = sphi 0, %s23
      %s27 = sphi 0, %s26
      %s43 = sphi 0, %s27
      %s47 = sphi 0, %s47
      %s49 = sphi 0, %s47
      %s50 = sphi 0, %s49
      %s64 = sphi 0, %s50
      %s68 = sphi 0, %s68
      %s70 = sphi 0, %s68
      %s71 = sphi 0, %s70
      %s85 = sphi 0, %s71
      %s89 = sphi 0, %s89
      %s91 = sphi 0, %s89
      %s92 = sphi 0, %s91
      %s106 = sphi 0, %s92
      %s110 = sphi 0, %s110
      %s112 = sphi 0, %s110
      %s113 = sphi 0, %s112
      %s127 = sphi 0, %s113
      %s131 = sphi 0, %s131
      %s133 = sphi 0, %s131
      %s134 = sphi 0, %s133
      %s148 = sphi 0, %s134
      %s152 = sphi 0, %s152
      %s154 = sphi 0, %s152
      %s155 = sphi 0, %s154
      %s169 = sphi 0, %s155
      %s175 = sphi 0, %s177
      %s178 = sphi 0, %s175
      %s179 = sphi 0, %s178
      %s195 = sphi 0, %s179
    $region4: #{net_forward.3} parent=1 // loop_header_branch
      %16 = sbr.rel (%p14) target = $region8
    $region5: #{net_forward.3} parent=1 // loop_body
      %s18 = ssub.s32 %s13, 1
      %s19 = ssub.s32 %s13, 2
      %s20 = sadd.s32 %s13, 1
      %s21 = ssub.s32 %s13, %s20
      %p22 = scmp.eq.s32.totalorder %s21, 0
      %s24 = sadd.s32 %s23, 1
      %s25 = scalar_select %p22, %s23, %s24
      %p28 = pneg %p22
      %p29 = scmp.eq.s32.totalorder %s13, 1
      %p30 = por %p28, %p29
      %p31 = scmp.ne.s32.totalorder %s23, %s26
      %p32 = scmp.eq.s32.totalorder %s13, 0
      %p33 = por %p31, %p32
      %p34 = scmp.ne.s32.totalorder %s23, %s26
      %p35 = scmp.eq.s32.totalorder %s18, 1
      %p36 = por %p34, %p35
      %p37 = scmp.ne.s32.totalorder %s26, %s27
      %p38 = scmp.eq.s32.totalorder %s18, 0
      %p39 = por %p37, %p38
      %p40 = scmp.ne.s32.totalorder %s26, %s27
      %p41 = scmp.eq.s32.totalorder %s19, 1
      %p42 = por %p40, %p41
      %p44 = scmp.ne.s32.totalorder %s27, %s43
      %p45 = scmp.eq.s32.totalorder %s19, 0
      %p46 = por %p44, %p45
      %s48 = sadd.s32 %s47, 1
      %p51 = scmp.eq.s32.totalorder %s13, 1
      %p52 = scmp.ne.s32.totalorder %s47, %s49
      %p53 = scmp.eq.s32.totalorder %s13, 0
      %p54 = por %p52, %p53
      %p55 = scmp.ne.s32.totalorder %s47, %s49
      %p56 = scmp.eq.s32.totalorder %s18, 1
      %p57 = por %p55, %p56
      %p58 = scmp.ne.s32.totalorder %s49, %s50
      %p59 = scmp.eq.s32.totalorder %s18, 0
      %p60 = por %p58, %p59
      %p61 = scmp.ne.s32.totalorder %s49, %s50
      %p62 = scmp.eq.s32.totalorder %s19, 1
      %p63 = por %p61, %p62
      %p65 = scmp.ne.s32.totalorder %s50, %s64
      %p66 = scmp.eq.s32.totalorder %s19, 0
      %p67 = por %p65, %p66
      %s69 = sadd.s32 %s68, 1
      %p72 = scmp.eq.s32.totalorder %s13, 1
      %p73 = scmp.ne.s32.totalorder %s68, %s70
      %p74 = scmp.eq.s32.totalorder %s13, 0
      %p75 = por %p73, %p74
      %p76 = scmp.ne.s32.totalorder %s68, %s70
      %p77 = scmp.eq.s32.totalorder %s18, 1
      %p78 = por %p76, %p77
      %p79 = scmp.ne.s32.totalorder %s70, %s71
      %p80 = scmp.eq.s32.totalorder %s18, 0
      %p81 = por %p79, %p80
      %p82 = scmp.ne.s32.totalorder %s70, %s71
      %p83 = scmp.eq.s32.totalorder %s19, 1
      %p84 = por %p82, %p83
      %p86 = scmp.ne.s32.totalorder %s71, %s85
      %p87 = scmp.eq.s32.totalorder %s19, 0
      %p88 = por %p86, %p87
      %s90 = sadd.s32 %s89, 1
      %p93 = scmp.eq.s32.totalorder %s13, 1
      %p94 = scmp.ne.s32.totalorder %s89, %s91
      %p95 = scmp.eq.s32.totalorder %s13, 0
      %p96 = por %p94, %p95
      %p97 = scmp.ne.s32.totalorder %s89, %s91
      %p98 = scmp.eq.s32.totalorder %s18, 1
      %p99 = por %p97, %p98
      %p100 = scmp.ne.s32.totalorder %s91, %s92
      %p101 = scmp.eq.s32.totalorder %s18, 0
      %p102 = por %p100, %p101
      %p103 = scmp.ne.s32.totalorder %s91, %s92
      %p104 = scmp.eq.s32.totalorder %s19, 1
      %p105 = por %p103, %p104
      %p107 = scmp.ne.s32.totalorder %s92, %s106
      %p108 = scmp.eq.s32.totalorder %s19, 0
      %p109 = por %p107, %p108
      %s111 = sadd.s32 %s110, 1
      %p114 = scmp.eq.s32.totalorder %s13, 1
      %p115 = scmp.ne.s32.totalorder %s110, %s112
      %p116 = scmp.eq.s32.totalorder %s13, 0
      %p117 = por %p115, %p116
      %p118 = scmp.ne.s32.totalorder %s110, %s112
      %p119 = scmp.eq.s32.totalorder %s18, 1
      %p120 = por %p118, %p119
      %p121 = scmp.ne.s32.totalorder %s112, %s113
      %p122 = scmp.eq.s32.totalorder %s18, 0
      %p123 = por %p121, %p122
      %p124 = scmp.ne.s32.totalorder %s112, %s113
      %p125 = scmp.eq.s32.totalorder %s19, 1
      %p126 = por %p124, %p125
      %p128 = scmp.ne.s32.totalorder %s113, %s127
      %p129 = scmp.eq.s32.totalorder %s19, 0
      %p130 = por %p128, %p129
      %s132 = sadd.s32 %s131, 1
      %p135 = scmp.eq.s32.totalorder %s13, 1
      %p136 = scmp.ne.s32.totalorder %s131, %s133
      %p137 = scmp.eq.s32.totalorder %s13, 0
      %p138 = por %p136, %p137
      %p139 = scmp.ne.s32.totalorder %s131, %s133
      %p140 = scmp.eq.s32.totalorder %s18, 1
      %p141 = por %p139, %p140
      %p142 = scmp.ne.s32.totalorder %s133, %s134
      %p143 = scmp.eq.s32.totalorder %s18, 0
      %p144 = por %p142, %p143
      %p145 = scmp.ne.s32.totalorder %s133, %s134
      %p146 = scmp.eq.s32.totalorder %s19, 1
      %p147 = por %p145, %p146
      %p149 = scmp.ne.s32.totalorder %s134, %s148
      %p150 = scmp.eq.s32.totalorder %s19, 0
      %p151 = por %p149, %p150
      %s153 = sadd.s32 %s152, 1
      %p156 = scmp.eq.s32.totalorder %s13, 1
      %p157 = scmp.ne.s32.totalorder %s152, %s154
      %p158 = scmp.eq.s32.totalorder %s13, 0
      %p159 = por %p157, %p158
      %p160 = scmp.ne.s32.totalorder %s152, %s154
      %p161 = scmp.eq.s32.totalorder %s18, 1
      %p162 = por %p160, %p161
      %p163 = scmp.ne.s32.totalorder %s154, %s155
      %p164 = scmp.eq.s32.totalorder %s18, 0
      %p165 = por %p163, %p164
      %p166 = scmp.ne.s32.totalorder %s154, %s155
      %p167 = scmp.eq.s32.totalorder %s19, 1
      %p168 = por %p166, %p167
      %p170 = scmp.ne.s32.totalorder %s155, %s169
      %p171 = scmp.eq.s32.totalorder %s19, 0
      %p172 = por %p170, %p171
      %s173 = ssub.s32 %s13, %s20
      %p174 = scmp.eq.s32.totalorder %s173, 0
      %s176 = sadd.s32 %s175, 1
      %s177 = scalar_select %p174, %s175, %s176
      %p180 = pneg %p174
      %p181 = scmp.eq.s32.totalorder %s13, 1
      %p182 = por %p180, %p181
      %p183 = scmp.ne.s32.totalorder %s175, %s178
      %p184 = scmp.eq.s32.totalorder %s13, 0
      %p185 = por %p183, %p184
      %p186 = scmp.ne.s32.totalorder %s175, %s178
      %p187 = scmp.eq.s32.totalorder %s18, 1
      %p188 = por %p186, %p187
      %p189 = scmp.ne.s32.totalorder %s178, %s179
      %p190 = scmp.eq.s32.totalorder %s18, 0
      %p191 = por %p189, %p190
      %p192 = scmp.ne.s32.totalorder %s178, %s179
      %p193 = scmp.eq.s32.totalorder %s19, 1
      %p194 = por %p192, %p193
      %p196 = scmp.ne.s32.totalorder %s179, %s195
      %p197 = scmp.eq.s32.totalorder %s19, 0
      %p198 = por %p196, %p197
      %p199 = scmp.le.s32.totalorder 1, %s13
      %p200 = scmp.lt.s32.totalorder %s13, 3
      %p201 = pnand %p199, %p200
      %p202 = pneg %p201
      // Predicated region
      $region9: #{net_forward.3} parent=5 // pred_check
        _
      $region10: #{net_forward.3} parent=5 // pred_check_branch
        %204 = sbr.rel (%p201) target = $region12
      $region11: #{net_forward.3} parent=5 // pred_region
        %s205 = ssub.s32 %s13, 1
        // Predicated region
        $region13: #{net_forward.3} parent=11 // pred_check
          %p206 = pneg %p60
        $region14: #{net_forward.3} parent=11 // pred_check_branch
          %208 = sbr.rel (%p206) target = $region16
        $region15: #{net_forward.3} parent=11 // pred_region
          _
        $region16: #{net_forward.3} parent=11 // pred_fallthru
          _
        // Predicated region
        $region17: #{net_forward.3} parent=11 // pred_check
          %p209 = pneg %p81
        $region18: #{net_forward.3} parent=11 // pred_check_branch
          %211 = sbr.rel (%p209) target = $region20
        $region19: #{net_forward.3} parent=11 // pred_region
          _
        $region20: #{net_forward.3} parent=11 // pred_fallthru
          _
        // Predicated region
        $region21: #{net_forward.3} parent=11 // pred_check
          %p212 = pneg %p102
        $region22: #{net_forward.3} parent=11 // pred_check_branch
          %214 = sbr.rel (%p212) target = $region24
        $region23: #{net_forward.3} parent=11 // pred_region
          _
        $region24: #{net_forward.3} parent=11 // pred_fallthru
          _
        // Predicated region
        $region25: #{net_forward.3} parent=11 // pred_check
          %p215 = pneg %p123
        $region26: #{net_forward.3} parent=11 // pred_check_branch
          %217 = sbr.rel (%p215) target = $region28
        $region27: #{net_forward.3} parent=11 // pred_region
          _
        $region28: #{net_forward.3} parent=11 // pred_fallthru
          _
        // Predicated region
        $region29: #{net_forward.3} parent=11 // pred_check
          %p218 = pneg %p144
        $region30: #{net_forward.3} parent=11 // pred_check_branch
          %220 = sbr.rel (%p218) target = $region32
        $region31: #{net_forward.3} parent=11 // pred_region
          _
        $region32: #{net_forward.3} parent=11 // pred_fallthru
          _
        // Predicated region
        $region33: #{net_forward.3} parent=11 // pred_check
          %p221 = pneg %p165
        $region34: #{net_forward.3} parent=11 // pred_check_branch
          %223 = sbr.rel (%p221) target = $region36
        $region35: #{net_forward.3} parent=11 // pred_region
          _
        $region36: #{net_forward.3} parent=11 // pred_fallthru
          _
      $region12: #{net_forward.3} parent=5 // pred_fallthru
        _
      %p224 = scmp.lt.s32.totalorder %s13, 2
      // Predicated region
      $region37: #{net_forward.3} parent=5 // pred_check
        %p225 = pneg %p224
      $region38: #{net_forward.3} parent=5 // pred_check_branch
        %227 = sbr.rel (%p225) target = $region40
      $region39: #{net_forward.3} parent=5 // pred_region
        // Predicated region
        $region41: #{net_forward.3} parent=39 // pred_check
          %p228 = pneg %p33
        $region42: #{net_forward.3} parent=39 // pred_check_branch
          %230 = sbr.rel (%p228) target = $region44
        $region43: #{net_forward.3} parent=39 // pred_region
          %s231 = sand.u32 %s23, 1
          %s232 = sand.u32 %s23, 1
          %s233 = smul.addr %s232, 512
          %s234 = scalar_lea.vmem [#allocation2], %s233
          %s235 = smul.addr %s13, 2
          %s236 = smul.addr %s235, 4
          %s237 = scalar_lea.vmem %s0, %s236
          // Predicated region
          $region45: #{net_forward.3} parent=43 // pred_check
            _
          $region46: #{net_forward.3} parent=43 // pred_check_branch
            %239 = sbr.rel (0) target = $region48
          $region47: #{net_forward.3} parent=43 // pred_region
            // Predicated region
            $region49: #{net_forward.3} parent=47 // pred_check
              _
            $region50: #{net_forward.3} parent=47 // pred_check_branch
              %241 = sbr.rel (0) target = $region52
            $region51: #{net_forward.3} parent=47 // pred_region
              // Predicated region
              $region64: #{net_forward.3} parent=51 // pred_check
                _
              $region65: #{net_forward.3} parent=51 // pred_check_branch
                %383 = sbr.rel (0) target = $region67
              $region66: #{net_forward.3} parent=51 // pred_region
                loop: start=0, step=1, limit=1
                $region68: #{net_forward.3} parent=66 // loop_pre_header
                  _
                $region69: #{net_forward.3} parent=66 // loop_header
                  %s385 = sphi 0, %s389
                  %p386 = scmp.ge.s32.totalorder %s385, 1
                  %s390 = sphi %s237, %s237
                  %s391 = sphi %s234, %s234
                $region70: #{net_forward.3} parent=66 // loop_header_branch
                  %388 = sbr.rel (%p386) target = $region74
                $region71: #{net_forward.3} parent=66 // loop_body
                  %v392 = vld [vmem:[%s390] sm:$0xff]
                  %393 = vst [vmem:[%s391] sm:$0xff] %v392
                  %v394 = vld [vmem:[%s390 + $0x10] sm:$0xff]
                  %395 = vst [vmem:[%s391 + $0x8] sm:$0xff] %v394
                  %v396 = vld [vmem:[%s390 + $0x20] sm:$0xff]
                  %397 = vst [vmem:[%s391 + $0x10] sm:$0xff] %v396
                  %v398 = vld [vmem:[%s390 + $0x30] sm:$0xff]
                  %399 = vst [vmem:[%s391 + $0x18] sm:$0xff] %v398
                  %v400 = vld [vmem:[%s390 + $0x40] sm:$0xff]
                  %401 = vst [vmem:[%s391 + $0x20] sm:$0xff] %v400
                  %v402 = vld [vmem:[%s390 + $0x50] sm:$0xff]
                  %403 = vst [vmem:[%s391 + $0x28] sm:$0xff] %v402
                  %v404 = vld [vmem:[%s390 + $0x60] sm:$0xff]
                  %405 = vst [vmem:[%s391 + $0x30] sm:$0xff] %v404
                  %v406 = vld [vmem:[%s390 + $0x70] sm:$0xff]
                  %407 = vst [vmem:[%s391 + $0x38] sm:$0xff] %v406
                  %v408 = vld [vmem:[%s390 + $0x80] sm:$0xff]
                  %409 = vst [vmem:[%s391 + $0x40] sm:$0xff] %v408
                  %v410 = vld [vmem:[%s390 + $0x90] sm:$0xff]
                  %411 = vst [vmem:[%s391 + $0x48] sm:$0xff] %v410
                  %v412 = vld [vmem:[%s390 + $0xa0] sm:$0xff]
                  %413 = vst [vmem:[%s391 + $0x50] sm:$0xff] %v412
                  %v414 = vld [vmem:[%s390 + $0xb0] sm:$0xff]
                  %415 = vst [vmem:[%s391 + $0x58] sm:$0xff] %v414
                  %v416 = vld [vmem:[%s390 + $0xc0] sm:$0xff]
                  %417 = vst [vmem:[%s391 + $0x60] sm:$0xff] %v416
                  %v418 = vld [vmem:[%s390 + $0xd0] sm:$0xff]
                  %419 = vst [vmem:[%s391 + $0x68] sm:$0xff] %v418
                  %v420 = vld [vmem:[%s390 + $0xe0] sm:$0xff]
                  %421 = vst [vmem:[%s391 + $0x70] sm:$0xff] %v420
                  %v422 = vld [vmem:[%s390 + $0xf0] sm:$0xff]
                  %423 = vst [vmem:[%s391 + $0x78] sm:$0xff] %v422
                  %v424 = vld [vmem:[%s390 + $0x100] sm:$0xff]
                  %425 = vst [vmem:[%s391 + $0x80] sm:$0xff] %v424
                  %v426 = vld [vmem:[%s390 + $0x110] sm:$0xff]
                  %427 = vst [vmem:[%s391 + $0x88] sm:$0xff] %v426
                  %v428 = vld [vmem:[%s390 + $0x120] sm:$0xff]
                  %429 = vst [vmem:[%s391 + $0x90] sm:$0xff] %v428
                  %v430 = vld [vmem:[%s390 + $0x130] sm:$0xff]
                  %431 = vst [vmem:[%s391 + $0x98] sm:$0xff] %v430
                  %v432 = vld [vmem:[%s390 + $0x140] sm:$0xff]
                  %433 = vst [vmem:[%s391 + $0xa0] sm:$0xff] %v432
                  %v434 = vld [vmem:[%s390 + $0x150] sm:$0xff]
                  %435 = vst [vmem:[%s391 + $0xa8] sm:$0xff] %v434
                  %v436 = vld [vmem:[%s390 + $0x160] sm:$0xff]
                  %437 = vst [vmem:[%s391 + $0xb0] sm:$0xff] %v436
                  %v438 = vld [vmem:[%s390 + $0x170] sm:$0xff]
                  %439 = vst [vmem:[%s391 + $0xb8] sm:$0xff] %v438
                  %v440 = vld [vmem:[%s390 + $0x180] sm:$0xff]
                  %441 = vst [vmem:[%s391 + $0xc0] sm:$0xff] %v440
                  %v442 = vld [vmem:[%s390 + $0x190] sm:$0xff]
                  %443 = vst [vmem:[%s391 + $0xc8] sm:$0xff] %v442
                  %v444 = vld [vmem:[%s390 + $0x1a0] sm:$0xff]
                  %445 = vst [vmem:[%s391 + $0xd0] sm:$0xff] %v444
                  %v446 = vld [vmem:[%s390 + $0x1b0] sm:$0xff]
                  %447 = vst [vmem:[%s391 + $0xd8] sm:$0xff] %v446
                  %v448 = vld [vmem:[%s390 + $0x1c0] sm:$0xff]
                  %449 = vst [vmem:[%s391 + $0xe0] sm:$0xff] %v448
                  %v450 = vld [vmem:[%s390 + $0x1d0] sm:$0xff]
                  %451 = vst [vmem:[%s391 + $0xe8] sm:$0xff] %v450
                  %v452 = vld [vmem:[%s390 + $0x1e0] sm:$0xff]
                  %453 = vst [vmem:[%s391 + $0xf0] sm:$0xff] %v452
                  %v454 = vld [vmem:[%s390 + $0x1f0] sm:$0xff]
                  %455 = vst [vmem:[%s391 + $0xf8] sm:$0xff] %v454
                  %v456 = vld [vmem:[%s390 + $0x200] sm:$0xff]
                  %457 = vst [vmem:[%s391 + $0x100] sm:$0xff] %v456
                  %v458 = vld [vmem:[%s390 + $0x210] sm:$0xff]
                  %459 = vst [vmem:[%s391 + $0x108] sm:$0xff] %v458
                  %v460 = vld [vmem:[%s390 + $0x220] sm:$0xff]
                  %461 = vst [vmem:[%s391 + $0x110] sm:$0xff] %v460
                  %v462 = vld [vmem:[%s390 + $0x230] sm:$0xff]
                  %463 = vst [vmem:[%s391 + $0x118] sm:$0xff] %v462
                  %v464 = vld [vmem:[%s390 + $0x240] sm:$0xff]
                  %465 = vst [vmem:[%s391 + $0x120] sm:$0xff] %v464
                  %v466 = vld [vmem:[%s390 + $0x250] sm:$0xff]
                  %467 = vst [vmem:[%s391 + $0x128] sm:$0xff] %v466
                  %v468 = vld [vmem:[%s390 + $0x260] sm:$0xff]
                  %469 = vst [vmem:[%s391 + $0x130] sm:$0xff] %v468
                  %v470 = vld [vmem:[%s390 + $0x270] sm:$0xff]
                  %471 = vst [vmem:[%s391 + $0x138] sm:$0xff] %v470
                  %v472 = vld [vmem:[%s390 + $0x280] sm:$0xff]
                  %473 = vst [vmem:[%s391 + $0x140] sm:$0xff] %v472
                  %v474 = vld [vmem:[%s390 + $0x290] sm:$0xff]
                  %475 = vst [vmem:[%s391 + $0x148] sm:$0xff] %v474
                  %v476 = vld [vmem:[%s390 + $0x2a0] sm:$0xff]
                  %477 = vst [vmem:[%s391 + $0x150] sm:$0xff] %v476
                  %v478 = vld [vmem:[%s390 + $0x2b0] sm:$0xff]
                  %479 = vst [vmem:[%s391 + $0x158] sm:$0xff] %v478
                  %v480 = vld [vmem:[%s390 + $0x2c0] sm:$0xff]
                  %481 = vst [vmem:[%s391 + $0x160] sm:$0xff] %v480
                  %v482 = vld [vmem:[%s390 + $0x2d0] sm:$0xff]
                  %483 = vst [vmem:[%s391 + $0x168] sm:$0xff] %v482
                  %v484 = vld [vmem:[%s390 + $0x2e0] sm:$0xff]
                  %485 = vst [vmem:[%s391 + $0x170] sm:$0xff] %v484
                  %v486 = vld [vmem:[%s390 + $0x2f0] sm:$0xff]
                  %487 = vst [vmem:[%s391 + $0x178] sm:$0xff] %v486
                  %v488 = vld [vmem:[%s390 + $0x300] sm:$0xff]
                  %489 = vst [vmem:[%s391 + $0x180] sm:$0xff] %v488
                  %v490 = vld [vmem:[%s390 + $0x310] sm:$0xff]
                  %491 = vst [vmem:[%s391 + $0x188] sm:$0xff] %v490
                  %v492 = vld [vmem:[%s390 + $0x320] sm:$0xff]
                  %493 = vst [vmem:[%s391 + $0x190] sm:$0xff] %v492
                  %v494 = vld [vmem:[%s390 + $0x330] sm:$0xff]
                  %495 = vst [vmem:[%s391 + $0x198] sm:$0xff] %v494
                  %v496 = vld [vmem:[%s390 + $0x340] sm:$0xff]
                  %497 = vst [vmem:[%s391 + $0x1a0] sm:$0xff] %v496
                  %v498 = vld [vmem:[%s390 + $0x350] sm:$0xff]
                  %499 = vst [vmem:[%s391 + $0x1a8] sm:$0xff] %v498
                  %v500 = vld [vmem:[%s390 + $0x360] sm:$0xff]
                  %501 = vst [vmem:[%s391 + $0x1b0] sm:$0xff] %v500
                  %v502 = vld [vmem:[%s390 + $0x370] sm:$0xff]
                  %503 = vst [vmem:[%s391 + $0x1b8] sm:$0xff] %v502
                  %v504 = vld [vmem:[%s390 + $0x380] sm:$0xff]
                  %505 = vst [vmem:[%s391 + $0x1c0] sm:$0xff] %v504
                  %v506 = vld [vmem:[%s390 + $0x390] sm:$0xff]
                  %507 = vst [vmem:[%s391 + $0x1c8] sm:$0xff] %v506
                  %v508 = vld [vmem:[%s390 + $0x3a0] sm:$0xff]
                  %509 = vst [vmem:[%s391 + $0x1d0] sm:$0xff] %v508
                  %v510 = vld [vmem:[%s390 + $0x3b0] sm:$0xff]
                  %511 = vst [vmem:[%s391 + $0x1d8] sm:$0xff] %v510
                  %v512 = vld [vmem:[%s390 + $0x3c0] sm:$0xff]
                  %513 = vst [vmem:[%s391 + $0x1e0] sm:$0xff] %v512
                  %v514 = vld [vmem:[%s390 + $0x3d0] sm:$0xff]
                  %515 = vst [vmem:[%s391 + $0x1e8] sm:$0xff] %v514
                  %v516 = vld [vmem:[%s390 + $0x3e0] sm:$0xff]
                  %517 = vst [vmem:[%s391 + $0x1f0] sm:$0xff] %v516
                  %v518 = vld [vmem:[%s390 + $0x3f0] sm:$0xff]
                  %519 = vst [vmem:[%s391 + $0x1f8] sm:$0xff] %v518
                $region72: #{net_forward.3} parent=66 // loop_footer
                  %s389 = sadd.s32 1, %s385
                $region73: #{net_forward.3} parent=66 // loop_footer_branch
                  %384 = sbr.rel target = $region69
                $region74: #{net_forward.3} parent=66 // loop_exit
                  _
              $region67: #{net_forward.3} parent=51 // pred_fallthru
                _
              // Predicated region
              $region75: #{net_forward.3} parent=51 // pred_check
                _
              $region76: #{net_forward.3} parent=51 // pred_check_branch
                %521 = sbr.rel target = $region78
              $region77: #{net_forward.3} parent=51 // pred_region
                _
              $region78: #{net_forward.3} parent=51 // pred_fallthru
                _
            $region52: #{net_forward.3} parent=47 // pred_fallthru
              _
            // Predicated region
            $region53: #{net_forward.3} parent=47 // pred_check
              _
            $region54: #{net_forward.3} parent=47 // pred_check_branch
              %243 = sbr.rel target = $region56
            $region55: #{net_forward.3} parent=47 // pred_region
              %s245 = ssub.s32 256, 1
              loop: start=0, step=1, limit=1
              $region57: #{net_forward.3} parent=55 // loop_pre_header
                _
              $region58: #{net_forward.3} parent=55 // loop_header
                %s247 = sphi 0, %s251
                %p248 = scmp.ge.s32.totalorder %s247, 1
                %s252 = sphi %s237, %s237
                %s253 = sphi %s234, %s234
              $region59: #{net_forward.3} parent=55 // loop_header_branch
                %250 = sbr.rel (%p248) target = $region63
              $region60: #{net_forward.3} parent=55 // loop_body
                %v254 = vld [vmem:[%s252] sm:%s245]
                %255 = vst [vmem:[%s253] sm:%s245] %v254
                %v256 = vld [vmem:[%s252 + $0x10] sm:%s245]
                %257 = vst [vmem:[%s253 + $0x8] sm:%s245] %v256
                %v258 = vld [vmem:[%s252 + $0x20] sm:%s245]
                %259 = vst [vmem:[%s253 + $0x10] sm:%s245] %v258
                %v260 = vld [vmem:[%s252 + $0x30] sm:%s245]
                %261 = vst [vmem:[%s253 + $0x18] sm:%s245] %v260
                %v262 = vld [vmem:[%s252 + $0x40] sm:%s245]
                %263 = vst [vmem:[%s253 + $0x20] sm:%s245] %v262
                %v264 = vld [vmem:[%s252 + $0x50] sm:%s245]
                %265 = vst [vmem:[%s253 + $0x28] sm:%s245] %v264
                %v266 = vld [vmem:[%s252 + $0x60] sm:%s245]
                %267 = vst [vmem:[%s253 + $0x30] sm:%s245] %v266
                %v268 = vld [vmem:[%s252 + $0x70] sm:%s245]
                %269 = vst [vmem:[%s253 + $0x38] sm:%s245] %v268
                %v270 = vld [vmem:[%s252 + $0x80] sm:%s245]
                %271 = vst [vmem:[%s253 + $0x40] sm:%s245] %v270
                %v272 = vld [vmem:[%s252 + $0x90] sm:%s245]
                %273 = vst [vmem:[%s253 + $0x48] sm:%s245] %v272
                %v274 = vld [vmem:[%s252 + $0xa0] sm:%s245]
                %275 = vst [vmem:[%s253 + $0x50] sm:%s245] %v274
                %v276 = vld [vmem:[%s252 + $0xb0] sm:%s245]
                %277 = vst [vmem:[%s253 + $0x58] sm:%s245] %v276
                %v278 = vld [vmem:[%s252 + $0xc0] sm:%s245]
                %279 = vst [vmem:[%s253 + $0x60] sm:%s245] %v278
                %v280 = vld [vmem:[%s252 + $0xd0] sm:%s245]
                %281 = vst [vmem:[%s253 + $0x68] sm:%s245] %v280
                %v282 = vld [vmem:[%s252 + $0xe0] sm:%s245]
                %283 = vst [vmem:[%s253 + $0x70] sm:%s245] %v282
                %v284 = vld [vmem:[%s252 + $0xf0] sm:%s245]
                %285 = vst [vmem:[%s253 + $0x78] sm:%s245] %v284
                %v286 = vld [vmem:[%s252 + $0x100] sm:%s245]
                %287 = vst [vmem:[%s253 + $0x80] sm:%s245] %v286
                %v288 = vld [vmem:[%s252 + $0x110] sm:%s245]
                %289 = vst [vmem:[%s253 + $0x88] sm:%s245] %v288
                %v290 = vld [vmem:[%s252 + $0x120] sm:%s245]
                %291 = vst [vmem:[%s253 + $0x90] sm:%s245] %v290
                %v292 = vld [vmem:[%s252 + $0x130] sm:%s245]
                %293 = vst [vmem:[%s253 + $0x98] sm:%s245] %v292
                %v294 = vld [vmem:[%s252 + $0x140] sm:%s245]
                %295 = vst [vmem:[%s253 + $0xa0] sm:%s245] %v294
                %v296 = vld [vmem:[%s252 + $0x150] sm:%s245]
                %297 = vst [vmem:[%s253 + $0xa8] sm:%s245] %v296
                %v298 = vld [vmem:[%s252 + $0x160] sm:%s245]
                %299 = vst [vmem:[%s253 + $0xb0] sm:%s245] %v298
                %v300 = vld [vmem:[%s252 + $0x170] sm:%s245]
                %301 = vst [vmem:[%s253 + $0xb8] sm:%s245] %v300
                %v302 = vld [vmem:[%s252 + $0x180] sm:%s245]
                %303 = vst [vmem:[%s253 + $0xc0] sm:%s245] %v302
                %v304 = vld [vmem:[%s252 + $0x190] sm:%s245]
                %305 = vst [vmem:[%s253 + $0xc8] sm:%s245] %v304
                %v306 = vld [vmem:[%s252 + $0x1a0] sm:%s245]
                %307 = vst [vmem:[%s253 + $0xd0] sm:%s245] %v306
                %v308 = vld [vmem:[%s252 + $0x1b0] sm:%s245]
                %309 = vst [vmem:[%s253 + $0xd8] sm:%s245] %v308
                %v310 = vld [vmem:[%s252 + $0x1c0] sm:%s245]
                %311 = vst [vmem:[%s253 + $0xe0] sm:%s245] %v310
                %v312 = vld [vmem:[%s252 + $0x1d0] sm:%s245]
                %313 = vst [vmem:[%s253 + $0xe8] sm:%s245] %v312
                %v314 = vld [vmem:[%s252 + $0x1e0] sm:%s245]
                %315 = vst [vmem:[%s253 + $0xf0] sm:%s245] %v314
                %v316 = vld [vmem:[%s252 + $0x1f0] sm:%s245]
                %317 = vst [vmem:[%s253 + $0xf8] sm:%s245] %v316
                %v318 = vld [vmem:[%s252 + $0x200] sm:%s245]
                %319 = vst [vmem:[%s253 + $0x100] sm:%s245] %v318
                %v320 = vld [vmem:[%s252 + $0x210] sm:%s245]
                %321 = vst [vmem:[%s253 + $0x108] sm:%s245] %v320
                %v322 = vld [vmem:[%s252 + $0x220] sm:%s245]
                %323 = vst [vmem:[%s253 + $0x110] sm:%s245] %v322
                %v324 = vld [vmem:[%s252 + $0x230] sm:%s245]
                %325 = vst [vmem:[%s253 + $0x118] sm:%s245] %v324
                %v326 = vld [vmem:[%s252 + $0x240] sm:%s245]
                %327 = vst [vmem:[%s253 + $0x120] sm:%s245] %v326
                %v328 = vld [vmem:[%s252 + $0x250] sm:%s245]
                %329 = vst [vmem:[%s253 + $0x128] sm:%s245] %v328
                %v330 = vld [vmem:[%s252 + $0x260] sm:%s245]
                %331 = vst [vmem:[%s253 + $0x130] sm:%s245] %v330
                %v332 = vld [vmem:[%s252 + $0x270] sm:%s245]
                %333 = vst [vmem:[%s253 + $0x138] sm:%s245] %v332
                %v334 = vld [vmem:[%s252 + $0x280] sm:%s245]
                %335 = vst [vmem:[%s253 + $0x140] sm:%s245] %v334
                %v336 = vld [vmem:[%s252 + $0x290] sm:%s245]
                %337 = vst [vmem:[%s253 + $0x148] sm:%s245] %v336
                %v338 = vld [vmem:[%s252 + $0x2a0] sm:%s245]
                %339 = vst [vmem:[%s253 + $0x150] sm:%s245] %v338
                %v340 = vld [vmem:[%s252 + $0x2b0] sm:%s245]
                %341 = vst [vmem:[%s253 + $0x158] sm:%s245] %v340
                %v342 = vld [vmem:[%s252 + $0x2c0] sm:%s245]
                %343 = vst [vmem:[%s253 + $0x160] sm:%s245] %v342
                %v344 = vld [vmem:[%s252 + $0x2d0] sm:%s245]
                %345 = vst [vmem:[%s253 + $0x168] sm:%s245] %v344
                %v346 = vld [vmem:[%s252 + $0x2e0] sm:%s245]
                %347 = vst [vmem:[%s253 + $0x170] sm:%s245] %v346
                %v348 = vld [vmem:[%s252 + $0x2f0] sm:%s245]
                %349 = vst [vmem:[%s253 + $0x178] sm:%s245] %v348
                %v350 = vld [vmem:[%s252 + $0x300] sm:%s245]
                %351 = vst [vmem:[%s253 + $0x180] sm:%s245] %v350
                %v352 = vld [vmem:[%s252 + $0x310] sm:%s245]
                %353 = vst [vmem:[%s253 + $0x188] sm:%s245] %v352
                %v354 = vld [vmem:[%s252 + $0x320] sm:%s245]
                %355 = vst [vmem:[%s253 + $0x190] sm:%s245] %v354
                %v356 = vld [vmem:[%s252 + $0x330] sm:%s245]
                %357 = vst [vmem:[%s253 + $0x198] sm:%s245] %v356
                %v358 = vld [vmem:[%s252 + $0x340] sm:%s245]
                %359 = vst [vmem:[%s253 + $0x1a0] sm:%s245] %v358
                %v360 = vld [vmem:[%s252 + $0x350] sm:%s245]
                %361 = vst [vmem:[%s253 + $0x1a8] sm:%s245] %v360
                %v362 = vld [vmem:[%s252 + $0x360] sm:%s245]
                %363 = vst [vmem:[%s253 + $0x1b0] sm:%s245] %v362
                %v364 = vld [vmem:[%s252 + $0x370] sm:%s245]
                %365 = vst [vmem:[%s253 + $0x1b8] sm:%s245] %v364
                %v366 = vld [vmem:[%s252 + $0x380] sm:%s245]
                %367 = vst [vmem:[%s253 + $0x1c0] sm:%s245] %v366
                %v368 = vld [vmem:[%s252 + $0x390] sm:%s245]
                %369 = vst [vmem:[%s253 + $0x1c8] sm:%s245] %v368
                %v370 = vld [vmem:[%s252 + $0x3a0] sm:%s245]
                %371 = vst [vmem:[%s253 + $0x1d0] sm:%s245] %v370
                %v372 = vld [vmem:[%s252 + $0x3b0] sm:%s245]
                %373 = vst [vmem:[%s253 + $0x1d8] sm:%s245] %v372
                %v374 = vld [vmem:[%s252 + $0x3c0] sm:%s245]
                %375 = vst [vmem:[%s253 + $0x1e0] sm:%s245] %v374
                %v376 = vld [vmem:[%s252 + $0x3d0] sm:%s245]
                %377 = vst [vmem:[%s253 + $0x1e8] sm:%s245] %v376
                %v378 = vld [vmem:[%s252 + $0x3e0] sm:%s245]
                %379 = vst [vmem:[%s253 + $0x1f0] sm:%s245] %v378
                %v380 = vld [vmem:[%s252 + $0x3f0] sm:%s245]
                %381 = vst [vmem:[%s253 + $0x1f8] sm:%s245] %v380
              $region61: #{net_forward.3} parent=55 // loop_footer
                %s251 = sadd.s32 1, %s247
              $region62: #{net_forward.3} parent=55 // loop_footer_branch
                %246 = sbr.rel target = $region58
              $region63: #{net_forward.3} parent=55 // loop_exit
                _
            $region56: #{net_forward.3} parent=47 // pred_fallthru
              _
          $region48: #{net_forward.3} parent=43 // pred_fallthru
            _
          %522 = vnop
        $region44: #{net_forward.3} parent=39 // pred_fallthru
          _
      $region40: #{net_forward.3} parent=5 // pred_fallthru
        _
      %p523 = scmp.le.s32.totalorder 1, %s13
      %p524 = scmp.lt.s32.totalorder %s13, 3
      %p525 = pnand %p523, %p524
      %p526 = pneg %p525
      // Predicated region
      $region79: #{net_forward.3} parent=5 // pred_check
        _
      $region80: #{net_forward.3} parent=5 // pred_check_branch
        %528 = sbr.rel (%p525) target = $region82
      $region81: #{net_forward.3} parent=5 // pred_region
        %s529 = ssub.s32 %s13, 1
        %s530 = sand.u32 %s26, 1
        %s531 = sand.u32 %s26, 1
        %s532 = smul.addr %s531, 512
        %s533 = scalar_lea.vmem [#allocation2], %s532
        // Predicated region
        $region83: #{net_forward.3} parent=81 // pred_check
          %p534 = pneg %p39
        $region84: #{net_forward.3} parent=81 // pred_check_branch
          %536 = sbr.rel (%p534) target = $region86
        $region85: #{net_forward.3} parent=81 // pred_region
          _
        $region86: #{net_forward.3} parent=81 // pred_fallthru
          _
        %s537 = sand.u32 %s26, 1
        %s538 = sand.u32 %s26, 1
        %s539 = smul.addr %s538, 512
        %s540 = scalar_lea.vmem [#allocation2], %s539
        %p541 = pneg %p39
        %p542 = pneg %p36
        %p543 = pneg %p60
        %p544 = pneg %p57
        %p545 = pneg %p81
        %p546 = pneg %p78
        %p547 = pneg %p102
        %p548 = pneg %p99
        %p549 = pneg %p123
        %p550 = pneg %p120
        %p551 = pneg %p144
        %p552 = pneg %p141
        %p553 = pneg %p165
        %p554 = pneg %p162
        %p555 = pneg %p191
        %p556 = pneg %p188
        %p557 = scmp.lt.s32.totalorder %s18, 1
        %s558 = scalar_select %p557, %s18, 1
        %s559 = smul.addr %s558, 8
        %s560 = scalar_lea.vmem %s7, %s559
        %p561 = scmp.lt.s32.totalorder %s18, 1
        %s562 = scalar_select %p561, %s18, 1
        %s563 = smul.addr %s562, 8
        %s564 = scalar_lea.vmem %s7, %s563
        %v566 = vld [vmem:[%s533] sm:$0xff]
        %v567 = vld [vmem:[%s533 + $0x8] sm:$0xff]
        %v568 = vld [vmem:[%s533 + $0x10] sm:$0xff]
        %v569 = vld [vmem:[%s533 + $0x18] sm:$0xff]
        %v570 = vld [vmem:[%s533 + $0x20] sm:$0xff]
        %v571 = vld [vmem:[%s533 + $0x28] sm:$0xff]
        %v572 = vld [vmem:[%s533 + $0x30] sm:$0xff]
        %v573 = vld [vmem:[%s533 + $0x38] sm:$0xff]
        %v574 = vld [vmem:[%s533 + $0x40] sm:$0xff]
        %v575 = vld [vmem:[%s533 + $0x48] sm:$0xff]
        %v576 = vld [vmem:[%s533 + $0x50] sm:$0xff]
        %v577 = vld [vmem:[%s533 + $0x58] sm:$0xff]
        %v578 = vld [vmem:[%s533 + $0x60] sm:$0xff]
        %v579 = vld [vmem:[%s533 + $0x68] sm:$0xff]
        %v580 = vld [vmem:[%s533 + $0x70] sm:$0xff]
        %v581 = vld [vmem:[%s533 + $0x78] sm:$0xff]
        %v582 = vld [vmem:[%s533 + $0x80] sm:$0xff]
        %v583 = vld [vmem:[%s533 + $0x88] sm:$0xff]
        %v584 = vld [vmem:[%s533 + $0x90] sm:$0xff]
        %v585 = vld [vmem:[%s533 + $0x98] sm:$0xff]
        %v586 = vld [vmem:[%s533 + $0xa0] sm:$0xff]
        %v587 = vld [vmem:[%s533 + $0xa8] sm:$0xff]
        %v588 = vld [vmem:[%s533 + $0xb0] sm:$0xff]
        %v589 = vld [vmem:[%s533 + $0xb8] sm:$0xff]
        %v590 = vld [vmem:[%s533 + $0xc0] sm:$0xff]
        %v591 = vld [vmem:[%s533 + $0xc8] sm:$0xff]
        %v592 = vld [vmem:[%s533 + $0xd0] sm:$0xff]
        %v593 = vld [vmem:[%s533 + $0xd8] sm:$0xff]
        %v594 = vld [vmem:[%s533 + $0xe0] sm:$0xff]
        %v595 = vld [vmem:[%s533 + $0xe8] sm:$0xff]
        %v596 = vld [vmem:[%s533 + $0xf0] sm:$0xff]
        %v597 = vld [vmem:[%s533 + $0xf8] sm:$0xff]
        %v598 = vld [vmem:[%s533 + $0x100] sm:$0xff]
        %v599 = vld [vmem:[%s533 + $0x108] sm:$0xff]
        %v600 = vld [vmem:[%s533 + $0x110] sm:$0xff]
        %v601 = vld [vmem:[%s533 + $0x118] sm:$0xff]
        %v602 = vld [vmem:[%s533 + $0x120] sm:$0xff]
        %v603 = vld [vmem:[%s533 + $0x128] sm:$0xff]
        %v604 = vld [vmem:[%s533 + $0x130] sm:$0xff]
        %v605 = vld [vmem:[%s533 + $0x138] sm:$0xff]
        %v606 = vld [vmem:[%s533 + $0x140] sm:$0xff]
        %v607 = vld [vmem:[%s533 + $0x148] sm:$0xff]
        %v608 = vld [vmem:[%s533 + $0x150] sm:$0xff]
        %v609 = vld [vmem:[%s533 + $0x158] sm:$0xff]
        %v610 = vld [vmem:[%s533 + $0x160] sm:$0xff]
        %v611 = vld [vmem:[%s533 + $0x168] sm:$0xff]
        %v612 = vld [vmem:[%s533 + $0x170] sm:$0xff]
        %v613 = vld [vmem:[%s533 + $0x178] sm:$0xff]
        %v614 = vld [vmem:[%s533 + $0x180] sm:$0xff]
        %v615 = vld [vmem:[%s533 + $0x188] sm:$0xff]
        %v616 = vld [vmem:[%s533 + $0x190] sm:$0xff]
        %v617 = vld [vmem:[%s533 + $0x198] sm:$0xff]
        %v618 = vld [vmem:[%s533 + $0x1a0] sm:$0xff]
        %v619 = vld [vmem:[%s533 + $0x1a8] sm:$0xff]
        %v620 = vld [vmem:[%s533 + $0x1b0] sm:$0xff]
        %v621 = vld [vmem:[%s533 + $0x1b8] sm:$0xff]
        %v622 = vld [vmem:[%s533 + $0x1c0] sm:$0xff]
        %v623 = vld [vmem:[%s533 + $0x1c8] sm:$0xff]
        %v624 = vld [vmem:[%s533 + $0x1d0] sm:$0xff]
        %v625 = vld [vmem:[%s533 + $0x1d8] sm:$0xff]
        %v626 = vld [vmem:[%s533 + $0x1e0] sm:$0xff]
        %v627 = vld [vmem:[%s533 + $0x1e8] sm:$0xff]
        %v628 = vld [vmem:[%s533 + $0x1f0] sm:$0xff]
        %v629 = vld [vmem:[%s533 + $0x1f8] sm:$0xff]
        %v630 = vld [vmem:[%s1] sm:$0xf]
        %v631 = vld [vmem:[%s1 + $0x4] sm:$0xf]
        %v632 = vld [vmem:[%s1 + $0x8] sm:$0xf]
        %v633 = vld [vmem:[%s1 + $0xc] sm:$0xf]
        %v634 = vld [vmem:[%s1 + $0x10] sm:$0xf]
        %v635 = vld [vmem:[%s1 + $0x14] sm:$0xf]
        %v636 = vld [vmem:[%s1 + $0x18] sm:$0xf]
        %v637 = vld [vmem:[%s1 + $0x1c] sm:$0xf]
        %v638 = vld [vmem:[%s1 + $0x20] sm:$0xf]
        %v639 = vld [vmem:[%s1 + $0x24] sm:$0xf]
        %v640 = vld [vmem:[%s1 + $0x28] sm:$0xf]
        %v641 = vld [vmem:[%s1 + $0x2c] sm:$0xf]
        %v642 = vld [vmem:[%s1 + $0x30] sm:$0xf]
        %v643 = vld [vmem:[%s1 + $0x34] sm:$0xf]
        %v644 = vld [vmem:[%s1 + $0x38] sm:$0xf]
        %v645 = vld [vmem:[%s1 + $0x3c] sm:$0xf]
        %v646 = vld [vmem:[%s1 + $0x40] sm:$0xf]
        %v647 = vld [vmem:[%s1 + $0x44] sm:$0xf]
        %v648 = vld [vmem:[%s1 + $0x48] sm:$0xf]
        %v649 = vld [vmem:[%s1 + $0x4c] sm:$0xf]
        %v650 = vld [vmem:[%s1 + $0x50] sm:$0xf]
        %v651 = vld [vmem:[%s1 + $0x54] sm:$0xf]
        %v652 = vld [vmem:[%s1 + $0x58] sm:$0xf]
        %v653 = vld [vmem:[%s1 + $0x5c] sm:$0xf]
        %v654 = vld [vmem:[%s1 + $0x60] sm:$0xf]
        %v655 = vld [vmem:[%s1 + $0x64] sm:$0xf]
        %v656 = vld [vmem:[%s1 + $0x68] sm:$0xf]
        %v657 = vld [vmem:[%s1 + $0x6c] sm:$0xf]
        %v658 = vld [vmem:[%s1 + $0x70] sm:$0xf]
        %v659 = vld [vmem:[%s1 + $0x74] sm:$0xf]
        %v660 = vld [vmem:[%s1 + $0x78] sm:$0xf]
        %v661 = vld [vmem:[%s1 + $0x7c] sm:$0x1]
        %v726 = vunpack.c.l.b16 %v566
        %v727 = vunpack.c.h.b16 %v566
        %v728 = vunpack.c.l.b16 %v567
        %v729 = vunpack.c.h.b16 %v567
        %v730 = vunpack.c.l.b16 %v568
        %v731 = vunpack.c.h.b16 %v568
        %v732 = vunpack.c.l.b16 %v569
        %v733 = vunpack.c.h.b16 %v569
        %v734 = vunpack.c.l.b16 %v570
        %v735 = vunpack.c.h.b16 %v570
        %v736 = vunpack.c.l.b16 %v571
        %v737 = vunpack.c.h.b16 %v571
        %v738 = vunpack.c.l.b16 %v572
        %v739 = vunpack.c.h.b16 %v572
        %v740 = vunpack.c.l.b16 %v573
        %v741 = vunpack.c.h.b16 %v573
        %v742 = vunpack.c.l.b16 %v574
        %v743 = vunpack.c.h.b16 %v574
        %v744 = vunpack.c.l.b16 %v575
        %v745 = vunpack.c.h.b16 %v575
        %v746 = vunpack.c.l.b16 %v576
        %v747 = vunpack.c.h.b16 %v576
        %v748 = vunpack.c.l.b16 %v577
        %v749 = vunpack.c.h.b16 %v577
        %v750 = vunpack.c.l.b16 %v578
        %v751 = vunpack.c.h.b16 %v578
        %v752 = vunpack.c.l.b16 %v579
        %v753 = vunpack.c.h.b16 %v579
        %v754 = vunpack.c.l.b16 %v580
        %v755 = vunpack.c.h.b16 %v580
        %v756 = vunpack.c.l.b16 %v581
        %v757 = vunpack.c.h.b16 %v581
        %v758 = vunpack.c.l.b16 %v582
        %v759 = vunpack.c.h.b16 %v582
        %v760 = vunpack.c.l.b16 %v583
        %v761 = vunpack.c.h.b16 %v583
        %v762 = vunpack.c.l.b16 %v584
        %v763 = vunpack.c.h.b16 %v584
        %v764 = vunpack.c.l.b16 %v585
        %v765 = vunpack.c.h.b16 %v585
        %v766 = vunpack.c.l.b16 %v586
        %v767 = vunpack.c.h.b16 %v586
        %v768 = vunpack.c.l.b16 %v587
        %v769 = vunpack.c.h.b16 %v587
        %v770 = vunpack.c.l.b16 %v588
        %v771 = vunpack.c.h.b16 %v588
        %v772 = vunpack.c.l.b16 %v589
        %v773 = vunpack.c.h.b16 %v589
        %v774 = vunpack.c.l.b16 %v590
        %v775 = vunpack.c.h.b16 %v590
        %v776 = vunpack.c.l.b16 %v591
        %v777 = vunpack.c.h.b16 %v591
        %v778 = vunpack.c.l.b16 %v592
        %v779 = vunpack.c.h.b16 %v592
        %v780 = vunpack.c.l.b16 %v593
        %v781 = vunpack.c.h.b16 %v593
        %v782 = vunpack.c.l.b16 %v594
        %v783 = vunpack.c.h.b16 %v594
        %v784 = vunpack.c.l.b16 %v595
        %v785 = vunpack.c.h.b16 %v595
        %v786 = vunpack.c.l.b16 %v596
        %v787 = vunpack.c.h.b16 %v596
        %v788 = vunpack.c.l.b16 %v597
        %v789 = vunpack.c.h.b16 %v597
        %v790 = vunpack.c.l.b16 %v598
        %v791 = vunpack.c.h.b16 %v598
        %v792 = vunpack.c.l.b16 %v599
        %v793 = vunpack.c.h.b16 %v599
        %v794 = vunpack.c.l.b16 %v600
        %v795 = vunpack.c.h.b16 %v600
        %v796 = vunpack.c.l.b16 %v601
        %v797 = vunpack.c.h.b16 %v601
        %v798 = vunpack.c.l.b16 %v602
        %v799 = vunpack.c.h.b16 %v602
        %v800 = vunpack.c.l.b16 %v603
        %v801 = vunpack.c.h.b16 %v603
        %v802 = vunpack.c.l.b16 %v604
        %v803 = vunpack.c.h.b16 %v604
        %v804 = vunpack.c.l.b16 %v605
        %v805 = vunpack.c.h.b16 %v605
        %v806 = vunpack.c.l.b16 %v606
        %v807 = vunpack.c.h.b16 %v606
        %v808 = vunpack.c.l.b16 %v607
        %v809 = vunpack.c.h.b16 %v607
        %v810 = vunpack.c.l.b16 %v608
        %v811 = vunpack.c.h.b16 %v608
        %v812 = vunpack.c.l.b16 %v609
        %v813 = vunpack.c.h.b16 %v609
        %v814 = vunpack.c.l.b16 %v610
        %v815 = vunpack.c.h.b16 %v610
        %v816 = vunpack.c.l.b16 %v611
        %v817 = vunpack.c.h.b16 %v611
        %v818 = vunpack.c.l.b16 %v612
        %v819 = vunpack.c.h.b16 %v612
        %v820 = vunpack.c.l.b16 %v613
        %v821 = vunpack.c.h.b16 %v613
        %v822 = vunpack.c.l.b16 %v614
        %v823 = vunpack.c.h.b16 %v614
        %v824 = vunpack.c.l.b16 %v615
        %v825 = vunpack.c.h.b16 %v615
        %v826 = vunpack.c.l.b16 %v616
        %v827 = vunpack.c.h.b16 %v616
        %v828 = vunpack.c.l.b16 %v617
        %v829 = vunpack.c.h.b16 %v617
        %v830 = vunpack.c.l.b16 %v618
        %v831 = vunpack.c.h.b16 %v618
        %v832 = vunpack.c.l.b16 %v619
        %v833 = vunpack.c.h.b16 %v619
        %v834 = vunpack.c.l.b16 %v620
        %v835 = vunpack.c.h.b16 %v620
        %v836 = vunpack.c.l.b16 %v621
        %v837 = vunpack.c.h.b16 %v621
        %v838 = vunpack.c.l.b16 %v622
        %v839 = vunpack.c.h.b16 %v622
        %v840 = vunpack.c.l.b16 %v623
        %v841 = vunpack.c.h.b16 %v623
        %v842 = vunpack.c.l.b16 %v624
        %v843 = vunpack.c.h.b16 %v624
        %v844 = vunpack.c.l.b16 %v625
        %v845 = vunpack.c.h.b16 %v625
        %v846 = vunpack.c.l.b16 %v626
        %v847 = vunpack.c.h.b16 %v626
        %v848 = vunpack.c.l.b16 %v627
        %v849 = vunpack.c.h.b16 %v627
        %v850 = vunpack.c.l.b16 %v628
        %v851 = vunpack.c.h.b16 %v628
        %v852 = vunpack.c.l.b16 %v629
        %v853 = vunpack.c.h.b16 %v629
        %v854 = vpack.c.b16 %v728, %v726
        %v855 = vpack.c.b16 %v729, %v727
        %v856 = vpack.c.b16 %v732, %v730
        %v857 = vpack.c.b16 %v733, %v731
        %v858 = vpack.c.b16 %v736, %v734
        %v859 = vpack.c.b16 %v737, %v735
        %v860 = vpack.c.b16 %v740, %v738
        %v861 = vpack.c.b16 %v741, %v739
        %v862 = vpack.c.b16 %v744, %v742
        %v863 = vpack.c.b16 %v745, %v743
        %v864 = vpack.c.b16 %v748, %v746
        %v865 = vpack.c.b16 %v749, %v747
        %v866 = vpack.c.b16 %v752, %v750
        %v867 = vpack.c.b16 %v753, %v751
        %v868 = vpack.c.b16 %v756, %v754
        %v869 = vpack.c.b16 %v757, %v755
        %v870 = vpack.c.b16 %v760, %v758
        %v871 = vpack.c.b16 %v761, %v759
        %v872 = vpack.c.b16 %v764, %v762
        %v873 = vpack.c.b16 %v765, %v763
        %v874 = vpack.c.b16 %v768, %v766
        %v875 = vpack.c.b16 %v769, %v767
        %v876 = vpack.c.b16 %v772, %v770
        %v877 = vpack.c.b16 %v773, %v771
        %v878 = vpack.c.b16 %v776, %v774
        %v879 = vpack.c.b16 %v777, %v775
        %v880 = vpack.c.b16 %v780, %v778
        %v881 = vpack.c.b16 %v781, %v779
        %v882 = vpack.c.b16 %v784, %v782
        %v883 = vpack.c.b16 %v785, %v783
        %v884 = vpack.c.b16 %v788, %v786
        %v885 = vpack.c.b16 %v789, %v787
        %v886 = vpack.c.b16 %v792, %v790
        %v887 = vpack.c.b16 %v793, %v791
        %v888 = vpack.c.b16 %v796, %v794
        %v889 = vpack.c.b16 %v797, %v795
        %v890 = vpack.c.b16 %v800, %v798
        %v891 = vpack.c.b16 %v801, %v799
        %v892 = vpack.c.b16 %v804, %v802
        %v893 = vpack.c.b16 %v805, %v803
        %v894 = vpack.c.b16 %v808, %v806
        %v895 = vpack.c.b16 %v809, %v807
        %v896 = vpack.c.b16 %v812, %v810
        %v897 = vpack.c.b16 %v813, %v811
        %v898 = vpack.c.b16 %v816, %v814
        %v899 = vpack.c.b16 %v817, %v815
        %v900 = vpack.c.b16 %v820, %v818
        %v901 = vpack.c.b16 %v821, %v819
        %v902 = vpack.c.b16 %v824, %v822
        %v903 = vpack.c.b16 %v825, %v823
        %v904 = vpack.c.b16 %v828, %v826
        %v905 = vpack.c.b16 %v829, %v827
        %v906 = vpack.c.b16 %v832, %v830
        %v907 = vpack.c.b16 %v833, %v831
        %v908 = vpack.c.b16 %v836, %v834
        %v909 = vpack.c.b16 %v837, %v835
        %v910 = vpack.c.b16 %v840, %v838
        %v911 = vpack.c.b16 %v841, %v839
        %v912 = vpack.c.b16 %v844, %v842
        %v913 = vpack.c.b16 %v845, %v843
        %v914 = vpack.c.b16 %v848, %v846
        %v915 = vpack.c.b16 %v849, %v847
        %v916 = vpack.c.b16 %v852, %v850
        %v917 = vpack.c.b16 %v853, %v851
        %v982 = vunpack.c.l.b16 %v630
        %v983 = vunpack.c.l.b16 %v631
        %v984 = vunpack.c.l.b16 %v632
        %v985 = vunpack.c.l.b16 %v633
        %v986 = vunpack.c.l.b16 %v634
        %v987 = vunpack.c.l.b16 %v635
        %v988 = vunpack.c.l.b16 %v636
        %v989 = vunpack.c.l.b16 %v637
        %v990 = vunpack.c.l.b16 %v638
        %v991 = vunpack.c.l.b16 %v639
        %v992 = vunpack.c.l.b16 %v640
        %v993 = vunpack.c.l.b16 %v641
        %v994 = vunpack.c.l.b16 %v642
        %v995 = vunpack.c.l.b16 %v643
        %v996 = vunpack.c.l.b16 %v644
        %v997 = vunpack.c.l.b16 %v645
        %v998 = vunpack.c.l.b16 %v646
        %v999 = vunpack.c.l.b16 %v647
        %v1000 = vunpack.c.l.b16 %v648
        %v1001 = vunpack.c.l.b16 %v649
        %v1002 = vunpack.c.l.b16 %v650
        %v1003 = vunpack.c.l.b16 %v651
        %v1004 = vunpack.c.l.b16 %v652
        %v1005 = vunpack.c.l.b16 %v653
        %v1006 = vunpack.c.l.b16 %v654
        %v1007 = vunpack.c.l.b16 %v655
        %v1008 = vunpack.c.l.b16 %v656
        %v1009 = vunpack.c.l.b16 %v657
        %v1010 = vunpack.c.l.b16 %v658
        %v1011 = vunpack.c.l.b16 %v659
        %v1012 = vunpack.c.l.b16 %v660
        %v1013 = vunpack.c.l.b16 %v661
        %v1014 = vpack.c.b16 %v983, %v982
        %v1015 = vpack.c.b16 %v985, %v984
        %v1016 = vpack.c.b16 %v987, %v986
        %v1017 = vpack.c.b16 %v989, %v988
        %v1018 = vpack.c.b16 %v991, %v990
        %v1019 = vpack.c.b16 %v993, %v992
        %v1020 = vpack.c.b16 %v995, %v994
        %v1021 = vpack.c.b16 %v997, %v996
        %v1022 = vpack.c.b16 %v999, %v998
        %v1023 = vpack.c.b16 %v1001, %v1000
        %v1024 = vpack.c.b16 %v1003, %v1002
        %v1025 = vpack.c.b16 %v1005, %v1004
        %v1026 = vpack.c.b16 %v1007, %v1006
        %v1027 = vpack.c.b16 %v1009, %v1008
        %v1028 = vpack.c.b16 %v1011, %v1010
        %v1029 = vpack.c.b16 %v1013, %v1012
        %vm1045 = vcmask 998400
        %v1047 = vsel %vm1045, %v855, 0
        %v1050 = vsel %vm1045, %v857, 0
        %v1053 = vsel %vm1045, %v859, 0
        %v1056 = vsel %vm1045, %v861, 0
        %v1059 = vsel %vm1045, %v863, 0
        %v1062 = vsel %vm1045, %v865, 0
        %v1065 = vsel %vm1045, %v867, 0
        %v1068 = vsel %vm1045, %v869, 0
        %v1071 = vsel %vm1045, %v871, 0
        %v1074 = vsel %vm1045, %v873, 0
        %v1077 = vsel %vm1045, %v875, 0
        %v1080 = vsel %vm1045, %v877, 0
        %v1083 = vsel %vm1045, %v879, 0
        %v1086 = vsel %vm1045, %v881, 0
        %v1089 = vsel %vm1045, %v883, 0
        %v1092 = vsel %vm1045, %v885, 0
        %v1095 = vsel %vm1045, %v887, 0
        %v1098 = vsel %vm1045, %v889, 0
        %v1101 = vsel %vm1045, %v891, 0
        %v1104 = vsel %vm1045, %v893, 0
        %v1107 = vsel %vm1045, %v895, 0
        %v1110 = vsel %vm1045, %v897, 0
        %v1113 = vsel %vm1045, %v899, 0
        %v1116 = vsel %vm1045, %v901, 0
        %v1119 = vsel %vm1045, %v903, 0
        %v1122 = vsel %vm1045, %v905, 0
        %v1125 = vsel %vm1045, %v907, 0
        %v1128 = vsel %vm1045, %v909, 0
        %v1131 = vsel %vm1045, %v911, 0
        %v1134 = vsel %vm1045, %v913, 0
        %v1137 = vsel %vm1045, %v915, 0
        %v1140 = vsel %vm1045, %v917, 0
        %vm1142 = vcmask 1044480
        %v1144 = vsel %vm1142, %v1029, 0
        %1146 = vmatprep.subr.bf16.mxu0 0
        %1147 = vmatpush1.bf16.msra.mxu0 %v1021
        %1148 = vmatprep.subr.bf16.mxu0 0
        %1149 = vmatpush1.bf16.msra.mxu0 %v1020
        %1150 = vmatprep.subr.bf16.mxu0 0
        %1151 = vmatpush1.bf16.msra.mxu0 %v1019
        %1152 = vmatprep.subr.bf16.mxu0 0
        %1153 = vmatpush1.bf16.msra.mxu0 %v1018
        %1154 = vmatprep.subr.bf16.mxu0 0
        %1155 = vmatpush1.bf16.msra.mxu0 %v1017
        %1156 = vmatprep.subr.bf16.mxu0 0
        %1157 = vmatpush1.bf16.msra.mxu0 %v1016
        %1158 = vmatprep.subr.bf16.mxu0 0
        %1159 = vmatpush1.bf16.msra.mxu0 %v1015
        %1160 = vmatprep.subr.bf16.mxu0 0
        %1161 = vmatpush1.bf16.msra.mxu0 %v1014
        %1162 = vmatprep.subr.bf16.mxu0 0
        %1163 = vmatpush2.bf16.msra.mxu0 %v1144
        %1164 = vmatprep.subr.bf16.mxu0 0
        %1165 = vmatpush2.bf16.msra.mxu0 %v1028
        %1166 = vmatprep.subr.bf16.mxu0 0
        %1167 = vmatpush2.bf16.msra.mxu0 %v1027
        %1168 = vmatprep.subr.bf16.mxu0 0
        %1169 = vmatpush2.bf16.msra.mxu0 %v1026
        %1170 = vmatprep.subr.bf16.mxu0 0
        %1171 = vmatpush2.bf16.msra.mxu0 %v1025
        %1172 = vmatprep.subr.bf16.mxu0 0
        %1173 = vmatpush2.bf16.msra.mxu0 %v1024
        %1174 = vmatprep.subr.bf16.mxu0 0
        %1175 = vmatpush2.bf16.msra.mxu0 %v1023
        %1176 = vmatprep.subr.bf16.mxu0 0
        %1177 = vmatpush2.bf16.msra.mxu0 %v1022
        %1178 = vmatprep.mubr.bf16.mxu0 %v1047
        %1179 = vmatmul.mubr.bf16.gmra.mxu0 %v854
        %v1180 = vpop.f32.mrf.mxu0
        %v1181 = vadd.f32 0.0, %v1180
        %v1182 = vpop.f32.mrf.mxu0
        %v1183 = vpop.f32.mrf.mxu0
        %v1184 = vadd.f32 0.0, %v1183
        %v1185 = vpop.f32.mrf.mxu0
        %1186 = vmatprep.mubr.bf16.mxu0 %v1050
        %1187 = vmatmul.mubr.bf16.gmra.mxu0 %v856
        %v1188 = vpop.f32.mrf.mxu0
        %v1189 = vadd.f32 0.0, %v1188
        %v1190 = vpop.f32.mrf.mxu0
        %v1191 = vpop.f32.mrf.mxu0
        %v1192 = vadd.f32 0.0, %v1191
        %v1193 = vpop.f32.mrf.mxu0
        %1194 = vmatprep.mubr.bf16.mxu0 %v1053
        %1195 = vmatmul.mubr.bf16.gmra.mxu0 %v858
        %v1196 = vpop.f32.mrf.mxu0
        %v1197 = vadd.f32 0.0, %v1196
        %v1198 = vpop.f32.mrf.mxu0
        %v1199 = vpop.f32.mrf.mxu0
        %v1200 = vadd.f32 0.0, %v1199
        %v1201 = vpop.f32.mrf.mxu0
        %1202 = vmatprep.mubr.bf16.mxu0 %v1056
        %1203 = vmatmul.mubr.bf16.gmra.mxu0 %v860
        %v1204 = vpop.f32.mrf.mxu0
        %v1205 = vadd.f32 0.0, %v1204
        %v1206 = vpop.f32.mrf.mxu0
        %v1207 = vpop.f32.mrf.mxu0
        %v1208 = vadd.f32 0.0, %v1207
        %v1209 = vpop.f32.mrf.mxu0
        %1210 = vmatprep.mubr.bf16.mxu0 %v1059
        %1211 = vmatmul.mubr.bf16.gmra.mxu0 %v862
        %v1212 = vpop.f32.mrf.mxu0
        %v1213 = vadd.f32 0.0, %v1212
        %v1214 = vpop.f32.mrf.mxu0
        %v1215 = vpop.f32.mrf.mxu0
        %v1216 = vadd.f32 0.0, %v1215
        %v1217 = vpop.f32.mrf.mxu0
        %1218 = vmatprep.mubr.bf16.mxu0 %v1062
        %1219 = vmatmul.mubr.bf16.gmra.mxu0 %v864
        %v1220 = vpop.f32.mrf.mxu0
        %v1221 = vadd.f32 0.0, %v1220
        %v1222 = vpop.f32.mrf.mxu0
        %v1223 = vpop.f32.mrf.mxu0
        %v1224 = vadd.f32 0.0, %v1223
        %v1225 = vpop.f32.mrf.mxu0
        %1226 = vmatprep.mubr.bf16.mxu0 %v1065
        %1227 = vmatmul.mubr.bf16.gmra.mxu0 %v866
        %v1228 = vpop.f32.mrf.mxu0
        %v1229 = vadd.f32 0.0, %v1228
        %v1230 = vpop.f32.mrf.mxu0
        %v1231 = vpop.f32.mrf.mxu0
        %v1232 = vadd.f32 0.0, %v1231
        %v1233 = vpop.f32.mrf.mxu0
        %1234 = vmatprep.mubr.bf16.mxu0 %v1068
        %1235 = vmatmul.mubr.bf16.gmra.mxu0 %v868
        %v1236 = vpop.f32.mrf.mxu0
        %v1237 = vadd.f32 0.0, %v1236
        %v1238 = vpop.f32.mrf.mxu0
        %v1239 = vpop.f32.mrf.mxu0
        %v1240 = vadd.f32 0.0, %v1239
        %v1241 = vpop.f32.mrf.mxu0
        %1242 = vmatprep.mubr.bf16.mxu0 %v1071
        %1243 = vmatmul.mubr.bf16.gmra.mxu0 %v870
        %v1244 = vpop.f32.mrf.mxu0
        %v1245 = vadd.f32 0.0, %v1244
        %v1246 = vpop.f32.mrf.mxu0
        %v1247 = vpop.f32.mrf.mxu0
        %v1248 = vadd.f32 0.0, %v1247
        %v1249 = vpop.f32.mrf.mxu0
        %1250 = vmatprep.mubr.bf16.mxu0 %v1074
        %1251 = vmatmul.mubr.bf16.gmra.mxu0 %v872
        %v1252 = vpop.f32.mrf.mxu0
        %v1253 = vadd.f32 0.0, %v1252
        %v1254 = vpop.f32.mrf.mxu0
        %v1255 = vpop.f32.mrf.mxu0
        %v1256 = vadd.f32 0.0, %v1255
        %v1257 = vpop.f32.mrf.mxu0
        %1258 = vmatprep.mubr.bf16.mxu0 %v1077
        %1259 = vmatmul.mubr.bf16.gmra.mxu0 %v874
        %v1260 = vpop.f32.mrf.mxu0
        %v1261 = vadd.f32 0.0, %v1260
        %v1262 = vpop.f32.mrf.mxu0
        %v1263 = vpop.f32.mrf.mxu0
        %v1264 = vadd.f32 0.0, %v1263
        %v1265 = vpop.f32.mrf.mxu0
        %1266 = vmatprep.mubr.bf16.mxu0 %v1080
        %1267 = vmatmul.mubr.bf16.gmra.mxu0 %v876
        %v1268 = vpop.f32.mrf.mxu0
        %v1269 = vadd.f32 0.0, %v1268
        %v1270 = vpop.f32.mrf.mxu0
        %v1271 = vpop.f32.mrf.mxu0
        %v1272 = vadd.f32 0.0, %v1271
        %v1273 = vpop.f32.mrf.mxu0
        %1274 = vmatprep.mubr.bf16.mxu0 %v1083
        %1275 = vmatmul.mubr.bf16.gmra.mxu0 %v878
        %v1276 = vpop.f32.mrf.mxu0
        %v1277 = vadd.f32 0.0, %v1276
        %v1278 = vpop.f32.mrf.mxu0
        %v1279 = vpop.f32.mrf.mxu0
        %v1280 = vadd.f32 0.0, %v1279
        %v1281 = vpop.f32.mrf.mxu0
        %1282 = vmatprep.mubr.bf16.mxu0 %v1086
        %1283 = vmatmul.mubr.bf16.gmra.mxu0 %v880
        %v1284 = vpop.f32.mrf.mxu0
        %v1285 = vadd.f32 0.0, %v1284
        %v1286 = vpop.f32.mrf.mxu0
        %v1287 = vpop.f32.mrf.mxu0
        %v1288 = vadd.f32 0.0, %v1287
        %v1289 = vpop.f32.mrf.mxu0
        %1290 = vmatprep.mubr.bf16.mxu0 %v1089
        %1291 = vmatmul.mubr.bf16.gmra.mxu0 %v882
        %v1292 = vpop.f32.mrf.mxu0
        %v1293 = vadd.f32 0.0, %v1292
        %v1294 = vpop.f32.mrf.mxu0
        %v1295 = vpop.f32.mrf.mxu0
        %v1296 = vadd.f32 0.0, %v1295
        %v1297 = vpop.f32.mrf.mxu0
        %1298 = vmatprep.mubr.bf16.mxu0 %v1092
        %1299 = vmatmul.mubr.bf16.gmra.mxu0 %v884
        %v1300 = vpop.f32.mrf.mxu0
        %v1301 = vadd.f32 0.0, %v1300
        %v1302 = vpop.f32.mrf.mxu0
        %v1303 = vpop.f32.mrf.mxu0
        %v1304 = vadd.f32 0.0, %v1303
        %v1305 = vpop.f32.mrf.mxu0
        %1306 = vmatprep.mubr.bf16.mxu0 %v1095
        %1307 = vmatmul.mubr.bf16.gmra.mxu0 %v886
        %v1308 = vpop.f32.mrf.mxu0
        %v1309 = vadd.f32 0.0, %v1308
        %v1310 = vpop.f32.mrf.mxu0
        %v1311 = vpop.f32.mrf.mxu0
        %v1312 = vadd.f32 0.0, %v1311
        %v1313 = vpop.f32.mrf.mxu0
        %1314 = vmatprep.mubr.bf16.mxu0 %v1098
        %1315 = vmatmul.mubr.bf16.gmra.mxu0 %v888
        %v1316 = vpop.f32.mrf.mxu0
        %v1317 = vadd.f32 0.0, %v1316
        %v1318 = vpop.f32.mrf.mxu0
        %v1319 = vpop.f32.mrf.mxu0
        %v1320 = vadd.f32 0.0, %v1319
        %v1321 = vpop.f32.mrf.mxu0
        %1322 = vmatprep.mubr.bf16.mxu0 %v1101
        %1323 = vmatmul.mubr.bf16.gmra.mxu0 %v890
        %v1324 = vpop.f32.mrf.mxu0
        %v1325 = vadd.f32 0.0, %v1324
        %v1326 = vpop.f32.mrf.mxu0
        %v1327 = vpop.f32.mrf.mxu0
        %v1328 = vadd.f32 0.0, %v1327
        %v1329 = vpop.f32.mrf.mxu0
        %1330 = vmatprep.mubr.bf16.mxu0 %v1104
        %1331 = vmatmul.mubr.bf16.gmra.mxu0 %v892
        %v1332 = vpop.f32.mrf.mxu0
        %v1333 = vadd.f32 0.0, %v1332
        %v1334 = vpop.f32.mrf.mxu0
        %v1335 = vpop.f32.mrf.mxu0
        %v1336 = vadd.f32 0.0, %v1335
        %v1337 = vpop.f32.mrf.mxu0
        %1338 = vmatprep.mubr.bf16.mxu0 %v1107
        %1339 = vmatmul.mubr.bf16.gmra.mxu0 %v894
        %v1340 = vpop.f32.mrf.mxu0
        %v1341 = vadd.f32 0.0, %v1340
        %v1342 = vpop.f32.mrf.mxu0
        %v1343 = vpop.f32.mrf.mxu0
        %v1344 = vadd.f32 0.0, %v1343
        %v1345 = vpop.f32.mrf.mxu0
        %1346 = vmatprep.mubr.bf16.mxu0 %v1110
        %1347 = vmatmul.mubr.bf16.gmra.mxu0 %v896
        %v1348 = vpop.f32.mrf.mxu0
        %v1349 = vadd.f32 0.0, %v1348
        %v1350 = vpop.f32.mrf.mxu0
        %v1351 = vpop.f32.mrf.mxu0
        %v1352 = vadd.f32 0.0, %v1351
        %v1353 = vpop.f32.mrf.mxu0
        %1354 = vmatprep.mubr.bf16.mxu0 %v1113
        %1355 = vmatmul.mubr.bf16.gmra.mxu0 %v898
        %v1356 = vpop.f32.mrf.mxu0
        %v1357 = vadd.f32 0.0, %v1356
        %v1358 = vpop.f32.mrf.mxu0
        %v1359 = vpop.f32.mrf.mxu0
        %v1360 = vadd.f32 0.0, %v1359
        %v1361 = vpop.f32.mrf.mxu0
        %1362 = vmatprep.mubr.bf16.mxu0 %v1116
        %1363 = vmatmul.mubr.bf16.gmra.mxu0 %v900
        %v1364 = vpop.f32.mrf.mxu0
        %v1365 = vadd.f32 0.0, %v1364
        %v1366 = vpop.f32.mrf.mxu0
        %v1367 = vpop.f32.mrf.mxu0
        %v1368 = vadd.f32 0.0, %v1367
        %v1369 = vpop.f32.mrf.mxu0
        %1370 = vmatprep.mubr.bf16.mxu0 %v1119
        %1371 = vmatmul.mubr.bf16.gmra.mxu0 %v902
        %v1372 = vpop.f32.mrf.mxu0
        %v1373 = vadd.f32 0.0, %v1372
        %v1374 = vpop.f32.mrf.mxu0
        %v1375 = vpop.f32.mrf.mxu0
        %v1376 = vadd.f32 0.0, %v1375
        %v1377 = vpop.f32.mrf.mxu0
        %1378 = vmatprep.mubr.bf16.mxu0 %v1122
        %1379 = vmatmul.mubr.bf16.gmra.mxu0 %v904
        %v1380 = vpop.f32.mrf.mxu0
        %v1381 = vadd.f32 0.0, %v1380
        %v1382 = vpop.f32.mrf.mxu0
        %v1383 = vpop.f32.mrf.mxu0
        %v1384 = vadd.f32 0.0, %v1383
        %v1385 = vpop.f32.mrf.mxu0
        %1386 = vmatprep.mubr.bf16.mxu0 %v1125
        %1387 = vmatmul.mubr.bf16.gmra.mxu0 %v906
        %v1388 = vpop.f32.mrf.mxu0
        %v1389 = vadd.f32 0.0, %v1388
        %v1390 = vpop.f32.mrf.mxu0
        %v1391 = vpop.f32.mrf.mxu0
        %v1392 = vadd.f32 0.0, %v1391
        %v1393 = vpop.f32.mrf.mxu0
        %1394 = vmatprep.mubr.bf16.mxu0 %v1128
        %1395 = vmatmul.mubr.bf16.gmra.mxu0 %v908
        %v1396 = vpop.f32.mrf.mxu0
        %v1397 = vadd.f32 0.0, %v1396
        %v1398 = vpop.f32.mrf.mxu0
        %v1399 = vpop.f32.mrf.mxu0
        %v1400 = vadd.f32 0.0, %v1399
        %v1401 = vpop.f32.mrf.mxu0
        %1402 = vmatprep.mubr.bf16.mxu0 %v1131
        %1403 = vmatmul.mubr.bf16.gmra.mxu0 %v910
        %v1404 = vpop.f32.mrf.mxu0
        %v1405 = vadd.f32 0.0, %v1404
        %v1406 = vpop.f32.mrf.mxu0
        %v1407 = vpop.f32.mrf.mxu0
        %v1408 = vadd.f32 0.0, %v1407
        %v1409 = vpop.f32.mrf.mxu0
        %1410 = vmatprep.mubr.bf16.mxu0 %v1134
        %1411 = vmatmul.mubr.bf16.gmra.mxu0 %v912
        %v1412 = vpop.f32.mrf.mxu0
        %v1413 = vadd.f32 0.0, %v1412
        %v1414 = vpop.f32.mrf.mxu0
        %v1415 = vpop.f32.mrf.mxu0
        %v1416 = vadd.f32 0.0, %v1415
        %v1417 = vpop.f32.mrf.mxu0
        %1418 = vmatprep.mubr.bf16.mxu0 %v1137
        %1419 = vmatmul.mubr.bf16.gmra.mxu0 %v914
        %v1420 = vpop.f32.mrf.mxu0
        %v1421 = vadd.f32 0.0, %v1420
        %v1422 = vpop.f32.mrf.mxu0
        %v1423 = vpop.f32.mrf.mxu0
        %v1424 = vadd.f32 0.0, %v1423
        %v1425 = vpop.f32.mrf.mxu0
        %1426 = vmatprep.mubr.bf16.mxu0 %v1140
        %1427 = vmatmul.mubr.bf16.gmra.mxu0 %v916
        %v1428 = vpop.f32.mrf.mxu0
        %v1429 = vadd.f32 0.0, %v1428
        %v1430 = vpop.f32.mrf.mxu0
        %v1431 = vpop.f32.mrf.mxu0
        %v1432 = vadd.f32 0.0, %v1431
        %v1433 = vpop.f32.mrf.mxu0
        %1434 = vdwg.mxu0
        %v1435 = vmax.f32 %v1181, %v1245
        %v1436 = vmax.f32 %v1184, %v1248
        %v1437 = vmax.f32 %v1189, %v1253
        %v1438 = vmax.f32 %v1192, %v1256
        %v1439 = vmax.f32 %v1197, %v1261
        %v1440 = vmax.f32 %v1200, %v1264
        %v1441 = vmax.f32 %v1205, %v1269
        %v1442 = vmax.f32 %v1208, %v1272
        %v1443 = vmax.f32 %v1213, %v1277
        %v1444 = vmax.f32 %v1216, %v1280
        %v1445 = vmax.f32 %v1221, %v1285
        %v1446 = vmax.f32 %v1224, %v1288
        %v1447 = vmax.f32 %v1229, %v1293
        %v1448 = vmax.f32 %v1232, %v1296
        %v1449 = vmax.f32 %v1237, %v1301
        %v1450 = vmax.f32 %v1240, %v1304
        %v1451 = vmax.f32 %v1309, %v1373
        %v1452 = vmax.f32 %v1312, %v1376
        %v1453 = vmax.f32 %v1317, %v1381
        %v1454 = vmax.f32 %v1320, %v1384
        %v1455 = vmax.f32 %v1325, %v1389
        %v1456 = vmax.f32 %v1328, %v1392
        %v1457 = vmax.f32 %v1333, %v1397
        %v1458 = vmax.f32 %v1336, %v1400
        %v1459 = vmax.f32 %v1341, %v1405
        %v1460 = vmax.f32 %v1344, %v1408
        %v1461 = vmax.f32 %v1349, %v1413
        %v1462 = vmax.f32 %v1352, %v1416
        %v1463 = vmax.f32 %v1357, %v1421
        %v1464 = vmax.f32 %v1360, %v1424
        %v1465 = vmax.f32 %v1365, %v1429
        %v1466 = vmax.f32 %v1368, %v1432
        %v1467 = vmax.f32 %v1435, %v1451
        %v1468 = vmax.f32 %v1436, %v1452
        %v1469 = vmax.f32 %v1437, %v1453
        %v1470 = vmax.f32 %v1438, %v1454
        %v1471 = vmax.f32 %v1439, %v1455
        %v1472 = vmax.f32 %v1440, %v1456
        %v1473 = vmax.f32 %v1441, %v1457
        %v1474 = vmax.f32 %v1442, %v1458
        %v1475 = vmax.f32 %v1443, %v1459
        %v1476 = vmax.f32 %v1444, %v1460
        %v1477 = vmax.f32 %v1445, %v1461
        %v1478 = vmax.f32 %v1446, %v1462
        %v1479 = vmax.f32 %v1447, %v1463
        %v1480 = vmax.f32 %v1448, %v1464
        %v1481 = vmax.f32 %v1449, %v1465
        %v1482 = vmax.f32 %v1450, %v1466
        %v1483 = vld [vmem:[%s2] sm:$0x1]
        %v1485 = vlaneseq
        %v1486 = vshrl.u32 %v1485, 7
        %v1487 = vsub.s32 0, %v1486
        %v1488 = vrot.slane %v1483, %v1487
        %v1490 = vadd.f32 %v1467, %v1488
        %v1491 = vadd.f32 %v1468, %v1488
        %v1492 = vadd.f32 %v1469, %v1488
        %v1493 = vadd.f32 %v1470, %v1488
        %v1494 = vadd.f32 %v1471, %v1488
        %v1495 = vadd.f32 %v1472, %v1488
        %v1496 = vadd.f32 %v1473, %v1488
        %v1497 = vadd.f32 %v1474, %v1488
        %v1498 = vadd.f32 %v1475, %v1488
        %v1499 = vadd.f32 %v1476, %v1488
        %v1500 = vadd.f32 %v1477, %v1488
        %v1501 = vadd.f32 %v1478, %v1488
        %v1502 = vadd.f32 %v1479, %v1488
        %v1503 = vadd.f32 %v1480, %v1488
        %v1504 = vadd.f32 %v1481, %v1488
        %v1505 = vadd.f32 %v1482, %v1488
        %v1506 = vmax.f32 %v1490, 0.0
        %v1507 = vmax.f32 %v1491, 0.0
        %v1508 = vmax.f32 %v1492, 0.0
        %v1509 = vmax.f32 %v1493, 0.0
        %v1510 = vmax.f32 %v1494, 0.0
        %v1511 = vmax.f32 %v1495, 0.0
        %v1512 = vmax.f32 %v1496, 0.0
        %v1513 = vmax.f32 %v1497, 0.0
        %v1514 = vmax.f32 %v1498, 0.0
        %v1515 = vmax.f32 %v1499, 0.0
        %v1516 = vmax.f32 %v1500, 0.0
        %v1517 = vmax.f32 %v1501, 0.0
        %v1518 = vmax.f32 %v1502, 0.0
        %v1519 = vmax.f32 %v1503, 0.0
        %v1520 = vmax.f32 %v1504, 0.0
        %v1521 = vmax.f32 %v1505, 0.0
        %v1522 = vpack.c.bf16 %v1507, %v1506
        %v1523 = vpack.c.bf16 %v1509, %v1508
        %v1524 = vpack.c.bf16 %v1511, %v1510
        %v1525 = vpack.c.bf16 %v1513, %v1512
        %v1526 = vpack.c.bf16 %v1515, %v1514
        %v1527 = vpack.c.bf16 %v1517, %v1516
        %v1528 = vpack.c.bf16 %v1519, %v1518
        %v1529 = vpack.c.bf16 %v1521, %v1520
        %v1531 = vrot.slane %v1522, 4
        %v1534 = vrot.slane %v1523, 4
        %v1537 = vrot.slane %v1524, 4
        %v1540 = vrot.slane %v1525, 4
        %v1543 = vrot.slane %v1526, 4
        %v1546 = vrot.slane %v1527, 4
        %v1549 = vrot.slane %v1528, 4
        %v1552 = vrot.slane %v1529, 4
        %v1554 = vld [vmem:[%s3] sm:$0xf]
        %v1555 = vld [vmem:[%s3 + $0x4] sm:$0xf]
        %v1556 = vld [vmem:[%s3 + $0x8] sm:$0xf]
        %v1557 = vld [vmem:[%s3 + $0xc] sm:$0xf]
        %v1558 = vld [vmem:[%s3 + $0x10] sm:$0xf]
        %v1559 = vld [vmem:[%s3 + $0x14] sm:$0xf]
        %v1560 = vld [vmem:[%s3 + $0x18] sm:$0xf]
        %v1561 = vld [vmem:[%s3 + $0x1c] sm:$0xf]
        %v1562 = vld [vmem:[%s3 + $0x20] sm:$0xf]
        %v1563 = vld [vmem:[%s3 + $0x24] sm:$0xf]
        %v1564 = vld [vmem:[%s3 + $0x28] sm:$0xf]
        %v1565 = vld [vmem:[%s3 + $0x2c] sm:$0xf]
        %v1566 = vld [vmem:[%s3 + $0x30] sm:$0xf]
        %v1567 = vld [vmem:[%s3 + $0x34] sm:$0xf]
        %v1568 = vld [vmem:[%s3 + $0x38] sm:$0xf]
        %v1569 = vld [vmem:[%s3 + $0x3c] sm:$0xf]
        %v1570 = vld [vmem:[%s3 + $0x40] sm:$0xf]
        %v1571 = vld [vmem:[%s3 + $0x44] sm:$0xf]
        %v1572 = vld [vmem:[%s3 + $0x48] sm:$0xf]
        %v1573 = vld [vmem:[%s3 + $0x4c] sm:$0xf]
        %v1574 = vld [vmem:[%s3 + $0x50] sm:$0xf]
        %v1575 = vld [vmem:[%s3 + $0x54] sm:$0xf]
        %v1576 = vld [vmem:[%s3 + $0x58] sm:$0xf]
        %v1577 = vld [vmem:[%s3 + $0x5c] sm:$0xf]
        %v1578 = vld [vmem:[%s3 + $0x60] sm:$0xf]
        %v1579 = vld [vmem:[%s3 + $0x64] sm:$0xf]
        %v1580 = vld [vmem:[%s3 + $0x68] sm:$0xf]
        %v1581 = vld [vmem:[%s3 + $0x6c] sm:$0xf]
        %v1582 = vld [vmem:[%s3 + $0x70] sm:$0xf]
        %v1583 = vld [vmem:[%s3 + $0x74] sm:$0xf]
        %v1584 = vld [vmem:[%s3 + $0x78] sm:$0xf]
        %v1585 = vld [vmem:[%s3 + $0x7c] sm:$0xf]
        %v1586 = vld [vmem:[%s3 + $0x80] sm:$0xf]
        %v1587 = vld [vmem:[%s3 + $0x84] sm:$0xf]
        %v1588 = vld [vmem:[%s3 + $0x88] sm:$0xf]
        %v1589 = vld [vmem:[%s3 + $0x8c] sm:$0xf]
        %v1590 = vld [vmem:[%s3 + $0x90] sm:$0xf]
        %v1591 = vld [vmem:[%s3 + $0x94] sm:$0xf]
        %v1592 = vld [vmem:[%s3 + $0x98] sm:$0xf]
        %v1593 = vld [vmem:[%s3 + $0x9c] sm:$0xf]
        %v1594 = vld [vmem:[%s3 + $0xa0] sm:$0xf]
        %v1595 = vld [vmem:[%s3 + $0xa4] sm:$0xf]
        %v1596 = vld [vmem:[%s3 + $0xa8] sm:$0xf]
        %v1597 = vld [vmem:[%s3 + $0xac] sm:$0xf]
        %v1598 = vld [vmem:[%s3 + $0xb0] sm:$0xf]
        %v1599 = vld [vmem:[%s3 + $0xb4] sm:$0xf]
        %v1600 = vld [vmem:[%s3 + $0xb8] sm:$0xf]
        %v1601 = vld [vmem:[%s3 + $0xbc] sm:$0xf]
        %v1602 = vld [vmem:[%s3 + $0xc0] sm:$0xf]
        %v1603 = vld [vmem:[%s3 + $0xc4] sm:$0xf]
        %v1604 = vld [vmem:[%s3 + $0xc8] sm:$0xf]
        %v1605 = vld [vmem:[%s3 + $0xcc] sm:$0xf]
        %v1606 = vld [vmem:[%s3 + $0xd0] sm:$0xf]
        %v1607 = vld [vmem:[%s3 + $0xd4] sm:$0xf]
        %v1608 = vld [vmem:[%s3 + $0xd8] sm:$0xf]
        %v1609 = vld [vmem:[%s3 + $0xdc] sm:$0xf]
        %v1610 = vld [vmem:[%s3 + $0xe0] sm:$0xf]
        %v1611 = vld [vmem:[%s3 + $0xe4] sm:$0xf]
        %v1612 = vld [vmem:[%s3 + $0xe8] sm:$0xf]
        %v1613 = vld [vmem:[%s3 + $0xec] sm:$0xf]
        %v1614 = vld [vmem:[%s3 + $0xf0] sm:$0xf]
        %v1615 = vld [vmem:[%s3 + $0xf4] sm:$0xf]
        %v1616 = vld [vmem:[%s3 + $0xf8] sm:$0xf]
        %v1617 = vld [vmem:[%s3 + $0xfc] sm:$0xf]
        %v1618 = vld [vmem:[%s3 + $0x100] sm:$0xf]
        %v1619 = vld [vmem:[%s3 + $0x104] sm:$0xf]
        %v1620 = vld [vmem:[%s3 + $0x108] sm:$0xf]
        %v1621 = vld [vmem:[%s3 + $0x10c] sm:$0xf]
        %v1622 = vld [vmem:[%s3 + $0x110] sm:$0xf]
        %v1623 = vld [vmem:[%s3 + $0x114] sm:$0xf]
        %v1624 = vld [vmem:[%s3 + $0x118] sm:$0xf]
        %v1625 = vld [vmem:[%s3 + $0x11c] sm:$0xf]
        %v1626 = vld [vmem:[%s3 + $0x120] sm:$0xf]
        %v1627 = vld [vmem:[%s3 + $0x124] sm:$0xf]
        %v1628 = vld [vmem:[%s3 + $0x128] sm:$0xf]
        %v1629 = vld [vmem:[%s3 + $0x12c] sm:$0xf]
        %v1630 = vld [vmem:[%s3 + $0x130] sm:$0xf]
        %v1631 = vld [vmem:[%s3 + $0x134] sm:$0xf]
        %v1632 = vld [vmem:[%s3 + $0x138] sm:$0xf]
        %v1633 = vld [vmem:[%s3 + $0x13c] sm:$0xf]
        %v1634 = vld [vmem:[%s3 + $0x140] sm:$0xf]
        %v1635 = vld [vmem:[%s3 + $0x144] sm:$0xf]
        %v1636 = vld [vmem:[%s3 + $0x148] sm:$0xf]
        %v1637 = vld [vmem:[%s3 + $0x14c] sm:$0xf]
        %v1638 = vld [vmem:[%s3 + $0x150] sm:$0xf]
        %v1639 = vld [vmem:[%s3 + $0x154] sm:$0xf]
        %v1640 = vld [vmem:[%s3 + $0x158] sm:$0xf]
        %v1641 = vld [vmem:[%s3 + $0x15c] sm:$0xf]
        %v1642 = vld [vmem:[%s3 + $0x160] sm:$0xf]
        %v1643 = vld [vmem:[%s3 + $0x164] sm:$0xf]
        %v1644 = vld [vmem:[%s3 + $0x168] sm:$0xf]
        %v1645 = vld [vmem:[%s3 + $0x16c] sm:$0xf]
        %v1646 = vld [vmem:[%s3 + $0x170] sm:$0xf]
        %v1647 = vld [vmem:[%s3 + $0x174] sm:$0xf]
        %v1648 = vld [vmem:[%s3 + $0x178] sm:$0xf]
        %v1649 = vld [vmem:[%s3 + $0x17c] sm:$0xf]
        %v1650 = vld [vmem:[%s3 + $0x180] sm:$0xf]
        %v1651 = vld [vmem:[%s3 + $0x184] sm:$0xf]
        %v1652 = vld [vmem:[%s3 + $0x188] sm:$0xf]
        %v1653 = vld [vmem:[%s3 + $0x18c] sm:$0xf]
        %v1654 = vld [vmem:[%s3 + $0x190] sm:$0xf]
        %v1655 = vld [vmem:[%s3 + $0x194] sm:$0xf]
        %v1656 = vld [vmem:[%s3 + $0x198] sm:$0xf]
        %v1657 = vld [vmem:[%s3 + $0x19c] sm:$0xf]
        %v1658 = vld [vmem:[%s3 + $0x1a0] sm:$0xf]
        %v1659 = vld [vmem:[%s3 + $0x1a4] sm:$0xf]
        %v1660 = vld [vmem:[%s3 + $0x1a8] sm:$0xf]
        %v1661 = vld [vmem:[%s3 + $0x1ac] sm:$0xf]
        %v1662 = vld [vmem:[%s3 + $0x1b0] sm:$0xf]
        %v1663 = vld [vmem:[%s3 + $0x1b4] sm:$0xf]
        %v1664 = vld [vmem:[%s3 + $0x1b8] sm:$0xf]
        %v1665 = vld [vmem:[%s3 + $0x1bc] sm:$0xf]
        %v1666 = vld [vmem:[%s3 + $0x1c0] sm:$0xf]
        %v1667 = vld [vmem:[%s3 + $0x1c4] sm:$0xf]
        %v1668 = vld [vmem:[%s3 + $0x1c8] sm:$0xf]
        %v1669 = vld [vmem:[%s3 + $0x1cc] sm:$0xf]
        %v1670 = vld [vmem:[%s3 + $0x1d0] sm:$0xf]
        %v1671 = vld [vmem:[%s3 + $0x1d4] sm:$0xf]
        %v1672 = vld [vmem:[%s3 + $0x1d8] sm:$0xf]
        %v1673 = vld [vmem:[%s3 + $0x1dc] sm:$0xf]
        %v1674 = vld [vmem:[%s3 + $0x1e0] sm:$0xf]
        %v1675 = vld [vmem:[%s3 + $0x1e4] sm:$0xf]
        %v1676 = vld [vmem:[%s3 + $0x1e8] sm:$0xf]
        %v1677 = vld [vmem:[%s3 + $0x1ec] sm:$0xf]
        %v1678 = vld [vmem:[%s3 + $0x1f0] sm:$0xf]
        %v1679 = vld [vmem:[%s3 + $0x1f4] sm:$0xf]
        %v1680 = vld [vmem:[%s3 + $0x1f8] sm:$0xf]
        %v1681 = vld [vmem:[%s3 + $0x1fc] sm:$0xf]
        %v1682 = vld [vmem:[%s3 + $0x200] sm:$0xf]
        %v1683 = vld [vmem:[%s3 + $0x204] sm:$0xf]
        %v1684 = vld [vmem:[%s3 + $0x208] sm:$0xf]
        %v1685 = vld [vmem:[%s3 + $0x20c] sm:$0xf]
        %v1686 = vld [vmem:[%s3 + $0x210] sm:$0xf]
        %v1687 = vld [vmem:[%s3 + $0x214] sm:$0xf]
        %v1688 = vld [vmem:[%s3 + $0x218] sm:$0xf]
        %v1689 = vld [vmem:[%s3 + $0x21c] sm:$0xf]
        %v1690 = vld [vmem:[%s3 + $0x220] sm:$0xf]
        %v1691 = vld [vmem:[%s3 + $0x224] sm:$0xf]
        %v1692 = vld [vmem:[%s3 + $0x228] sm:$0xf]
        %v1693 = vld [vmem:[%s3 + $0x22c] sm:$0xf]
        %v1694 = vld [vmem:[%s3 + $0x230] sm:$0xf]
        %v1695 = vld [vmem:[%s3 + $0x234] sm:$0xf]
        %v1696 = vld [vmem:[%s3 + $0x238] sm:$0xf]
        %v1697 = vld [vmem:[%s3 + $0x23c] sm:$0xf]
        %v1698 = vld [vmem:[%s3 + $0x240] sm:$0xf]
        %v1699 = vld [vmem:[%s3 + $0x244] sm:$0xf]
        %v1700 = vld [vmem:[%s3 + $0x248] sm:$0xf]
        %v1701 = vld [vmem:[%s3 + $0x24c] sm:$0xf]
        %v1702 = vld [vmem:[%s3 + $0x250] sm:$0xf]
        %v1703 = vld [vmem:[%s3 + $0x254] sm:$0xf]
        %v1704 = vld [vmem:[%s3 + $0x258] sm:$0xf]
        %v1705 = vld [vmem:[%s3 + $0x25c] sm:$0xf]
        %v1706 = vld [vmem:[%s3 + $0x260] sm:$0xf]
        %v1707 = vld [vmem:[%s3 + $0x264] sm:$0xf]
        %v1708 = vld [vmem:[%s3 + $0x268] sm:$0xf]
        %v1709 = vld [vmem:[%s3 + $0x26c] sm:$0xf]
        %v1710 = vld [vmem:[%s3 + $0x270] sm:$0xf]
        %v1711 = vld [vmem:[%s3 + $0x274] sm:$0xf]
        %v1712 = vld [vmem:[%s3 + $0x278] sm:$0xf]
        %v1713 = vld [vmem:[%s3 + $0x27c] sm:$0xf]
        %v1714 = vld [vmem:[%s3 + $0x280] sm:$0xf]
        %v1715 = vld [vmem:[%s3 + $0x284] sm:$0xf]
        %v1716 = vld [vmem:[%s3 + $0x288] sm:$0xf]
        %v1717 = vld [vmem:[%s3 + $0x28c] sm:$0xf]
        %v1718 = vld [vmem:[%s3 + $0x290] sm:$0xf]
        %v1719 = vld [vmem:[%s3 + $0x294] sm:$0xf]
        %v1720 = vld [vmem:[%s3 + $0x298] sm:$0xf]
        %v1721 = vld [vmem:[%s3 + $0x29c] sm:$0xf]
        %v1722 = vld [vmem:[%s3 + $0x2a0] sm:$0xf]
        %v1723 = vld [vmem:[%s3 + $0x2a4] sm:$0xf]
        %v1724 = vld [vmem:[%s3 + $0x2a8] sm:$0xf]
        %v1725 = vld [vmem:[%s3 + $0x2ac] sm:$0xf]
        %v1726 = vld [vmem:[%s3 + $0x2b0] sm:$0xf]
        %v1727 = vld [vmem:[%s3 + $0x2b4] sm:$0xf]
        %v1728 = vld [vmem:[%s3 + $0x2b8] sm:$0xf]
        %v1729 = vld [vmem:[%s3 + $0x2bc] sm:$0xf]
        %v1730 = vld [vmem:[%s3 + $0x2c0] sm:$0xf]
        %v1731 = vld [vmem:[%s3 + $0x2c4] sm:$0xf]
        %v1732 = vld [vmem:[%s3 + $0x2c8] sm:$0xf]
        %v1733 = vld [vmem:[%s3 + $0x2cc] sm:$0xf]
        %v1734 = vld [vmem:[%s3 + $0x2d0] sm:$0xf]
        %v1735 = vld [vmem:[%s3 + $0x2d4] sm:$0xf]
        %v1736 = vld [vmem:[%s3 + $0x2d8] sm:$0xf]
        %v1737 = vld [vmem:[%s3 + $0x2dc] sm:$0xf]
        %v1738 = vld [vmem:[%s3 + $0x2e0] sm:$0xf]
        %v1739 = vld [vmem:[%s3 + $0x2e4] sm:$0xf]
        %v1740 = vld [vmem:[%s3 + $0x2e8] sm:$0xf]
        %v1741 = vld [vmem:[%s3 + $0x2ec] sm:$0xf]
        %v1742 = vld [vmem:[%s3 + $0x2f0] sm:$0xf]
        %v1743 = vld [vmem:[%s3 + $0x2f4] sm:$0xf]
        %v1744 = vld [vmem:[%s3 + $0x2f8] sm:$0xf]
        %v1745 = vld [vmem:[%s3 + $0x2fc] sm:$0xf]
        %v1746 = vld [vmem:[%s3 + $0x300] sm:$0xf]
        %v1747 = vld [vmem:[%s3 + $0x304] sm:$0xf]
        %v1748 = vld [vmem:[%s3 + $0x308] sm:$0xf]
        %v1749 = vld [vmem:[%s3 + $0x30c] sm:$0xf]
        %v1750 = vld [vmem:[%s3 + $0x310] sm:$0xf]
        %v1751 = vld [vmem:[%s3 + $0x314] sm:$0xf]
        %v1752 = vld [vmem:[%s3 + $0x318] sm:$0xf]
        %v1753 = vld [vmem:[%s3 + $0x31c] sm:$0xf]
        %v1754 = vld [vmem:[%s3 + $0x320] sm:$0xf]
        %v1755 = vld [vmem:[%s3 + $0x324] sm:$0xf]
        %v1756 = vld [vmem:[%s3 + $0x328] sm:$0xf]
        %v1757 = vld [vmem:[%s3 + $0x32c] sm:$0xf]
        %v1758 = vld [vmem:[%s3 + $0x330] sm:$0xf]
        %v1759 = vld [vmem:[%s3 + $0x334] sm:$0xf]
        %v1760 = vld [vmem:[%s3 + $0x338] sm:$0xf]
        %v1761 = vld [vmem:[%s3 + $0x33c] sm:$0xf]
        %v1762 = vld [vmem:[%s3 + $0x340] sm:$0xf]
        %v1763 = vld [vmem:[%s3 + $0x344] sm:$0xf]
        %v1764 = vld [vmem:[%s3 + $0x348] sm:$0xf]
        %v1765 = vld [vmem:[%s3 + $0x34c] sm:$0xf]
        %v1766 = vld [vmem:[%s3 + $0x350] sm:$0xf]
        %v1767 = vld [vmem:[%s3 + $0x354] sm:$0xf]
        %v1768 = vld [vmem:[%s3 + $0x358] sm:$0xf]
        %v1769 = vld [vmem:[%s3 + $0x35c] sm:$0xf]
        %v1770 = vld [vmem:[%s3 + $0x360] sm:$0xf]
        %v1771 = vld [vmem:[%s3 + $0x364] sm:$0xf]
        %v1772 = vld [vmem:[%s3 + $0x368] sm:$0xf]
        %v1773 = vld [vmem:[%s3 + $0x36c] sm:$0xf]
        %v1774 = vld [vmem:[%s3 + $0x370] sm:$0xf]
        %v1775 = vld [vmem:[%s3 + $0x374] sm:$0xf]
        %v1776 = vld [vmem:[%s3 + $0x378] sm:$0xf]
        %v1777 = vld [vmem:[%s3 + $0x37c] sm:$0xf]
        %v1778 = vld [vmem:[%s3 + $0x380] sm:$0xf]
        %v1779 = vld [vmem:[%s3 + $0x384] sm:$0xf]
        %v1780 = vld [vmem:[%s3 + $0x388] sm:$0xf]
        %v1781 = vld [vmem:[%s3 + $0x38c] sm:$0xf]
        %v1782 = vld [vmem:[%s3 + $0x390] sm:$0xf]
        %v1783 = vld [vmem:[%s3 + $0x394] sm:$0xf]
        %v1784 = vld [vmem:[%s3 + $0x398] sm:$0xf]
        %v1785 = vld [vmem:[%s3 + $0x39c] sm:$0xf]
        %v1786 = vld [vmem:[%s3 + $0x3a0] sm:$0xf]
        %v1787 = vld [vmem:[%s3 + $0x3a4] sm:$0xf]
        %v1788 = vld [vmem:[%s3 + $0x3a8] sm:$0xf]
        %v1789 = vld [vmem:[%s3 + $0x3ac] sm:$0xf]
        %v1790 = vld [vmem:[%s3 + $0x3b0] sm:$0xf]
        %v1791 = vld [vmem:[%s3 + $0x3b4] sm:$0xf]
        %v1792 = vld [vmem:[%s3 + $0x3b8] sm:$0xf]
        %v1793 = vld [vmem:[%s3 + $0x3bc] sm:$0xf]
        %v1794 = vld [vmem:[%s3 + $0x3c0] sm:$0xf]
        %v1795 = vld [vmem:[%s3 + $0x3c4] sm:$0xf]
        %v1796 = vld [vmem:[%s3 + $0x3c8] sm:$0xf]
        %v1797 = vld [vmem:[%s3 + $0x3cc] sm:$0xf]
        %v1798 = vld [vmem:[%s3 + $0x3d0] sm:$0xf]
        %v1799 = vld [vmem:[%s3 + $0x3d4] sm:$0xf]
        %v1800 = vld [vmem:[%s3 + $0x3d8] sm:$0xf]
        %v1801 = vld [vmem:[%s3 + $0x3dc] sm:$0xf]
        %v1802 = vld [vmem:[%s3 + $0x3e0] sm:$0xf]
        %v1803 = vld [vmem:[%s3 + $0x3e4] sm:$0xf]
        %v1804 = vld [vmem:[%s3 + $0x3e8] sm:$0xf]
        %v1805 = vld [vmem:[%s3 + $0x3ec] sm:$0xf]
        %v1806 = vld [vmem:[%s3 + $0x3f0] sm:$0xf]
        %v1807 = vld [vmem:[%s3 + $0x3f4] sm:$0xf]
        %v1808 = vld [vmem:[%s3 + $0x3f8] sm:$0xf]
        %v1809 = vld [vmem:[%s3 + $0x3fc] sm:$0xf]
        %v1810 = vld [vmem:[%s4] sm:$0x1]
        %v1812 = vlaneseq
        %v1813 = vshrl.u32 %v1812, 7
        %v1814 = vsub.s32 0, %v1813
        %v1815 = vrot.slane %v1810, %v1814
        %v2073 = vunpack.c.l.b16 %v1554
        %v2074 = vunpack.c.l.b16 %v1555
        %v2075 = vunpack.c.l.b16 %v1556
        %v2076 = vunpack.c.l.b16 %v1557
        %v2077 = vunpack.c.l.b16 %v1558
        %v2078 = vunpack.c.l.b16 %v1559
        %v2079 = vunpack.c.l.b16 %v1560
        %v2080 = vunpack.c.l.b16 %v1561
        %v2081 = vunpack.c.l.b16 %v1562
        %v2082 = vunpack.c.l.b16 %v1563
        %v2083 = vunpack.c.l.b16 %v1564
        %v2084 = vunpack.c.l.b16 %v1565
        %v2085 = vunpack.c.l.b16 %v1566
        %v2086 = vunpack.c.l.b16 %v1567
        %v2087 = vunpack.c.l.b16 %v1568
        %v2088 = vunpack.c.l.b16 %v1569
        %v2089 = vunpack.c.l.b16 %v1570
        %v2090 = vunpack.c.l.b16 %v1571
        %v2091 = vunpack.c.l.b16 %v1572
        %v2092 = vunpack.c.l.b16 %v1573
        %v2093 = vunpack.c.l.b16 %v1574
        %v2094 = vunpack.c.l.b16 %v1575
        %v2095 = vunpack.c.l.b16 %v1576
        %v2096 = vunpack.c.l.b16 %v1577
        %v2097 = vunpack.c.l.b16 %v1578
        %v2098 = vunpack.c.l.b16 %v1579
        %v2099 = vunpack.c.l.b16 %v1580
        %v2100 = vunpack.c.l.b16 %v1581
        %v2101 = vunpack.c.l.b16 %v1582
        %v2102 = vunpack.c.l.b16 %v1583
        %v2103 = vunpack.c.l.b16 %v1584
        %v2104 = vunpack.c.l.b16 %v1585
        %v2105 = vunpack.c.l.b16 %v1586
        %v2106 = vunpack.c.l.b16 %v1587
        %v2107 = vunpack.c.l.b16 %v1588
        %v2108 = vunpack.c.l.b16 %v1589
        %v2109 = vunpack.c.l.b16 %v1590
        %v2110 = vunpack.c.l.b16 %v1591
        %v2111 = vunpack.c.l.b16 %v1592
        %v2112 = vunpack.c.l.b16 %v1593
        %v2113 = vunpack.c.l.b16 %v1594
        %v2114 = vunpack.c.l.b16 %v1595
        %v2115 = vunpack.c.l.b16 %v1596
        %v2116 = vunpack.c.l.b16 %v1597
        %v2117 = vunpack.c.l.b16 %v1598
        %v2118 = vunpack.c.l.b16 %v1599
        %v2119 = vunpack.c.l.b16 %v1600
        %v2120 = vunpack.c.l.b16 %v1601
        %v2121 = vunpack.c.l.b16 %v1602
        %v2122 = vunpack.c.l.b16 %v1603
        %v2123 = vunpack.c.l.b16 %v1604
        %v2124 = vunpack.c.l.b16 %v1605
        %v2125 = vunpack.c.l.b16 %v1606
        %v2126 = vunpack.c.l.b16 %v1607
        %v2127 = vunpack.c.l.b16 %v1608
        %v2128 = vunpack.c.l.b16 %v1609
        %v2129 = vunpack.c.l.b16 %v1610
        %v2130 = vunpack.c.l.b16 %v1611
        %v2131 = vunpack.c.l.b16 %v1612
        %v2132 = vunpack.c.l.b16 %v1613
        %v2133 = vunpack.c.l.b16 %v1614
        %v2134 = vunpack.c.l.b16 %v1615
        %v2135 = vunpack.c.l.b16 %v1616
        %v2136 = vunpack.c.l.b16 %v1617
        %v2137 = vunpack.c.l.b16 %v1618
        %v2138 = vunpack.c.l.b16 %v1619
        %v2139 = vunpack.c.l.b16 %v1620
        %v2140 = vunpack.c.l.b16 %v1621
        %v2141 = vunpack.c.l.b16 %v1622
        %v2142 = vunpack.c.l.b16 %v1623
        %v2143 = vunpack.c.l.b16 %v1624
        %v2144 = vunpack.c.l.b16 %v1625
        %v2145 = vunpack.c.l.b16 %v1626
        %v2146 = vunpack.c.l.b16 %v1627
        %v2147 = vunpack.c.l.b16 %v1628
        %v2148 = vunpack.c.l.b16 %v1629
        %v2149 = vunpack.c.l.b16 %v1630
        %v2150 = vunpack.c.l.b16 %v1631
        %v2151 = vunpack.c.l.b16 %v1632
        %v2152 = vunpack.c.l.b16 %v1633
        %v2153 = vunpack.c.l.b16 %v1634
        %v2154 = vunpack.c.l.b16 %v1635
        %v2155 = vunpack.c.l.b16 %v1636
        %v2156 = vunpack.c.l.b16 %v1637
        %v2157 = vunpack.c.l.b16 %v1638
        %v2158 = vunpack.c.l.b16 %v1639
        %v2159 = vunpack.c.l.b16 %v1640
        %v2160 = vunpack.c.l.b16 %v1641
        %v2161 = vunpack.c.l.b16 %v1642
        %v2162 = vunpack.c.l.b16 %v1643
        %v2163 = vunpack.c.l.b16 %v1644
        %v2164 = vunpack.c.l.b16 %v1645
        %v2165 = vunpack.c.l.b16 %v1646
        %v2166 = vunpack.c.l.b16 %v1647
        %v2167 = vunpack.c.l.b16 %v1648
        %v2168 = vunpack.c.l.b16 %v1649
        %v2169 = vunpack.c.l.b16 %v1650
        %v2170 = vunpack.c.l.b16 %v1651
        %v2171 = vunpack.c.l.b16 %v1652
        %v2172 = vunpack.c.l.b16 %v1653
        %v2173 = vunpack.c.l.b16 %v1654
        %v2174 = vunpack.c.l.b16 %v1655
        %v2175 = vunpack.c.l.b16 %v1656
        %v2176 = vunpack.c.l.b16 %v1657
        %v2177 = vunpack.c.l.b16 %v1658
        %v2178 = vunpack.c.l.b16 %v1659
        %v2179 = vunpack.c.l.b16 %v1660
        %v2180 = vunpack.c.l.b16 %v1661
        %v2181 = vunpack.c.l.b16 %v1662
        %v2182 = vunpack.c.l.b16 %v1663
        %v2183 = vunpack.c.l.b16 %v1664
        %v2184 = vunpack.c.l.b16 %v1665
        %v2185 = vunpack.c.l.b16 %v1666
        %v2186 = vunpack.c.l.b16 %v1667
        %v2187 = vunpack.c.l.b16 %v1668
        %v2188 = vunpack.c.l.b16 %v1669
        %v2189 = vunpack.c.l.b16 %v1670
        %v2190 = vunpack.c.l.b16 %v1671
        %v2191 = vunpack.c.l.b16 %v1672
        %v2192 = vunpack.c.l.b16 %v1673
        %v2193 = vunpack.c.l.b16 %v1674
        %v2194 = vunpack.c.l.b16 %v1675
        %v2195 = vunpack.c.l.b16 %v1676
        %v2196 = vunpack.c.l.b16 %v1677
        %v2197 = vunpack.c.l.b16 %v1678
        %v2198 = vunpack.c.l.b16 %v1679
        %v2199 = vunpack.c.l.b16 %v1680
        %v2200 = vunpack.c.l.b16 %v1681
        %v2201 = vunpack.c.l.b16 %v1682
        %v2202 = vunpack.c.l.b16 %v1683
        %v2203 = vunpack.c.l.b16 %v1684
        %v2204 = vunpack.c.l.b16 %v1685
        %v2205 = vunpack.c.l.b16 %v1686
        %v2206 = vunpack.c.l.b16 %v1687
        %v2207 = vunpack.c.l.b16 %v1688
        %v2208 = vunpack.c.l.b16 %v1689
        %v2209 = vunpack.c.l.b16 %v1690
        %v2210 = vunpack.c.l.b16 %v1691
        %v2211 = vunpack.c.l.b16 %v1692
        %v2212 = vunpack.c.l.b16 %v1693
        %v2213 = vunpack.c.l.b16 %v1694
        %v2214 = vunpack.c.l.b16 %v1695
        %v2215 = vunpack.c.l.b16 %v1696
        %v2216 = vunpack.c.l.b16 %v1697
        %v2217 = vunpack.c.l.b16 %v1698
        %v2218 = vunpack.c.l.b16 %v1699
        %v2219 = vunpack.c.l.b16 %v1700
        %v2220 = vunpack.c.l.b16 %v1701
        %v2221 = vunpack.c.l.b16 %v1702
        %v2222 = vunpack.c.l.b16 %v1703
        %v2223 = vunpack.c.l.b16 %v1704
        %v2224 = vunpack.c.l.b16 %v1705
        %v2225 = vunpack.c.l.b16 %v1706
        %v2226 = vunpack.c.l.b16 %v1707
        %v2227 = vunpack.c.l.b16 %v1708
        %v2228 = vunpack.c.l.b16 %v1709
        %v2229 = vunpack.c.l.b16 %v1710
        %v2230 = vunpack.c.l.b16 %v1711
        %v2231 = vunpack.c.l.b16 %v1712
        %v2232 = vunpack.c.l.b16 %v1713
        %v2233 = vunpack.c.l.b16 %v1714
        %v2234 = vunpack.c.l.b16 %v1715
        %v2235 = vunpack.c.l.b16 %v1716
        %v2236 = vunpack.c.l.b16 %v1717
        %v2237 = vunpack.c.l.b16 %v1718
        %v2238 = vunpack.c.l.b16 %v1719
        %v2239 = vunpack.c.l.b16 %v1720
        %v2240 = vunpack.c.l.b16 %v1721
        %v2241 = vunpack.c.l.b16 %v1722
        %v2242 = vunpack.c.l.b16 %v1723
        %v2243 = vunpack.c.l.b16 %v1724
        %v2244 = vunpack.c.l.b16 %v1725
        %v2245 = vunpack.c.l.b16 %v1726
        %v2246 = vunpack.c.l.b16 %v1727
        %v2247 = vunpack.c.l.b16 %v1728
        %v2248 = vunpack.c.l.b16 %v1729
        %v2249 = vunpack.c.l.b16 %v1730
        %v2250 = vunpack.c.l.b16 %v1731
        %v2251 = vunpack.c.l.b16 %v1732
        %v2252 = vunpack.c.l.b16 %v1733
        %v2253 = vunpack.c.l.b16 %v1734
        %v2254 = vunpack.c.l.b16 %v1735
        %v2255 = vunpack.c.l.b16 %v1736
        %v2256 = vunpack.c.l.b16 %v1737
        %v2257 = vunpack.c.l.b16 %v1738
        %v2258 = vunpack.c.l.b16 %v1739
        %v2259 = vunpack.c.l.b16 %v1740
        %v2260 = vunpack.c.l.b16 %v1741
        %v2261 = vunpack.c.l.b16 %v1742
        %v2262 = vunpack.c.l.b16 %v1743
        %v2263 = vunpack.c.l.b16 %v1744
        %v2264 = vunpack.c.l.b16 %v1745
        %v2265 = vunpack.c.l.b16 %v1746
        %v2266 = vunpack.c.l.b16 %v1747
        %v2267 = vunpack.c.l.b16 %v1748
        %v2268 = vunpack.c.l.b16 %v1749
        %v2269 = vunpack.c.l.b16 %v1750
        %v2270 = vunpack.c.l.b16 %v1751
        %v2271 = vunpack.c.l.b16 %v1752
        %v2272 = vunpack.c.l.b16 %v1753
        %v2273 = vunpack.c.l.b16 %v1754
        %v2274 = vunpack.c.l.b16 %v1755
        %v2275 = vunpack.c.l.b16 %v1756
        %v2276 = vunpack.c.l.b16 %v1757
        %v2277 = vunpack.c.l.b16 %v1758
        %v2278 = vunpack.c.l.b16 %v1759
        %v2279 = vunpack.c.l.b16 %v1760
        %v2280 = vunpack.c.l.b16 %v1761
        %v2281 = vunpack.c.l.b16 %v1762
        %v2282 = vunpack.c.l.b16 %v1763
        %v2283 = vunpack.c.l.b16 %v1764
        %v2284 = vunpack.c.l.b16 %v1765
        %v2285 = vunpack.c.l.b16 %v1766
        %v2286 = vunpack.c.l.b16 %v1767
        %v2287 = vunpack.c.l.b16 %v1768
        %v2288 = vunpack.c.l.b16 %v1769
        %v2289 = vunpack.c.l.b16 %v1770
        %v2290 = vunpack.c.l.b16 %v1771
        %v2291 = vunpack.c.l.b16 %v1772
        %v2292 = vunpack.c.l.b16 %v1773
        %v2293 = vunpack.c.l.b16 %v1774
        %v2294 = vunpack.c.l.b16 %v1775
        %v2295 = vunpack.c.l.b16 %v1776
        %v2296 = vunpack.c.l.b16 %v1777
        %v2297 = vunpack.c.l.b16 %v1778
        %v2298 = vunpack.c.l.b16 %v1779
        %v2299 = vunpack.c.l.b16 %v1780
        %v2300 = vunpack.c.l.b16 %v1781
        %v2301 = vunpack.c.l.b16 %v1782
        %v2302 = vunpack.c.l.b16 %v1783
        %v2303 = vunpack.c.l.b16 %v1784
        %v2304 = vunpack.c.l.b16 %v1785
        %v2305 = vunpack.c.l.b16 %v1786
        %v2306 = vunpack.c.l.b16 %v1787
        %v2307 = vunpack.c.l.b16 %v1788
        %v2308 = vunpack.c.l.b16 %v1789
        %v2309 = vunpack.c.l.b16 %v1790
        %v2310 = vunpack.c.l.b16 %v1791
        %v2311 = vunpack.c.l.b16 %v1792
        %v2312 = vunpack.c.l.b16 %v1793
        %v2313 = vunpack.c.l.b16 %v1794
        %v2314 = vunpack.c.l.b16 %v1795
        %v2315 = vunpack.c.l.b16 %v1796
        %v2316 = vunpack.c.l.b16 %v1797
        %v2317 = vunpack.c.l.b16 %v1798
        %v2318 = vunpack.c.l.b16 %v1799
        %v2319 = vunpack.c.l.b16 %v1800
        %v2320 = vunpack.c.l.b16 %v1801
        %v2321 = vunpack.c.l.b16 %v1802
        %v2322 = vunpack.c.l.b16 %v1803
        %v2323 = vunpack.c.l.b16 %v1804
        %v2324 = vunpack.c.l.b16 %v1805
        %v2325 = vunpack.c.l.b16 %v1806
        %v2326 = vunpack.c.l.b16 %v1807
        %v2327 = vunpack.c.l.b16 %v1808
        %v2328 = vunpack.c.l.b16 %v1809
        %v2329 = vpack.c.b16 %v2074, %v2073
        %v2330 = vpack.c.b16 %v2076, %v2075
        %v2331 = vpack.c.b16 %v2078, %v2077
        %v2332 = vpack.c.b16 %v2080, %v2079
        %v2333 = vpack.c.b16 %v2082, %v2081
        %v2334 = vpack.c.b16 %v2084, %v2083
        %v2335 = vpack.c.b16 %v2086, %v2085
        %v2336 = vpack.c.b16 %v2088, %v2087
        %v2337 = vpack.c.b16 %v2090, %v2089
        %v2338 = vpack.c.b16 %v2092, %v2091
        %v2339 = vpack.c.b16 %v2094, %v2093
        %v2340 = vpack.c.b16 %v2096, %v2095
        %v2341 = vpack.c.b16 %v2098, %v2097
        %v2342 = vpack.c.b16 %v2100, %v2099
        %v2343 = vpack.c.b16 %v2102, %v2101
        %v2344 = vpack.c.b16 %v2104, %v2103
        %v2345 = vpack.c.b16 %v2106, %v2105
        %v2346 = vpack.c.b16 %v2108, %v2107
        %v2347 = vpack.c.b16 %v2110, %v2109
        %v2348 = vpack.c.b16 %v2112, %v2111
        %v2349 = vpack.c.b16 %v2114, %v2113
        %v2350 = vpack.c.b16 %v2116, %v2115
        %v2351 = vpack.c.b16 %v2118, %v2117
        %v2352 = vpack.c.b16 %v2120, %v2119
        %v2353 = vpack.c.b16 %v2122, %v2121
        %v2354 = vpack.c.b16 %v2124, %v2123
        %v2355 = vpack.c.b16 %v2126, %v2125
        %v2356 = vpack.c.b16 %v2128, %v2127
        %v2357 = vpack.c.b16 %v2130, %v2129
        %v2358 = vpack.c.b16 %v2132, %v2131
        %v2359 = vpack.c.b16 %v2134, %v2133
        %v2360 = vpack.c.b16 %v2136, %v2135
        %v2361 = vpack.c.b16 %v2138, %v2137
        %v2362 = vpack.c.b16 %v2140, %v2139
        %v2363 = vpack.c.b16 %v2142, %v2141
        %v2364 = vpack.c.b16 %v2144, %v2143
        %v2365 = vpack.c.b16 %v2146, %v2145
        %v2366 = vpack.c.b16 %v2148, %v2147
        %v2367 = vpack.c.b16 %v2150, %v2149
        %v2368 = vpack.c.b16 %v2152, %v2151
        %v2369 = vpack.c.b16 %v2154, %v2153
        %v2370 = vpack.c.b16 %v2156, %v2155
        %v2371 = vpack.c.b16 %v2158, %v2157
        %v2372 = vpack.c.b16 %v2160, %v2159
        %v2373 = vpack.c.b16 %v2162, %v2161
        %v2374 = vpack.c.b16 %v2164, %v2163
        %v2375 = vpack.c.b16 %v2166, %v2165
        %v2376 = vpack.c.b16 %v2168, %v2167
        %v2377 = vpack.c.b16 %v2170, %v2169
        %v2378 = vpack.c.b16 %v2172, %v2171
        %v2379 = vpack.c.b16 %v2174, %v2173
        %v2380 = vpack.c.b16 %v2176, %v2175
        %v2381 = vpack.c.b16 %v2178, %v2177
        %v2382 = vpack.c.b16 %v2180, %v2179
        %v2383 = vpack.c.b16 %v2182, %v2181
        %v2384 = vpack.c.b16 %v2184, %v2183
        %v2385 = vpack.c.b16 %v2186, %v2185
        %v2386 = vpack.c.b16 %v2188, %v2187
        %v2387 = vpack.c.b16 %v2190, %v2189
        %v2388 = vpack.c.b16 %v2192, %v2191
        %v2389 = vpack.c.b16 %v2194, %v2193
        %v2390 = vpack.c.b16 %v2196, %v2195
        %v2391 = vpack.c.b16 %v2198, %v2197
        %v2392 = vpack.c.b16 %v2200, %v2199
        %v2393 = vpack.c.b16 %v2202, %v2201
        %v2394 = vpack.c.b16 %v2204, %v2203
        %v2395 = vpack.c.b16 %v2206, %v2205
        %v2396 = vpack.c.b16 %v2208, %v2207
        %v2397 = vpack.c.b16 %v2210, %v2209
        %v2398 = vpack.c.b16 %v2212, %v2211
        %v2399 = vpack.c.b16 %v2214, %v2213
        %v2400 = vpack.c.b16 %v2216, %v2215
        %v2401 = vpack.c.b16 %v2218, %v2217
        %v2402 = vpack.c.b16 %v2220, %v2219
        %v2403 = vpack.c.b16 %v2222, %v2221
        %v2404 = vpack.c.b16 %v2224, %v2223
        %v2405 = vpack.c.b16 %v2226, %v2225
        %v2406 = vpack.c.b16 %v2228, %v2227
        %v2407 = vpack.c.b16 %v2230, %v2229
        %v2408 = vpack.c.b16 %v2232, %v2231
        %v2409 = vpack.c.b16 %v2234, %v2233
        %v2410 = vpack.c.b16 %v2236, %v2235
        %v2411 = vpack.c.b16 %v2238, %v2237
        %v2412 = vpack.c.b16 %v2240, %v2239
        %v2413 = vpack.c.b16 %v2242, %v2241
        %v2414 = vpack.c.b16 %v2244, %v2243
        %v2415 = vpack.c.b16 %v2246, %v2245
        %v2416 = vpack.c.b16 %v2248, %v2247
        %v2417 = vpack.c.b16 %v2250, %v2249
        %v2418 = vpack.c.b16 %v2252, %v2251
        %v2419 = vpack.c.b16 %v2254, %v2253
        %v2420 = vpack.c.b16 %v2256, %v2255
        %v2421 = vpack.c.b16 %v2258, %v2257
        %v2422 = vpack.c.b16 %v2260, %v2259
        %v2423 = vpack.c.b16 %v2262, %v2261
        %v2424 = vpack.c.b16 %v2264, %v2263
        %v2425 = vpack.c.b16 %v2266, %v2265
        %v2426 = vpack.c.b16 %v2268, %v2267
        %v2427 = vpack.c.b16 %v2270, %v2269
        %v2428 = vpack.c.b16 %v2272, %v2271
        %v2429 = vpack.c.b16 %v2274, %v2273
        %v2430 = vpack.c.b16 %v2276, %v2275
        %v2431 = vpack.c.b16 %v2278, %v2277
        %v2432 = vpack.c.b16 %v2280, %v2279
        %v2433 = vpack.c.b16 %v2282, %v2281
        %v2434 = vpack.c.b16 %v2284, %v2283
        %v2435 = vpack.c.b16 %v2286, %v2285
        %v2436 = vpack.c.b16 %v2288, %v2287
        %v2437 = vpack.c.b16 %v2290, %v2289
        %v2438 = vpack.c.b16 %v2292, %v2291
        %v2439 = vpack.c.b16 %v2294, %v2293
        %v2440 = vpack.c.b16 %v2296, %v2295
        %v2441 = vpack.c.b16 %v2298, %v2297
        %v2442 = vpack.c.b16 %v2300, %v2299
        %v2443 = vpack.c.b16 %v2302, %v2301
        %v2444 = vpack.c.b16 %v2304, %v2303
        %v2445 = vpack.c.b16 %v2306, %v2305
        %v2446 = vpack.c.b16 %v2308, %v2307
        %v2447 = vpack.c.b16 %v2310, %v2309
        %v2448 = vpack.c.b16 %v2312, %v2311
        %v2449 = vpack.c.b16 %v2314, %v2313
        %v2450 = vpack.c.b16 %v2316, %v2315
        %v2451 = vpack.c.b16 %v2318, %v2317
        %v2452 = vpack.c.b16 %v2320, %v2319
        %v2453 = vpack.c.b16 %v2322, %v2321
        %v2454 = vpack.c.b16 %v2324, %v2323
        %v2455 = vpack.c.b16 %v2326, %v2325
        %v2456 = vpack.c.b16 %v2328, %v2327
        %2585 = vmatprep.subr.bf16.mxu0 0
        %2586 = vmatpush1.bf16.msra.mxu0 %v2336
        %2587 = vmatprep.subr.bf16.mxu0 0
        %2588 = vmatpush1.bf16.msra.mxu0 %v2335
        %2589 = vmatprep.subr.bf16.mxu0 0
        %2590 = vmatpush1.bf16.msra.mxu0 %v2334
        %2591 = vmatprep.subr.bf16.mxu0 0
        %2592 = vmatpush1.bf16.msra.mxu0 %v2333
        %2593 = vmatprep.subr.bf16.mxu0 0
        %2594 = vmatpush1.bf16.msra.mxu0 %v2332
        %2595 = vmatprep.subr.bf16.mxu0 0
        %2596 = vmatpush1.bf16.msra.mxu0 %v2331
        %2597 = vmatprep.subr.bf16.mxu0 0
        %2598 = vmatpush1.bf16.msra.mxu0 %v2330
        %2599 = vmatprep.subr.bf16.mxu0 0
        %2600 = vmatpush1.bf16.msra.mxu0 %v2329
        %2601 = vmatprep.subr.bf16.mxu0 0
        %2602 = vmatpush2.bf16.msra.mxu0 %v2344
        %2603 = vmatprep.subr.bf16.mxu0 0
        %2604 = vmatpush2.bf16.msra.mxu0 %v2343
        %2605 = vmatprep.subr.bf16.mxu0 0
        %2606 = vmatpush2.bf16.msra.mxu0 %v2342
        %2607 = vmatprep.subr.bf16.mxu0 0
        %2608 = vmatpush2.bf16.msra.mxu0 %v2341
        %2609 = vmatprep.subr.bf16.mxu0 0
        %2610 = vmatpush2.bf16.msra.mxu0 %v2340
        %2611 = vmatprep.subr.bf16.mxu0 0
        %2612 = vmatpush2.bf16.msra.mxu0 %v2339
        %2613 = vmatprep.subr.bf16.mxu0 0
        %2614 = vmatpush2.bf16.msra.mxu0 %v2338
        %2615 = vmatprep.subr.bf16.mxu0 0
        %2616 = vmatpush2.bf16.msra.mxu0 %v2337
        %2617 = vmatprep.mubr.bf16.mxu0 %v1531
        %2618 = vmatmul.mubr.bf16.gmra.mxu0 %v1522
        %v2619 = vpop.f32.mrf.mxu0
        %v2620 = vadd.f32 %v1815, %v2619
        %v2621 = vpop.f32.mrf.mxu0
        %v2622 = vpop.f32.mrf.mxu0
        %v2623 = vpop.f32.mrf.mxu0
        %2624 = vdwg.mxu0
        %2625 = vmatprep.subr.bf16.mxu0 0
        %2626 = vmatpush1.bf16.msra.mxu0 %v2352
        %2627 = vmatprep.subr.bf16.mxu0 0
        %2628 = vmatpush1.bf16.msra.mxu0 %v2351
        %2629 = vmatprep.subr.bf16.mxu0 0
        %2630 = vmatpush1.bf16.msra.mxu0 %v2350
        %2631 = vmatprep.subr.bf16.mxu0 0
        %2632 = vmatpush1.bf16.msra.mxu0 %v2349
        %2633 = vmatprep.subr.bf16.mxu0 0
        %2634 = vmatpush1.bf16.msra.mxu0 %v2348
        %2635 = vmatprep.subr.bf16.mxu0 0
        %2636 = vmatpush1.bf16.msra.mxu0 %v2347
        %2637 = vmatprep.subr.bf16.mxu0 0
        %2638 = vmatpush1.bf16.msra.mxu0 %v2346
        %2639 = vmatprep.subr.bf16.mxu0 0
        %2640 = vmatpush1.bf16.msra.mxu0 %v2345
        %2641 = vmatprep.subr.bf16.mxu0 0
        %2642 = vmatpush2.bf16.msra.mxu0 %v2360
        %2643 = vmatprep.subr.bf16.mxu0 0
        %2644 = vmatpush2.bf16.msra.mxu0 %v2359
        %2645 = vmatprep.subr.bf16.mxu0 0
        %2646 = vmatpush2.bf16.msra.mxu0 %v2358
        %2647 = vmatprep.subr.bf16.mxu0 0
        %2648 = vmatpush2.bf16.msra.mxu0 %v2357
        %2649 = vmatprep.subr.bf16.mxu0 0
        %2650 = vmatpush2.bf16.msra.mxu0 %v2356
        %2651 = vmatprep.subr.bf16.mxu0 0
        %2652 = vmatpush2.bf16.msra.mxu0 %v2355
        %2653 = vmatprep.subr.bf16.mxu0 0
        %2654 = vmatpush2.bf16.msra.mxu0 %v2354
        %2655 = vmatprep.subr.bf16.mxu0 0
        %2656 = vmatpush2.bf16.msra.mxu0 %v2353
        %2657 = vmatprep.mubr.bf16.mxu0 %v1534
        %2658 = vmatmul.mubr.bf16.gmra.mxu0 %v1523
        %v2659 = vpop.f32.mrf.mxu0
        %v2660 = vadd.f32 %v2620, %v2659
        %v2661 = vpop.f32.mrf.mxu0
        %v2662 = vpop.f32.mrf.mxu0
        %v2663 = vpop.f32.mrf.mxu0
        %2664 = vdwg.mxu0
        %2665 = vmatprep.subr.bf16.mxu0 0
        %2666 = vmatpush1.bf16.msra.mxu0 %v2368
        %2667 = vmatprep.subr.bf16.mxu0 0
        %2668 = vmatpush1.bf16.msra.mxu0 %v2367
        %2669 = vmatprep.subr.bf16.mxu0 0
        %2670 = vmatpush1.bf16.msra.mxu0 %v2366
        %2671 = vmatprep.subr.bf16.mxu0 0
        %2672 = vmatpush1.bf16.msra.mxu0 %v2365
        %2673 = vmatprep.subr.bf16.mxu0 0
        %2674 = vmatpush1.bf16.msra.mxu0 %v2364
        %2675 = vmatprep.subr.bf16.mxu0 0
        %2676 = vmatpush1.bf16.msra.mxu0 %v2363
        %2677 = vmatprep.subr.bf16.mxu0 0
        %2678 = vmatpush1.bf16.msra.mxu0 %v2362
        %2679 = vmatprep.subr.bf16.mxu0 0
        %2680 = vmatpush1.bf16.msra.mxu0 %v2361
        %2681 = vmatprep.subr.bf16.mxu0 0
        %2682 = vmatpush2.bf16.msra.mxu0 %v2376
        %2683 = vmatprep.subr.bf16.mxu0 0
        %2684 = vmatpush2.bf16.msra.mxu0 %v2375
        %2685 = vmatprep.subr.bf16.mxu0 0
        %2686 = vmatpush2.bf16.msra.mxu0 %v2374
        %2687 = vmatprep.subr.bf16.mxu0 0
        %2688 = vmatpush2.bf16.msra.mxu0 %v2373
        %2689 = vmatprep.subr.bf16.mxu0 0
        %2690 = vmatpush2.bf16.msra.mxu0 %v2372
        %2691 = vmatprep.subr.bf16.mxu0 0
        %2692 = vmatpush2.bf16.msra.mxu0 %v2371
        %2693 = vmatprep.subr.bf16.mxu0 0
        %2694 = vmatpush2.bf16.msra.mxu0 %v2370
        %2695 = vmatprep.subr.bf16.mxu0 0
        %2696 = vmatpush2.bf16.msra.mxu0 %v2369
        %2697 = vmatprep.mubr.bf16.mxu0 %v1537
        %2698 = vmatmul.mubr.bf16.gmra.mxu0 %v1524
        %v2699 = vpop.f32.mrf.mxu0
        %v2700 = vadd.f32 %v2660, %v2699
        %v2701 = vpop.f32.mrf.mxu0
        %v2702 = vpop.f32.mrf.mxu0
        %v2703 = vpop.f32.mrf.mxu0
        %2704 = vdwg.mxu0
        %2705 = vmatprep.subr.bf16.mxu0 0
        %2706 = vmatpush1.bf16.msra.mxu0 %v2384
        %2707 = vmatprep.subr.bf16.mxu0 0
        %2708 = vmatpush1.bf16.msra.mxu0 %v2383
        %2709 = vmatprep.subr.bf16.mxu0 0
        %2710 = vmatpush1.bf16.msra.mxu0 %v2382
        %2711 = vmatprep.subr.bf16.mxu0 0
        %2712 = vmatpush1.bf16.msra.mxu0 %v2381
        %2713 = vmatprep.subr.bf16.mxu0 0
        %2714 = vmatpush1.bf16.msra.mxu0 %v2380
        %2715 = vmatprep.subr.bf16.mxu0 0
        %2716 = vmatpush1.bf16.msra.mxu0 %v2379
        %2717 = vmatprep.subr.bf16.mxu0 0
        %2718 = vmatpush1.bf16.msra.mxu0 %v2378
        %2719 = vmatprep.subr.bf16.mxu0 0
        %2720 = vmatpush1.bf16.msra.mxu0 %v2377
        %2721 = vmatprep.subr.bf16.mxu0 0
        %2722 = vmatpush2.bf16.msra.mxu0 %v2392
        %2723 = vmatprep.subr.bf16.mxu0 0
        %2724 = vmatpush2.bf16.msra.mxu0 %v2391
        %2725 = vmatprep.subr.bf16.mxu0 0
        %2726 = vmatpush2.bf16.msra.mxu0 %v2390
        %2727 = vmatprep.subr.bf16.mxu0 0
        %2728 = vmatpush2.bf16.msra.mxu0 %v2389
        %2729 = vmatprep.subr.bf16.mxu0 0
        %2730 = vmatpush2.bf16.msra.mxu0 %v2388
        %2731 = vmatprep.subr.bf16.mxu0 0
        %2732 = vmatpush2.bf16.msra.mxu0 %v2387
        %2733 = vmatprep.subr.bf16.mxu0 0
        %2734 = vmatpush2.bf16.msra.mxu0 %v2386
        %2735 = vmatprep.subr.bf16.mxu0 0
        %2736 = vmatpush2.bf16.msra.mxu0 %v2385
        %2737 = vmatprep.mubr.bf16.mxu0 %v1540
        %2738 = vmatmul.mubr.bf16.gmra.mxu0 %v1525
        %v2739 = vpop.f32.mrf.mxu0
        %v2740 = vadd.f32 %v2700, %v2739
        %v2741 = vpop.f32.mrf.mxu0
        %v2742 = vpop.f32.mrf.mxu0
        %v2743 = vpop.f32.mrf.mxu0
        %2744 = vdwg.mxu0
        %2745 = vmatprep.subr.bf16.mxu0 0
        %2746 = vmatpush1.bf16.msra.mxu0 %v2400
        %2747 = vmatprep.subr.bf16.mxu0 0
        %2748 = vmatpush1.bf16.msra.mxu0 %v2399
        %2749 = vmatprep.subr.bf16.mxu0 0
        %2750 = vmatpush1.bf16.msra.mxu0 %v2398
        %2751 = vmatprep.subr.bf16.mxu0 0
        %2752 = vmatpush1.bf16.msra.mxu0 %v2397
        %2753 = vmatprep.subr.bf16.mxu0 0
        %2754 = vmatpush1.bf16.msra.mxu0 %v2396
        %2755 = vmatprep.subr.bf16.mxu0 0
        %2756 = vmatpush1.bf16.msra.mxu0 %v2395
        %2757 = vmatprep.subr.bf16.mxu0 0
        %2758 = vmatpush1.bf16.msra.mxu0 %v2394
        %2759 = vmatprep.subr.bf16.mxu0 0
        %2760 = vmatpush1.bf16.msra.mxu0 %v2393
        %2761 = vmatprep.subr.bf16.mxu0 0
        %2762 = vmatpush2.bf16.msra.mxu0 %v2408
        %2763 = vmatprep.subr.bf16.mxu0 0
        %2764 = vmatpush2.bf16.msra.mxu0 %v2407
        %2765 = vmatprep.subr.bf16.mxu0 0
        %2766 = vmatpush2.bf16.msra.mxu0 %v2406
        %2767 = vmatprep.subr.bf16.mxu0 0
        %2768 = vmatpush2.bf16.msra.mxu0 %v2405
        %2769 = vmatprep.subr.bf16.mxu0 0
        %2770 = vmatpush2.bf16.msra.mxu0 %v2404
        %2771 = vmatprep.subr.bf16.mxu0 0
        %2772 = vmatpush2.bf16.msra.mxu0 %v2403
        %2773 = vmatprep.subr.bf16.mxu0 0
        %2774 = vmatpush2.bf16.msra.mxu0 %v2402
        %2775 = vmatprep.subr.bf16.mxu0 0
        %2776 = vmatpush2.bf16.msra.mxu0 %v2401
        %2777 = vmatprep.mubr.bf16.mxu0 %v1543
        %2778 = vmatmul.mubr.bf16.gmra.mxu0 %v1526
        %v2779 = vpop.f32.mrf.mxu0
        %v2780 = vadd.f32 %v2740, %v2779
        %v2781 = vpop.f32.mrf.mxu0
        %v2782 = vpop.f32.mrf.mxu0
        %v2783 = vpop.f32.mrf.mxu0
        %2784 = vdwg.mxu0
        %2785 = vmatprep.subr.bf16.mxu0 0
        %2786 = vmatpush1.bf16.msra.mxu0 %v2416
        %2787 = vmatprep.subr.bf16.mxu0 0
        %2788 = vmatpush1.bf16.msra.mxu0 %v2415
        %2789 = vmatprep.subr.bf16.mxu0 0
        %2790 = vmatpush1.bf16.msra.mxu0 %v2414
        %2791 = vmatprep.subr.bf16.mxu0 0
        %2792 = vmatpush1.bf16.msra.mxu0 %v2413
        %2793 = vmatprep.subr.bf16.mxu0 0
        %2794 = vmatpush1.bf16.msra.mxu0 %v2412
        %2795 = vmatprep.subr.bf16.mxu0 0
        %2796 = vmatpush1.bf16.msra.mxu0 %v2411
        %2797 = vmatprep.subr.bf16.mxu0 0
        %2798 = vmatpush1.bf16.msra.mxu0 %v2410
        %2799 = vmatprep.subr.bf16.mxu0 0
        %2800 = vmatpush1.bf16.msra.mxu0 %v2409
        %2801 = vmatprep.subr.bf16.mxu0 0
        %2802 = vmatpush2.bf16.msra.mxu0 %v2424
        %2803 = vmatprep.subr.bf16.mxu0 0
        %2804 = vmatpush2.bf16.msra.mxu0 %v2423
        %2805 = vmatprep.subr.bf16.mxu0 0
        %2806 = vmatpush2.bf16.msra.mxu0 %v2422
        %2807 = vmatprep.subr.bf16.mxu0 0
        %2808 = vmatpush2.bf16.msra.mxu0 %v2421
        %2809 = vmatprep.subr.bf16.mxu0 0
        %2810 = vmatpush2.bf16.msra.mxu0 %v2420
        %2811 = vmatprep.subr.bf16.mxu0 0
        %2812 = vmatpush2.bf16.msra.mxu0 %v2419
        %2813 = vmatprep.subr.bf16.mxu0 0
        %2814 = vmatpush2.bf16.msra.mxu0 %v2418
        %2815 = vmatprep.subr.bf16.mxu0 0
        %2816 = vmatpush2.bf16.msra.mxu0 %v2417
        %2817 = vmatprep.mubr.bf16.mxu0 %v1546
        %2818 = vmatmul.mubr.bf16.gmra.mxu0 %v1527
        %v2819 = vpop.f32.mrf.mxu0
        %v2820 = vadd.f32 %v2780, %v2819
        %v2821 = vpop.f32.mrf.mxu0
        %v2822 = vpop.f32.mrf.mxu0
        %v2823 = vpop.f32.mrf.mxu0
        %2824 = vdwg.mxu0
        %2825 = vmatprep.subr.bf16.mxu0 0
        %2826 = vmatpush1.bf16.msra.mxu0 %v2432
        %2827 = vmatprep.subr.bf16.mxu0 0
        %2828 = vmatpush1.bf16.msra.mxu0 %v2431
        %2829 = vmatprep.subr.bf16.mxu0 0
        %2830 = vmatpush1.bf16.msra.mxu0 %v2430
        %2831 = vmatprep.subr.bf16.mxu0 0
        %2832 = vmatpush1.bf16.msra.mxu0 %v2429
        %2833 = vmatprep.subr.bf16.mxu0 0
        %2834 = vmatpush1.bf16.msra.mxu0 %v2428
        %2835 = vmatprep.subr.bf16.mxu0 0
        %2836 = vmatpush1.bf16.msra.mxu0 %v2427
        %2837 = vmatprep.subr.bf16.mxu0 0
        %2838 = vmatpush1.bf16.msra.mxu0 %v2426
        %2839 = vmatprep.subr.bf16.mxu0 0
        %2840 = vmatpush1.bf16.msra.mxu0 %v2425
        %2841 = vmatprep.subr.bf16.mxu0 0
        %2842 = vmatpush2.bf16.msra.mxu0 %v2440
        %2843 = vmatprep.subr.bf16.mxu0 0
        %2844 = vmatpush2.bf16.msra.mxu0 %v2439
        %2845 = vmatprep.subr.bf16.mxu0 0
        %2846 = vmatpush2.bf16.msra.mxu0 %v2438
        %2847 = vmatprep.subr.bf16.mxu0 0
        %2848 = vmatpush2.bf16.msra.mxu0 %v2437
        %2849 = vmatprep.subr.bf16.mxu0 0
        %2850 = vmatpush2.bf16.msra.mxu0 %v2436
        %2851 = vmatprep.subr.bf16.mxu0 0
        %2852 = vmatpush2.bf16.msra.mxu0 %v2435
        %2853 = vmatprep.subr.bf16.mxu0 0
        %2854 = vmatpush2.bf16.msra.mxu0 %v2434
        %2855 = vmatprep.subr.bf16.mxu0 0
        %2856 = vmatpush2.bf16.msra.mxu0 %v2433
        %2857 = vmatprep.mubr.bf16.mxu0 %v1549
        %2858 = vmatmul.mubr.bf16.gmra.mxu0 %v1528
        %v2859 = vpop.f32.mrf.mxu0
        %v2860 = vadd.f32 %v2820, %v2859
        %v2861 = vpop.f32.mrf.mxu0
        %v2862 = vpop.f32.mrf.mxu0
        %v2863 = vpop.f32.mrf.mxu0
        %2864 = vdwg.mxu0
        %2865 = vmatprep.subr.bf16.mxu0 0
        %2866 = vmatpush1.bf16.msra.mxu0 %v2448
        %2867 = vmatprep.subr.bf16.mxu0 0
        %2868 = vmatpush1.bf16.msra.mxu0 %v2447
        %2869 = vmatprep.subr.bf16.mxu0 0
        %2870 = vmatpush1.bf16.msra.mxu0 %v2446
        %2871 = vmatprep.subr.bf16.mxu0 0
        %2872 = vmatpush1.bf16.msra.mxu0 %v2445
        %2873 = vmatprep.subr.bf16.mxu0 0
        %2874 = vmatpush1.bf16.msra.mxu0 %v2444
        %2875 = vmatprep.subr.bf16.mxu0 0
        %2876 = vmatpush1.bf16.msra.mxu0 %v2443
        %2877 = vmatprep.subr.bf16.mxu0 0
        %2878 = vmatpush1.bf16.msra.mxu0 %v2442
        %2879 = vmatprep.subr.bf16.mxu0 0
        %2880 = vmatpush1.bf16.msra.mxu0 %v2441
        %2881 = vmatprep.subr.bf16.mxu0 0
        %2882 = vmatpush2.bf16.msra.mxu0 %v2456
        %2883 = vmatprep.subr.bf16.mxu0 0
        %2884 = vmatpush2.bf16.msra.mxu0 %v2455
        %2885 = vmatprep.subr.bf16.mxu0 0
        %2886 = vmatpush2.bf16.msra.mxu0 %v2454
        %2887 = vmatprep.subr.bf16.mxu0 0
        %2888 = vmatpush2.bf16.msra.mxu0 %v2453
        %2889 = vmatprep.subr.bf16.mxu0 0
        %2890 = vmatpush2.bf16.msra.mxu0 %v2452
        %2891 = vmatprep.subr.bf16.mxu0 0
        %2892 = vmatpush2.bf16.msra.mxu0 %v2451
        %2893 = vmatprep.subr.bf16.mxu0 0
        %2894 = vmatpush2.bf16.msra.mxu0 %v2450
        %2895 = vmatprep.subr.bf16.mxu0 0
        %2896 = vmatpush2.bf16.msra.mxu0 %v2449
        %2897 = vmatprep.mubr.bf16.mxu0 %v1552
        %2898 = vmatmul.mubr.bf16.gmra.mxu0 %v1529
        %v2899 = vpop.f32.mrf.mxu0
        %v2900 = vadd.f32 %v2860, %v2899
        %v2901 = vpop.f32.mrf.mxu0
        %v2902 = vpop.f32.mrf.mxu0
        %v2903 = vpop.f32.mrf.mxu0
        %2904 = vdwg.mxu0
        %v2905 = vmax.f32 %v2900, 0.0
        %v2906 = vpack.c.bf16 %v2905, %v2905
        %v2907 = vld [vmem:[%s5] sm:$0xf]
        %v2908 = vld [vmem:[%s5 + $0x4] sm:$0xf]
        %v2909 = vld [vmem:[%s5 + $0x8] sm:$0xf]
        %v2910 = vld [vmem:[%s5 + $0xc] sm:$0xf]
        %v2911 = vld [vmem:[%s5 + $0x10] sm:$0xf]
        %v2912 = vld [vmem:[%s5 + $0x14] sm:$0xf]
        %v2913 = vld [vmem:[%s5 + $0x18] sm:$0xf]
        %v2914 = vld [vmem:[%s5 + $0x1c] sm:$0xf]
        %v2915 = vld [vmem:[%s5 + $0x20] sm:$0xf]
        %v2916 = vld [vmem:[%s5 + $0x24] sm:$0xf]
        %v2917 = vld [vmem:[%s5 + $0x28] sm:$0xf]
        %v2918 = vld [vmem:[%s5 + $0x2c] sm:$0xf]
        %v2919 = vld [vmem:[%s5 + $0x30] sm:$0xf]
        %v2920 = vld [vmem:[%s5 + $0x34] sm:$0xf]
        %v2921 = vld [vmem:[%s5 + $0x38] sm:$0xf]
        %v2922 = vld [vmem:[%s5 + $0x3c] sm:$0xf]
        %v2923 = vld [vmem:[%s6] sm:$0x1]
        %v2925 = vlaneseq
        %v2926 = vshrl.u32 %v2925, 7
        %v2927 = vsub.s32 0, %v2926
        %v2928 = vrot.slane %v2923, %v2927
        %v2946 = vunpack.c.l.b16 %v2907
        %v2947 = vunpack.c.l.b16 %v2908
        %v2948 = vunpack.c.l.b16 %v2909
        %v2949 = vunpack.c.l.b16 %v2910
        %v2950 = vunpack.c.l.b16 %v2911
        %v2951 = vunpack.c.l.b16 %v2912
        %v2952 = vunpack.c.l.b16 %v2913
        %v2953 = vunpack.c.l.b16 %v2914
        %v2954 = vunpack.c.l.b16 %v2915
        %v2955 = vunpack.c.l.b16 %v2916
        %v2956 = vunpack.c.l.b16 %v2917
        %v2957 = vunpack.c.l.b16 %v2918
        %v2958 = vunpack.c.l.b16 %v2919
        %v2959 = vunpack.c.l.b16 %v2920
        %v2960 = vunpack.c.l.b16 %v2921
        %v2961 = vunpack.c.l.b16 %v2922
        %v2962 = vpack.c.b16 %v2947, %v2946
        %v2963 = vpack.c.b16 %v2949, %v2948
        %v2964 = vpack.c.b16 %v2951, %v2950
        %v2965 = vpack.c.b16 %v2953, %v2952
        %v2966 = vpack.c.b16 %v2955, %v2954
        %v2967 = vpack.c.b16 %v2957, %v2956
        %v2968 = vpack.c.b16 %v2959, %v2958
        %v2969 = vpack.c.b16 %v2961, %v2960
        %2978 = vmatprep.subr.bf16.mxu0 0
        %2979 = vmatpush1.bf16.msra.mxu0 %v2969
        %2980 = vmatprep.subr.bf16.mxu0 0
        %2981 = vmatpush1.bf16.msra.mxu0 %v2968
        %2982 = vmatprep.subr.bf16.mxu0 0
        %2983 = vmatpush1.bf16.msra.mxu0 %v2967
        %2984 = vmatprep.subr.bf16.mxu0 0
        %2985 = vmatpush1.bf16.msra.mxu0 %v2966
        %2986 = vmatprep.subr.bf16.mxu0 0
        %2987 = vmatpush1.bf16.msra.mxu0 %v2965
        %2988 = vmatprep.subr.bf16.mxu0 0
        %2989 = vmatpush1.bf16.msra.mxu0 %v2964
        %2990 = vmatprep.subr.bf16.mxu0 0
        %2991 = vmatpush1.bf16.msra.mxu0 %v2963
        %2992 = vmatprep.subr.bf16.mxu0 0
        %2993 = vmatpush1.bf16.msra.mxu0 %v2962
        %2994 = vmatprep.subr.bf16.mxu0 0
        %2995 = vmatpush2.bf16.msra.mxu0 0
        %2996 = vmatprep.subr.bf16.mxu0 0
        %2997 = vmatpush2.bf16.msra.mxu0 0
        %2998 = vmatprep.subr.bf16.mxu0 0
        %2999 = vmatpush2.bf16.msra.mxu0 0
        %3000 = vmatprep.subr.bf16.mxu0 0
        %3001 = vmatpush2.bf16.msra.mxu0 0
        %3002 = vmatprep.subr.bf16.mxu0 0
        %3003 = vmatpush2.bf16.msra.mxu0 0
        %3004 = vmatprep.subr.bf16.mxu0 0
        %3005 = vmatpush2.bf16.msra.mxu0 0
        %3006 = vmatprep.subr.bf16.mxu0 0
        %3007 = vmatpush2.bf16.msra.mxu0 0
        %3008 = vmatprep.subr.bf16.mxu0 0
        %3009 = vmatpush2.bf16.msra.mxu0 0
        %3010 = vmatprep.mubr.bf16.mxu0 0
        %3011 = vmatmul.mubr.bf16.gmra.mxu0 %v2906
        %v3012 = vpop.f32.mrf.mxu0
        %v3013 = vadd.f32 %v2928, %v3012
        %v3014 = vpop.f32.mrf.mxu0
        %v3015 = vpop.f32.mrf.mxu0
        %v3016 = vpop.f32.mrf.mxu0
        %3017 = vdwg.mxu0
        %v3018 = vlaneseq
        %v3019 = vand.u32 %v3018, 127
        %vm3020 = vcmp.lt.s32.totalorder %v3019, 10
        %v3021 = vsel %vm3020, %v3013, -1e+30
        %3022 = vmax.xlane.f32.xlu0 %v3021
        %v3023 = vpop.xlane.xlu0 %3022
        %v3024 = vsub.f32 %v3021, %v3023
        %v3025 = vmul.f32 %v3024, 1.442695
        %v3026 = vpow.pop %v3025
        %3027 = vadd.xlane.f32.xlu0 %v3026
        %v3028 = vpop.xlane.xlu0 %3027
        %v3029 = vlog2.pop %v3028
        %v3030 = vmul.f32 %v3029, 0.6931472
        %v3031 = vsub.f32 %v3024, %v3030
        %3032 = vst [vmem:[%s564] sm:$0xff] %v3031
        %p3033 = scmp.lt.s32.totalorder %s18, 1
        %s3034 = scalar_select %p3033, %s18, 1
        %s3035 = smul.addr %s3034, 8
        %s3036 = scalar_lea.vmem %s7, %s3035
        // Predicated region
        $region87: #{net_forward.3} parent=81 // pred_check
          %p3037 = pneg %p188
        $region88: #{net_forward.3} parent=81 // pred_check_branch
          %3039 = sbr.rel (%p3037) target = $region90
        $region89: #{net_forward.3} parent=81 // pred_region
          _
        $region90: #{net_forward.3} parent=81 // pred_fallthru
          _
      $region82: #{net_forward.3} parent=5 // pred_fallthru
        _
      %p3040 = scmp.le.s32.totalorder 2, %s13
      // Predicated region
      $region91: #{net_forward.3} parent=5 // pred_check
        %p3041 = pneg %p3040
      $region92: #{net_forward.3} parent=5 // pred_check_branch
        %3043 = sbr.rel (%p3041) target = $region94
      $region93: #{net_forward.3} parent=5 // pred_region
        %s3044 = ssub.s32 %s13, 2
        // Predicated region
        $region95: #{net_forward.3} parent=93 // pred_check
          %p3045 = pneg %p194
        $region96: #{net_forward.3} parent=93 // pred_check_branch
          %3047 = sbr.rel (%p3045) target = $region98
        $region97: #{net_forward.3} parent=93 // pred_region
          %p3048 = scmp.lt.s32.totalorder %s19, 1
          %s3049 = scalar_select %p3048, %s19, 1
          %s3050 = smul.addr %s3049, 8
          %s3051 = scalar_lea.vmem %s7, %s3050
        $region98: #{net_forward.3} parent=93 // pred_fallthru
          _
      $region94: #{net_forward.3} parent=5 // pred_fallthru
        _
    $region6: #{net_forward.3} parent=1 // loop_footer
      %s17 = sadd.s32 1, %s13
    $region7: #{net_forward.3} parent=1 // loop_footer_branch
      %12 = sbr.rel target = $region3
    $region8: #{net_forward.3} parent=1 // loop_exit
      _

</llo_original>
